<compile_context>
chip_gen: v7x
topology: tpu7x:2x2x1
jax: 0.10.0
libtpu: 0.0.40
codegen_flags: <defaults>
</compile_context>

<pallas_src>
import jax
import jax.numpy as jnp
import numpy as np
from jax import lax
from jax.experimental import pallas as pl
from jax.experimental.pallas import tpu as pltpu

_EPS = 1e-5


# ----------------------------------------------------------------------------
# Pallas kernel: one packed image (H, W, C_packed) per grid step.
# ----------------------------------------------------------------------------
def _frh_kernel(x_ref, pa_w_ref, pa_b_ref, sc_w_ref, sc_b_ref,
                ca_w1_ref, ca_w2_ref, dw_w_ref, dw_s_ref, dw_b_ref,
                pw_w_ref, o_ref):
    H, W, C = x_ref.shape                     # C = packed lane width (e.g. 128)
    HW = H * W
    x = x_ref[...].reshape(HW, C)             # (HW, C): C dense in lanes

    # Validity masks for the zero-padded 3x3 stencil expressed as cyclic rolls
    # of the row-major flattened image (wrap-around positions are zeroed).
    n = lax.broadcasted_iota(jnp.int32, (HW, 1), 0)
    w_pos = n % W
    m_top = (n >= W).astype(jnp.float32)              # h-1 in range
    m_bot = (n < (H - 1) * W).astype(jnp.float32)     # h+1 in range
    m_left = (w_pos > 0).astype(jnp.float32)          # w-1 in range
    m_right = (w_pos < W - 1).astype(jnp.float32)     # w+1 in range

    def dw3x3(t, w_ref):
        # Row-shifted copies: rolls by +-W move whole (8,128) vregs -> cheap.
        r0 = pltpu.roll(t, shift=W, axis=0) * m_top        # t[h-1, w]
        r2 = pltpu.roll(t, shift=HW - W, axis=0) * m_bot   # t[h+1, w]

        def col(j):  # weighted sum over the three row taps of kernel column j
            return (r0 * w_ref[j:j + 1, :]
                    + t * w_ref[3 + j:4 + j, :]
                    + r2 * w_ref[6 + j:7 + j, :])

        # Column shifts by +-1: sublane rotate on the XLU, masked at W edges.
        c_l = pltpu.roll(col(0), shift=1, axis=0) * m_left       # tap at w-1
        c_r = pltpu.roll(col(2), shift=HW - 1, axis=0) * m_right  # tap at w+1
        return col(1) + c_l + c_r

    # --- shortcut = ConvBN(1x1): block-diag 1x1 conv + folded BN (MXU, bf16) -
    shortcut = jnp.dot(x.astype(jnp.bfloat16), sc_w_ref[...],
                       preferred_element_type=jnp.float32) + sc_b_ref[...]

    # --- pa branch: depthwise 3x3 (+bias) -> sigmoid -> gate x ---------------
    pa = jax.nn.sigmoid(dw3x3(x, pa_w_ref) + pa_b_ref[...]) * x

    # --- ca branch: GAP -> 1x1 -> ReLU6 -> 1x1 -> sigmoid -> gate x ----------
    # Tiny squeeze-excite matmuls on the VPU/XLU (no MXU push/drain).
    gap = jnp.mean(x, axis=0, keepdims=True)                          # (1, C)
    h1 = jnp.clip(jnp.sum(gap * ca_w1_ref[...], axis=1, keepdims=True),
                  0.0, 6.0)                                           # (gC16, 1)
    ca_scale = jax.nn.sigmoid(jnp.sum(h1 * ca_w2_ref[...], axis=0,
                                      keepdims=True))                 # (1, C)
    y = pa + x * ca_scale

    # --- proj = SeparableConvBN: depthwise 3x3 -> folded BN -> pointwise 1x1 -
    d = dw3x3(y, dw_w_ref) * dw_s_ref[...] + dw_b_ref[...]
    proj = jnp.dot(d.astype(jnp.bfloat16), pw_w_ref[...],
                   preferred_element_type=jnp.float32)

    # --- out = ReLU6(proj + shortcut) ----------------------------------------
    o_ref[...] = jnp.clip(proj + shortcut, 0.0, 6.0).reshape(H, W, C)


# ----------------------------------------------------------------------------
# Wrapper: NCHW in / NCHW out.  Channel packing, weight re-layout, BN folding.
# ----------------------------------------------------------------------------
def feature_refinement_head(x_nchw, p):
    B, C, H, W = x_nchw.shape
    C16 = p["ca_w1"].shape[0]

    # Pack g images along the channel axis to fill the 128-lane vregs.
    g = min(B, max(1, 128 // C)) if C < 128 else 1
    while g > 1 and B % g != 0:
        g -= 1
    Bg, gC = B // g, g * C

    x_nhwc = jnp.transpose(x_nchw, (0, 2, 3, 1)).astype(jnp.float32)
    xp = x_nhwc.reshape(Bg, g, H, W, C)
    xp = jnp.transpose(xp, (0, 2, 3, 1, 4)).reshape(Bg, H, W, gC)

    def tile_c(v):                 # per-channel vector -> (1, gC)
        return jnp.tile(v.reshape(1, C), (1, g))

    def blk(m):                    # per-image matrix -> block-diagonal (g copies)
        return jnp.kron(jnp.eye(g, dtype=m.dtype), m)

    # pa: depthwise conv weight (C,1,3,3) -> (9, gC); bias -> (1, gC)
    pa_w = jnp.tile(jnp.transpose(p["pa_w"][:, 0], (1, 2, 0)).reshape(9, C), (1, g))
    pa_b = tile_c(p["pa_b"])

    # shortcut: fold eval-mode BN into the 1x1 conv -> (gC, gC) bf16 + (1, gC)
    sc_s = p["sc_gamma"] / jnp.sqrt(p["sc_var"] + _EPS)
    sc_w = blk((p["sc_w"][:, :, 0, 0] * sc_s[:, None]).T).astype(jnp.bfloat16)
    sc_b = tile_c(p["sc_beta"] - p["sc_mean"] * sc_s)

    # ca squeeze-excite: (g*C16, gC) matrices consumed by VPU/XLU reductions
    ca_w1 = blk(p["ca_w1"][:, :, 0, 0])            # rows = hidden, cols = in
    ca_w2 = blk(p["ca_w2"][:, :, 0, 0].T)          # rows = hidden, cols = out

    # proj: depthwise (9, gC), folded BN scale/bias, pointwise (gC, gC) bf16
    dw_w = jnp.tile(jnp.transpose(p["dw_w"][:, 0], (1, 2, 0)).reshape(9, C), (1, g))
    pj_s = p["pj_gamma"] / jnp.sqrt(p["pj_var"] + _EPS)
    dw_s = tile_c(pj_s)
    dw_b = tile_c(p["pj_beta"] - p["pj_mean"] * pj_s)
    pw_w = blk(p["pw_w"][:, :, 0, 0].T).astype(jnp.bfloat16)

    weights = (pa_w, pa_b, sc_w, sc_b, ca_w1, ca_w2, dw_w, dw_s, dw_b, pw_w)

    def full_spec(arr):
        nd = arr.ndim
        return pl.BlockSpec(arr.shape, lambda b, _n=nd: (0,) * _n)

    grid_spec = pltpu.PrefetchScalarGridSpec(
        num_scalar_prefetch=0,
        grid=(Bg,),
        in_specs=[pl.BlockSpec((None, H, W, gC), lambda b: (b, 0, 0, 0))]
                 + [full_spec(w) for w in weights],
        out_specs=pl.BlockSpec((None, H, W, gC), lambda b: (b, 0, 0, 0)),
    )

    # Advisory cost estimate: two (block-diag) 1x1 matmuls + two depthwise 3x3.
    hw = H * W
    flops = Bg * (2 * 2 * hw * gC * gC + 2 * 9 * 2 * hw * gC)
    transcendentals = Bg * (2 * hw * gC + gC)
    bytes_accessed = (2 * B * H * W * C * 4
                      + sum(int(w.size) * w.dtype.itemsize for w in weights))

    out_p = pl.pallas_call(
        _frh_kernel,
        out_shape=jax.ShapeDtypeStruct((Bg, H, W, gC), jnp.float32),
        grid_spec=grid_spec,
        compiler_params=pltpu.CompilerParams(
            dimension_semantics=("parallel",)),
        cost_estimate=pl.CostEstimate(flops=flops,
                                      transcendentals=transcendentals,
                                      bytes_accessed=bytes_accessed),
    )(xp, *weights)

    out = out_p.reshape(Bg, H, W, g, C)
    return jnp.transpose(out, (0, 3, 4, 1, 2)).reshape(B, C, H, W)


# ----------------------------------------------------------------------------
# Deterministic parameter initialization (PyTorch weight layouts).
# ----------------------------------------------------------------------------
def init_params(key, C=64):
    C16 = C // 16
    ks = jax.random.split(key, 16)
    n = lambda k, shape, s=0.3: s * jax.random.normal(k, shape, jnp.float32)
    u = lambda k, shape, lo, hi: jax.random.uniform(k, shape, jnp.float32, lo, hi)
    return dict(
        pa_w=n(ks[0], (C, 1, 3, 3)),        pa_b=n(ks[1], (C,), 0.1),
        ca_w1=n(ks[2], (C16, C, 1, 1)),     ca_w2=n(ks[3], (C, C16, 1, 1)),
        sc_w=n(ks[4], (C, C, 1, 1), 0.15),
        sc_gamma=u(ks[5], (C,), 0.8, 1.2),  sc_beta=n(ks[6], (C,), 0.1),
        sc_mean=n(ks[7], (C,), 0.1),        sc_var=u(ks[8], (C,), 0.5, 1.5),
        dw_w=n(ks[9], (C, 1, 3, 3)),
        pj_gamma=u(ks[10], (C,), 0.8, 1.2), pj_beta=n(ks[11], (C,), 0.1),
        pj_mean=n(ks[12], (C,), 0.1),       pj_var=u(ks[13], (C,), 0.5, 1.5),
        pw_w=n(ks[14], (C, C, 1, 1), 0.15),
    )


# ----------------------------------------------------------------------------
# Pure-JAX (XLA) reference of the PyTorch forward, for correctness checking.
# ----------------------------------------------------------------------------
def _conv(x, w, padding, groups=1):
    return lax.conv_general_dilated(
        x, w, (1, 1), padding,
        dimension_numbers=("NCHW", "OIHW", "NCHW"),
        feature_group_count=groups,
        precision=lax.Precision.HIGHEST)


def _bn(x, gamma, beta, mean, var):
    s = gamma / jnp.sqrt(var + _EPS)
    return x * s[None, :, None, None] + (beta - mean * s)[None, :, None, None]


def reference(x, p):
    C = x.shape[1]
    sc = _bn(_conv(x, p["sc_w"], "VALID"),
             p["sc_gamma"], p["sc_beta"], p["sc_mean"], p["sc_var"])
    pa_lin = (_conv(x, p["pa_w"], ((1, 1), (1, 1)), groups=C)
              + p["pa_b"][None, :, None, None])
    pa = jax.nn.sigmoid(pa_lin) * x
    gap = jnp.mean(x, axis=(2, 3), keepdims=True)
    h = jnp.clip(_conv(gap, p["ca_w1"], "VALID"), 0.0, 6.0)
    ca = jax.nn.sigmoid(_conv(h, p["ca_w2"], "VALID")) * x
    y = pa + ca
    d = _bn(_conv(y, p["dw_w"], ((1, 1), (1, 1)), groups=C),
            p["pj_gamma"], p["pj_beta"], p["pj_mean"], p["pj_var"])
    proj = _conv(d, p["pw_w"], "VALID")
    return jnp.clip(proj + sc, 0.0, 6.0)


if __name__ == "__main__":
    key = jax.random.PRNGKey(0)
    kx, kp = jax.random.split(key)
    B, C, H, W = 2, 64, 16, 16           # decode_channels=64 (module default)
    x = jax.random.normal(kx, (B, C, H, W), jnp.float32)
    params = init_params(kp, C)

    out = jax.block_until_ready(feature_refinement_head(x, params))

    ref = reference(x, params)
    # bf16 MXU operands (f32 accumulation) -> slightly looser tolerance.
    np.testing.assert_allclose(np.asarray(out), np.asarray(ref),
                               rtol=2e-2, atol=3e-2)
    print("KERNEL_OK")
</pallas_src>

<mosaic_0001>
module attributes {stable_mosaic.version = 11 : i64} {
  func.func @_frh_kernel(%arg0: i32, %arg1: memref<1x16x16x128xf32, #tpu.memory_space<vmem>>, %arg2: memref<9x128xf32, #tpu.memory_space<vmem>>, %arg3: memref<1x128xf32, #tpu.memory_space<vmem>>, %arg4: memref<128x128xbf16, #tpu.memory_space<vmem>>, %arg5: memref<1x128xf32, #tpu.memory_space<vmem>>, %arg6: memref<8x128xf32, #tpu.memory_space<vmem>>, %arg7: memref<8x128xf32, #tpu.memory_space<vmem>>, %arg8: memref<9x128xf32, #tpu.memory_space<vmem>>, %arg9: memref<1x128xf32, #tpu.memory_space<vmem>>, %arg10: memref<1x128xf32, #tpu.memory_space<vmem>>, %arg11: memref<128x128xbf16, #tpu.memory_space<vmem>>, %arg12: memref<1x16x16x128xf32, #tpu.memory_space<vmem>>) attributes {dimension_semantics = [#tpu.dimension_semantics<parallel>], iteration_bounds = array<i64: 1>, scalar_prefetch = 0 : i64, scratch_operands = 0 : i64, tpu.core_type = #tpu.core_type<tc>, window_params = [{transform_indices = @transform_0, window_bounds = array<i64: 1, 16, 16, 128>}, {pipeline_mode = #tpu.pipeline_mode<synchronous>, transform_indices = @transform_1, window_bounds = array<i64: 9, 128>}, {pipeline_mode = #tpu.pipeline_mode<synchronous>, transform_indices = @transform_2, window_bounds = array<i64: 1, 128>}, {pipeline_mode = #tpu.pipeline_mode<synchronous>, transform_indices = @transform_3, window_bounds = array<i64: 128, 128>}, {pipeline_mode = #tpu.pipeline_mode<synchronous>, transform_indices = @transform_4, window_bounds = array<i64: 1, 128>}, {pipeline_mode = #tpu.pipeline_mode<synchronous>, transform_indices = @transform_5, window_bounds = array<i64: 8, 128>}, {pipeline_mode = #tpu.pipeline_mode<synchronous>, transform_indices = @transform_6, window_bounds = array<i64: 8, 128>}, {pipeline_mode = #tpu.pipeline_mode<synchronous>, transform_indices = @transform_7, window_bounds = array<i64: 9, 128>}, {pipeline_mode = #tpu.pipeline_mode<synchronous>, transform_indices = @transform_8, window_bounds = array<i64: 1, 128>}, {pipeline_mode = #tpu.pipeline_mode<synchronous>, transform_indices = @transform_9, window_bounds = array<i64: 1, 128>}, {pipeline_mode = #tpu.pipeline_mode<synchronous>, transform_indices = @transform_10, window_bounds = array<i64: 128, 128>}, {transform_indices = @transform_11, window_bounds = array<i64: 1, 16, 16, 128>}]} {
    %c0 = arith.constant 0 : index
    %c0_0 = arith.constant 0 : index
    %c0_1 = arith.constant 0 : index
    %c0_2 = arith.constant 0 : index
    %0 = vector.load %arg1[%c0, %c0_0, %c0_1, %c0_2] : memref<1x16x16x128xf32, #tpu.memory_space<vmem>>, vector<1x16x16x128xf32>
    %1 = vector.shape_cast %0 : vector<1x16x16x128xf32> to vector<16x16x128xf32>
    %2 = vector.shape_cast %1 : vector<16x16x128xf32> to vector<256x128xf32>
    %3 = tpu.iota {dimensions = array<i32: 0>} : vector<256x1xi32>
    %c16_i32 = arith.constant 16 : i32
    %c0_i32 = arith.constant 0 : i32
    %4 = arith.cmpi eq, %c16_i32, %c0_i32 : i32
    %c1_i32 = arith.constant 1 : i32
    %5 = arith.select %4, %c1_i32, %c16_i32 : i32
    %6 = vector.broadcast %5 : i32 to vector<256x1xi32>
    %7 = arith.remsi %3, %6 : vector<256x1xi32>
    %c0_i32_3 = arith.constant 0 : i32
    %8 = vector.broadcast %c0_i32_3 : i32 to vector<256x1xi32>
    %9 = arith.cmpi ne, %7, %8 : vector<256x1xi32>
    %c0_i32_4 = arith.constant 0 : i32
    %10 = vector.broadcast %c0_i32_4 : i32 to vector<256x1xi32>
    %11 = arith.cmpi slt, %7, %10 : vector<256x1xi32>
    %c0_i32_5 = arith.constant 0 : i32
    %12 = arith.cmpi slt, %5, %c0_i32_5 : i32
    %13 = vector.broadcast %12 : i1 to vector<256x1xi1>
    %14 = vector.broadcast %13 : vector<256x1xi1> to vector<256x1xi1>
    %15 = arith.xori %11, %14 : vector<256x1xi1>
    %16 = arith.andi %15, %9 : vector<256x1xi1>
    %17 = vector.broadcast %5 : i32 to vector<256x1xi32>
    %18 = arith.addi %7, %17 : vector<256x1xi32>
    %19 = arith.select %16, %18, %7 : vector<256x1xi1>, vector<256x1xi32>
    %c16_i32_6 = arith.constant 16 : i32
    %20 = vector.broadcast %c16_i32_6 : i32 to vector<256x1xi32>
    %21 = arith.cmpi sge, %3, %20 : vector<256x1xi32>
    %22 = arith.extui %21 : vector<256x1xi1> to vector<256x1xi32>
    %23 = arith.sitofp %22 : vector<256x1xi32> to vector<256x1xf32>
    %c240_i32 = arith.constant 240 : i32
    %24 = vector.broadcast %c240_i32 : i32 to vector<256x1xi32>
    %25 = arith.cmpi slt, %3, %24 : vector<256x1xi32>
    %26 = arith.extui %25 : vector<256x1xi1> to vector<256x1xi32>
    %27 = arith.sitofp %26 : vector<256x1xi32> to vector<256x1xf32>
    %c0_i32_7 = arith.constant 0 : i32
    %28 = vector.broadcast %c0_i32_7 : i32 to vector<256x1xi32>
    %29 = arith.cmpi sgt, %19, %28 : vector<256x1xi32>
    %30 = arith.extui %29 : vector<256x1xi1> to vector<256x1xi32>
    %31 = arith.sitofp %30 : vector<256x1xi32> to vector<256x1xf32>
    %c15_i32 = arith.constant 15 : i32
    %32 = vector.broadcast %c15_i32 : i32 to vector<256x1xi32>
    %33 = arith.cmpi slt, %19, %32 : vector<256x1xi32>
    %34 = arith.extui %33 : vector<256x1xi1> to vector<256x1xi32>
    %35 = arith.sitofp %34 : vector<256x1xi32> to vector<256x1xf32>
    %36 = arith.truncf %2 : vector<256x128xf32> to vector<256x128xbf16>
    %c0_8 = arith.constant 0 : index
    %c0_9 = arith.constant 0 : index
    %37 = vector.load %arg4[%c0_8, %c0_9] : memref<128x128xbf16, #tpu.memory_space<vmem>>, vector<128x128xbf16>
    %cst = arith.constant dense<0.000000e+00> : vector<256x128xf32>
    %38 = tpu.matmul %36, %37, %cst {dimension_numbers = #tpu.dot_dimension_numbers<[1], [0], [0], [1], [0, 0, 1, 1], [], []>} : vector<256x128xbf16>, vector<128x128xbf16>, vector<256x128xf32> -> vector<256x128xf32>
    %c0_10 = arith.constant 0 : index
    %c0_11 = arith.constant 0 : index
    %39 = vector.load %arg5[%c0_10, %c0_11] : memref<1x128xf32, #tpu.memory_space<vmem>>, vector<1x128xf32>
    %40 = vector.broadcast %39 : vector<1x128xf32> to vector<256x128xf32>
    %41 = arith.addf %38, %40 : vector<256x128xf32>
    %c16_i32_12 = arith.constant 16 : i32
    %42 = tpu.dynamic_rotate %2 by %c16_i32_12 dim 0 : vector<256x128xf32>, i32 -> vector<256x128xf32>
    %43 = vector.broadcast %23 : vector<256x1xf32> to vector<256x128xf32>
    %44 = arith.mulf %42, %43 : vector<256x128xf32>
    %c240_i32_13 = arith.constant 240 : i32
    %45 = tpu.dynamic_rotate %2 by %c240_i32_13 dim 0 : vector<256x128xf32>, i32 -> vector<256x128xf32>
    %46 = vector.broadcast %27 : vector<256x1xf32> to vector<256x128xf32>
    %47 = arith.mulf %45, %46 : vector<256x128xf32>
    %c0_14 = arith.constant 0 : index
    %c0_15 = arith.constant 0 : index
    %48 = vector.load %arg2[%c0_14, %c0_15] : memref<9x128xf32, #tpu.memory_space<vmem>>, vector<1x128xf32>
    %49 = vector.broadcast %48 : vector<1x128xf32> to vector<256x128xf32>
    %50 = arith.mulf %44, %49 : vector<256x128xf32>
    %c3 = arith.constant 3 : index
    %c0_16 = arith.constant 0 : index
    %51 = vector.load %arg2[%c3, %c0_16] : memref<9x128xf32, #tpu.memory_space<vmem>>, vector<1x128xf32>
    %52 = vector.broadcast %51 : vector<1x128xf32> to vector<256x128xf32>
    %53 = arith.mulf %2, %52 : vector<256x128xf32>
    %54 = arith.addf %50, %53 : vector<256x128xf32>
    %c6 = arith.constant 6 : index
    %c0_17 = arith.constant 0 : index
    %55 = vector.load %arg2[%c6, %c0_17] : memref<9x128xf32, #tpu.memory_space<vmem>>, vector<1x128xf32>
    %56 = vector.broadcast %55 : vector<1x128xf32> to vector<256x128xf32>
    %57 = arith.mulf %47, %56 : vector<256x128xf32>
    %58 = arith.addf %54, %57 : vector<256x128xf32>
    %c1_i32_18 = arith.constant 1 : i32
    %59 = tpu.dynamic_rotate %58 by %c1_i32_18 dim 0 : vector<256x128xf32>, i32 -> vector<256x128xf32>
    %60 = vector.broadcast %31 : vector<256x1xf32> to vector<256x128xf32>
    %61 = arith.mulf %59, %60 : vector<256x128xf32>
    %c2 = arith.constant 2 : index
    %c0_19 = arith.constant 0 : index
    %62 = vector.load %arg2[%c2, %c0_19] : memref<9x128xf32, #tpu.memory_space<vmem>>, vector<1x128xf32>
    %63 = vector.broadcast %62 : vector<1x128xf32> to vector<256x128xf32>
    %64 = arith.mulf %44, %63 : vector<256x128xf32>
    %c5 = arith.constant 5 : index
    %c0_20 = arith.constant 0 : index
    %65 = vector.load %arg2[%c5, %c0_20] : memref<9x128xf32, #tpu.memory_space<vmem>>, vector<1x128xf32>
    %66 = vector.broadcast %65 : vector<1x128xf32> to vector<256x128xf32>
    %67 = arith.mulf %2, %66 : vector<256x128xf32>
    %68 = arith.addf %64, %67 : vector<256x128xf32>
    %c8 = arith.constant 8 : index
    %c0_21 = arith.constant 0 : index
    %69 = vector.load %arg2[%c8, %c0_21] : memref<9x128xf32, #tpu.memory_space<vmem>>, vector<1x128xf32>
    %70 = vector.broadcast %69 : vector<1x128xf32> to vector<256x128xf32>
    %71 = arith.mulf %47, %70 : vector<256x128xf32>
    %72 = arith.addf %68, %71 : vector<256x128xf32>
    %c255_i32 = arith.constant 255 : i32
    %73 = tpu.dynamic_rotate %72 by %c255_i32 dim 0 : vector<256x128xf32>, i32 -> vector<256x128xf32>
    %74 = vector.broadcast %35 : vector<256x1xf32> to vector<256x128xf32>
    %75 = arith.mulf %73, %74 : vector<256x128xf32>
    %c1 = arith.constant 1 : index
    %c0_22 = arith.constant 0 : index
    %76 = vector.load %arg2[%c1, %c0_22] : memref<9x128xf32, #tpu.memory_space<vmem>>, vector<1x128xf32>
    %77 = vector.broadcast %76 : vector<1x128xf32> to vector<256x128xf32>
    %78 = arith.mulf %44, %77 : vector<256x128xf32>
    %c4 = arith.constant 4 : index
    %c0_23 = arith.constant 0 : index
    %79 = vector.load %arg2[%c4, %c0_23] : memref<9x128xf32, #tpu.memory_space<vmem>>, vector<1x128xf32>
    %80 = vector.broadcast %79 : vector<1x128xf32> to vector<256x128xf32>
    %81 = arith.mulf %2, %80 : vector<256x128xf32>
    %82 = arith.addf %78, %81 : vector<256x128xf32>
    %c7 = arith.constant 7 : index
    %c0_24 = arith.constant 0 : index
    %83 = vector.load %arg2[%c7, %c0_24] : memref<9x128xf32, #tpu.memory_space<vmem>>, vector<1x128xf32>
    %84 = vector.broadcast %83 : vector<1x128xf32> to vector<256x128xf32>
    %85 = arith.mulf %47, %84 : vector<256x128xf32>
    %86 = arith.addf %82, %85 : vector<256x128xf32>
    %87 = arith.addf %86, %61 : vector<256x128xf32>
    %88 = arith.addf %87, %75 : vector<256x128xf32>
    %c0_25 = arith.constant 0 : index
    %c0_26 = arith.constant 0 : index
    %89 = vector.load %arg3[%c0_25, %c0_26] : memref<1x128xf32, #tpu.memory_space<vmem>>, vector<1x128xf32>
    %90 = vector.broadcast %89 : vector<1x128xf32> to vector<256x128xf32>
    %91 = arith.addf %88, %90 : vector<256x128xf32>
    %92 = arith.negf %91 : vector<256x128xf32>
    %93 = math.exp %92 : vector<256x128xf32>
    %cst_27 = arith.constant 1.000000e+00 : f32
    %94 = vector.broadcast %cst_27 : f32 to vector<256x128xf32>
    %95 = arith.addf %94, %93 : vector<256x128xf32>
    %96 = arith.divf %94, %95 : vector<256x128xf32>
    %97 = arith.mulf %96, %2 : vector<256x128xf32>
    %cst_28 = arith.constant dense<0.000000e+00> : vector<128xf32>
    %98 = vector.multi_reduction <add>, %2, %cst_28 [0] : vector<256x128xf32> to vector<128xf32>
    %99 = vector.shape_cast %98 : vector<128xf32> to vector<1x128xf32>
    %cst_29 = arith.constant 2.560000e+02 : f32
    %100 = vector.broadcast %cst_29 : f32 to vector<1x128xf32>
    %101 = arith.divf %99, %100 : vector<1x128xf32>
    %c0_30 = arith.constant 0 : index
    %c0_31 = arith.constant 0 : index
    %102 = vector.load %arg6[%c0_30, %c0_31] : memref<8x128xf32, #tpu.memory_space<vmem>>, vector<8x128xf32>
    %103 = vector.broadcast %101 : vector<1x128xf32> to vector<8x128xf32>
    %104 = arith.mulf %103, %102 : vector<8x128xf32>
    %cst_32 = arith.constant dense<0.000000e+00> : vector<8xf32>
    %105 = vector.multi_reduction <add>, %104, %cst_32 [1] : vector<8x128xf32> to vector<8xf32>
    %106 = vector.shape_cast %105 : vector<8xf32> to vector<8x1xf32>
    %cst_33 = arith.constant 0.000000e+00 : f32
    %cst_34 = arith.constant 6.000000e+00 : f32
    %107 = vector.broadcast %cst_33 : f32 to vector<8x1xf32>
    %108 = arith.maximumf %107, %106 : vector<8x1xf32>
    %109 = vector.broadcast %cst_34 : f32 to vector<8x1xf32>
    %110 = arith.minimumf %109, %108 : vector<8x1xf32>
    %c0_35 = arith.constant 0 : index
    %c0_36 = arith.constant 0 : index
    %111 = vector.load %arg7[%c0_35, %c0_36] : memref<8x128xf32, #tpu.memory_space<vmem>>, vector<8x128xf32>
    %112 = vector.broadcast %110 : vector<8x1xf32> to vector<8x128xf32>
    %113 = arith.mulf %112, %111 : vector<8x128xf32>
    %cst_37 = arith.constant dense<0.000000e+00> : vector<128xf32>
    %114 = vector.multi_reduction <add>, %113, %cst_37 [0] : vector<8x128xf32> to vector<128xf32>
    %115 = vector.shape_cast %114 : vector<128xf32> to vector<1x128xf32>
    %116 = arith.negf %115 : vector<1x128xf32>
    %117 = math.exp %116 : vector<1x128xf32>
    %cst_38 = arith.constant 1.000000e+00 : f32
    %118 = vector.broadcast %cst_38 : f32 to vector<1x128xf32>
    %119 = arith.addf %118, %117 : vector<1x128xf32>
    %120 = arith.divf %118, %119 : vector<1x128xf32>
    %121 = vector.broadcast %120 : vector<1x128xf32> to vector<256x128xf32>
    %122 = arith.mulf %2, %121 : vector<256x128xf32>
    %123 = arith.addf %97, %122 : vector<256x128xf32>
    %c16_i32_39 = arith.constant 16 : i32
    %124 = tpu.dynamic_rotate %123 by %c16_i32_39 dim 0 : vector<256x128xf32>, i32 -> vector<256x128xf32>
    %125 = vector.broadcast %23 : vector<256x1xf32> to vector<256x128xf32>
    %126 = arith.mulf %124, %125 : vector<256x128xf32>
    %c240_i32_40 = arith.constant 240 : i32
    %127 = tpu.dynamic_rotate %123 by %c240_i32_40 dim 0 : vector<256x128xf32>, i32 -> vector<256x128xf32>
    %128 = vector.broadcast %27 : vector<256x1xf32> to vector<256x128xf32>
    %129 = arith.mulf %127, %128 : vector<256x128xf32>
    %c0_41 = arith.constant 0 : index
    %c0_42 = arith.constant 0 : index
    %130 = vector.load %arg8[%c0_41, %c0_42] : memref<9x128xf32, #tpu.memory_space<vmem>>, vector<1x128xf32>
    %131 = vector.broadcast %130 : vector<1x128xf32> to vector<256x128xf32>
    %132 = arith.mulf %126, %131 : vector<256x128xf32>
    %c3_43 = arith.constant 3 : index
    %c0_44 = arith.constant 0 : index
    %133 = vector.load %arg8[%c3_43, %c0_44] : memref<9x128xf32, #tpu.memory_space<vmem>>, vector<1x128xf32>
    %134 = vector.broadcast %133 : vector<1x128xf32> to vector<256x128xf32>
    %135 = arith.mulf %123, %134 : vector<256x128xf32>
    %136 = arith.addf %132, %135 : vector<256x128xf32>
    %c6_45 = arith.constant 6 : index
    %c0_46 = arith.constant 0 : index
    %137 = vector.load %arg8[%c6_45, %c0_46] : memref<9x128xf32, #tpu.memory_space<vmem>>, vector<1x128xf32>
    %138 = vector.broadcast %137 : vector<1x128xf32> to vector<256x128xf32>
    %139 = arith.mulf %129, %138 : vector<256x128xf32>
    %140 = arith.addf %136, %139 : vector<256x128xf32>
    %c1_i32_47 = arith.constant 1 : i32
    %141 = tpu.dynamic_rotate %140 by %c1_i32_47 dim 0 : vector<256x128xf32>, i32 -> vector<256x128xf32>
    %142 = vector.broadcast %31 : vector<256x1xf32> to vector<256x128xf32>
    %143 = arith.mulf %141, %142 : vector<256x128xf32>
    %c2_48 = arith.constant 2 : index
    %c0_49 = arith.constant 0 : index
    %144 = vector.load %arg8[%c2_48, %c0_49] : memref<9x128xf32, #tpu.memory_space<vmem>>, vector<1x128xf32>
    %145 = vector.broadcast %144 : vector<1x128xf32> to vector<256x128xf32>
    %146 = arith.mulf %126, %145 : vector<256x128xf32>
    %c5_50 = arith.constant 5 : index
    %c0_51 = arith.constant 0 : index
    %147 = vector.load %arg8[%c5_50, %c0_51] : memref<9x128xf32, #tpu.memory_space<vmem>>, vector<1x128xf32>
    %148 = vector.broadcast %147 : vector<1x128xf32> to vector<256x128xf32>
    %149 = arith.mulf %123, %148 : vector<256x128xf32>
    %150 = arith.addf %146, %149 : vector<256x128xf32>
    %c8_52 = arith.constant 8 : index
    %c0_53 = arith.constant 0 : index
    %151 = vector.load %arg8[%c8_52, %c0_53] : memref<9x128xf32, #tpu.memory_space<vmem>>, vector<1x128xf32>
    %152 = vector.broadcast %151 : vector<1x128xf32> to vector<256x128xf32>
    %153 = arith.mulf %129, %152 : vector<256x128xf32>
    %154 = arith.addf %150, %153 : vector<256x128xf32>
    %c255_i32_54 = arith.constant 255 : i32
    %155 = tpu.dynamic_rotate %154 by %c255_i32_54 dim 0 : vector<256x128xf32>, i32 -> vector<256x128xf32>
    %156 = vector.broadcast %35 : vector<256x1xf32> to vector<256x128xf32>
    %157 = arith.mulf %155, %156 : vector<256x128xf32>
    %c1_55 = arith.constant 1 : index
    %c0_56 = arith.constant 0 : index
    %158 = vector.load %arg8[%c1_55, %c0_56] : memref<9x128xf32, #tpu.memory_space<vmem>>, vector<1x128xf32>
    %159 = vector.broadcast %158 : vector<1x128xf32> to vector<256x128xf32>
    %160 = arith.mulf %126, %159 : vector<256x128xf32>
    %c4_57 = arith.constant 4 : index
    %c0_58 = arith.constant 0 : index
    %161 = vector.load %arg8[%c4_57, %c0_58] : memref<9x128xf32, #tpu.memory_space<vmem>>, vector<1x128xf32>
    %162 = vector.broadcast %161 : vector<1x128xf32> to vector<256x128xf32>
    %163 = arith.mulf %123, %162 : vector<256x128xf32>
    %164 = arith.addf %160, %163 : vector<256x128xf32>
    %c7_59 = arith.constant 7 : index
    %c0_60 = arith.constant 0 : index
    %165 = vector.load %arg8[%c7_59, %c0_60] : memref<9x128xf32, #tpu.memory_space<vmem>>, vector<1x128xf32>
    %166 = vector.broadcast %165 : vector<1x128xf32> to vector<256x128xf32>
    %167 = arith.mulf %129, %166 : vector<256x128xf32>
    %168 = arith.addf %164, %167 : vector<256x128xf32>
    %169 = arith.addf %168, %143 : vector<256x128xf32>
    %170 = arith.addf %169, %157 : vector<256x128xf32>
    %c0_61 = arith.constant 0 : index
    %c0_62 = arith.constant 0 : index
    %171 = vector.load %arg9[%c0_61, %c0_62] : memref<1x128xf32, #tpu.memory_space<vmem>>, vector<1x128xf32>
    %172 = vector.broadcast %171 : vector<1x128xf32> to vector<256x128xf32>
    %173 = arith.mulf %170, %172 : vector<256x128xf32>
    %c0_63 = arith.constant 0 : index
    %c0_64 = arith.constant 0 : index
    %174 = vector.load %arg10[%c0_63, %c0_64] : memref<1x128xf32, #tpu.memory_space<vmem>>, vector<1x128xf32>
    %175 = vector.broadcast %174 : vector<1x128xf32> to vector<256x128xf32>
    %176 = arith.addf %173, %175 : vector<256x128xf32>
    %177 = arith.truncf %176 : vector<256x128xf32> to vector<256x128xbf16>
    %c0_65 = arith.constant 0 : index
    %c0_66 = arith.constant 0 : index
    %178 = vector.load %arg11[%c0_65, %c0_66] : memref<128x128xbf16, #tpu.memory_space<vmem>>, vector<128x128xbf16>
    %cst_67 = arith.constant dense<0.000000e+00> : vector<256x128xf32>
    %179 = tpu.matmul %177, %178, %cst_67 {dimension_numbers = #tpu.dot_dimension_numbers<[1], [0], [0], [1], [0, 0, 1, 1], [], []>} : vector<256x128xbf16>, vector<128x128xbf16>, vector<256x128xf32> -> vector<256x128xf32>
    %180 = arith.addf %179, %41 : vector<256x128xf32>
    %cst_68 = arith.constant 0.000000e+00 : f32
    %cst_69 = arith.constant 6.000000e+00 : f32
    %181 = vector.broadcast %cst_68 : f32 to vector<256x128xf32>
    %182 = arith.maximumf %181, %180 : vector<256x128xf32>
    %183 = vector.broadcast %cst_69 : f32 to vector<256x128xf32>
    %184 = arith.minimumf %183, %182 : vector<256x128xf32>
    %185 = vector.shape_cast %184 : vector<256x128xf32> to vector<16x16x128xf32>
    %c0_70 = arith.constant 0 : index
    %c0_71 = arith.constant 0 : index
    %c0_72 = arith.constant 0 : index
    %c0_73 = arith.constant 0 : index
    %186 = vector.load %arg12[%c0_70, %c0_71, %c0_72, %c0_73] : memref<1x16x16x128xf32, #tpu.memory_space<vmem>>, vector<1x16x16x128xf32>
    %187 = vector.shape_cast %186 : vector<1x16x16x128xf32> to vector<16x16x128xf32>
    %188 = vector.shape_cast %185 : vector<16x16x128xf32> to vector<1x16x16x128xf32>
    tpu.vector_store %arg12[%c0_70, %c0_71, %c0_72, %c0_73], %188 {strides = array<i32>} : memref<1x16x16x128xf32, #tpu.memory_space<vmem>>, vector<1x16x16x128xf32>,
    return
  }
  func.func @transform_0(%arg0: i32) -> (i32, i32, i32, i32) {
    %c0_i32 = arith.constant 0 : i32
    %c0_i32_0 = arith.constant 0 : i32
    %c0_i32_1 = arith.constant 0 : i32
    %c0_i32_2 = arith.constant 0 : i32
    return %arg0, %c0_i32, %c0_i32_0, %c0_i32_1 : i32, i32, i32, i32
  }
  func.func @transform_1(%arg0: i32) -> (i32, i32) {
    %c0_i32 = arith.constant 0 : i32
    %c0_i32_0 = arith.constant 0 : i32
    %c0_i32_1 = arith.constant 0 : i32
    return %c0_i32, %c0_i32_0 : i32, i32
  }
  func.func @transform_2(%arg0: i32) -> (i32, i32) {
    %c0_i32 = arith.constant 0 : i32
    %c0_i32_0 = arith.constant 0 : i32
    %c0_i32_1 = arith.constant 0 : i32
    return %c0_i32, %c0_i32_0 : i32, i32
  }
  func.func @transform_3(%arg0: i32) -> (i32, i32) {
    %c0_i32 = arith.constant 0 : i32
    %c0_i32_0 = arith.constant 0 : i32
    %c0_i32_1 = arith.constant 0 : i32
    return %c0_i32, %c0_i32_0 : i32, i32
  }
  func.func @transform_4(%arg0: i32) -> (i32, i32) {
    %c0_i32 = arith.constant 0 : i32
    %c0_i32_0 = arith.constant 0 : i32
    %c0_i32_1 = arith.constant 0 : i32
    return %c0_i32, %c0_i32_0 : i32, i32
  }
  func.func @transform_5(%arg0: i32) -> (i32, i32) {
    %c0_i32 = arith.constant 0 : i32
    %c0_i32_0 = arith.constant 0 : i32
    %c0_i32_1 = arith.constant 0 : i32
    return %c0_i32, %c0_i32_0 : i32, i32
  }
  func.func @transform_6(%arg0: i32) -> (i32, i32) {
    %c0_i32 = arith.constant 0 : i32
    %c0_i32_0 = arith.constant 0 : i32
    %c0_i32_1 = arith.constant 0 : i32
    return %c0_i32, %c0_i32_0 : i32, i32
  }
  func.func @transform_7(%arg0: i32) -> (i32, i32) {
    %c0_i32 = arith.constant 0 : i32
    %c0_i32_0 = arith.constant 0 : i32
    %c0_i32_1 = arith.constant 0 : i32
    return %c0_i32, %c0_i32_0 : i32, i32
  }
  func.func @transform_8(%arg0: i32) -> (i32, i32) {
    %c0_i32 = arith.constant 0 : i32
    %c0_i32_0 = arith.constant 0 : i32
    %c0_i32_1 = arith.constant 0 : i32
    return %c0_i32, %c0_i32_0 : i32, i32
  }
  func.func @transform_9(%arg0: i32) -> (i32, i32) {
    %c0_i32 = arith.constant 0 : i32
    %c0_i32_0 = arith.constant 0 : i32
    %c0_i32_1 = arith.constant 0 : i32
    return %c0_i32, %c0_i32_0 : i32, i32
  }
  func.func @transform_10(%arg0: i32) -> (i32, i32) {
    %c0_i32 = arith.constant 0 : i32
    %c0_i32_0 = arith.constant 0 : i32
    %c0_i32_1 = arith.constant 0 : i32
    return %c0_i32, %c0_i32_0 : i32, i32
  }
  func.func @transform_11(%arg0: i32) -> (i32, i32, i32, i32) {
    %c0_i32 = arith.constant 0 : i32
    %c0_i32_0 = arith.constant 0 : i32
    %c0_i32_1 = arith.constant 0 : i32
    %c0_i32_2 = arith.constant 0 : i32
    return %arg0, %c0_i32, %c0_i32_0, %c0_i32_1 : i32, i32, i32, i32
  }
}

</mosaic_0001>

<llo_original>
// kernel: tpu_custom_call.1
$region0: #{tpu_custom_call.1}
  #allocation0 [shape = 'u32[]', space=smem, size = 0x4, offset = 0x4, fixed_abs, tag = 'smem constant byte address 0x4 - core index']
  #allocation1 [shape = 'u32[144,128]{1,0:T(1,128)}', space=vmem, size = 0x12000, scoped, tag = 'internal scratch']
  %s0 = inlined_call_operand.hbm [shape: f32[1,16,16,128], index: 0, kind: input, shape index: {}]
  %s1 = inlined_call_operand.hbm [shape: f32[9,128], index: 1, kind: input, shape index: {}]
  %s2 = inlined_call_operand.vmem [shape: f32[1,128], index: 2, kind: input, shape index: {}]
  %s3 = inlined_call_operand.hbm [shape: bf16[128,128], index: 3, kind: input, shape index: {}]
  %s4 = inlined_call_operand.vmem [shape: f32[1,128], index: 4, kind: input, shape index: {}]
  %s5 = inlined_call_operand.vmem [shape: f32[8,128], index: 5, kind: input, shape index: {}]
  %s6 = inlined_call_operand.hbm [shape: f32[8,128], index: 6, kind: input, shape index: {}]
  %s7 = inlined_call_operand.vmem [shape: f32[9,128], index: 7, kind: input, shape index: {}]
  %s8 = inlined_call_operand.vmem [shape: f32[1,128], index: 8, kind: input, shape index: {}]
  %s9 = inlined_call_operand.vmem [shape: f32[1,128], index: 9, kind: input, shape index: {}]
  %s10 = inlined_call_operand.hbm [shape: bf16[128,128], index: 10, kind: input, shape index: {}]
  %s11 = inlined_call_operand.hbm [shape: f32[1,16,16,128], index: 11, kind: output, shape index: {}]
  %s12 = sld [smem:[#allocation0]]
  $region74: #{tpu_custom_call.1} parent=0
    _
  %s14 = ssub.s32 1, %s12
  %s15 = scalar_select 0, %s14, %s12
  $region1: #{tpu_custom_call.1} parent=0
    #allocation2 [shape = 'u8[131072]{0}', space=vmem, size = 0x20000, scoped, tag = 'input window, operand 0, single buffered']
    #allocation3 [shape = 's32[1]{0}', space=sflag, size = 0x4, scoped, tag = 'scoped memory for tpu_custom_call.1']
    #allocation4 [shape = 's32[1]{0}', space=sflag, size = 0x4, scoped, tag = 'scoped memory for tpu_custom_call.1']
    #allocation5 [shape = 'u8[8192]{0}', space=vmem, size = 0x2000, scoped, tag = 'input window, operand 1, single buffered']
    #allocation6 [shape = 's32[1]{0}', space=sflag, size = 0x4, scoped, tag = 'scoped memory for tpu_custom_call.1']
    #allocation7 [shape = 'u8[32768]{0}', space=vmem, size = 0x8000, scoped, tag = 'input window, operand 3, single buffered']
    #allocation8 [shape = 'u8[4096]{0}', space=vmem, size = 0x1000, scoped, tag = 'input window, operand 6, single buffered']
    #allocation9 [shape = 's32[1]{0}', space=sflag, size = 0x4, scoped, tag = 'scoped memory for tpu_custom_call.1']
    #allocation10 [shape = 'u8[32768]{0}', space=vmem, size = 0x8000, scoped, tag = 'input window, operand 10, single buffered']
    #allocation11 [shape = 'u8[131072]{0}', space=vmem, size = 0x20000, scoped, tag = 'output window, operand 0, single buffered']
    %16 = vsyncpa [#allocation3], 0
    %17 = vsyncpa [#allocation6], 0
    %18 = vsyncpa [#allocation9], 0
    %19 = vsyncpa [#allocation4], 0
    // Predicated region
    $region2: #{tpu_custom_call.1} parent=1 // pred_check
      _
    $region3: #{tpu_custom_call.1} parent=1 // pred_check_branch
      %21 = sbr.rel (0) target = $region5
    $region4: #{tpu_custom_call.1} parent=1 // pred_region
      %s23 = ssub.s32 4096, 4096
      %24 = vsyncadd [#allocation3], %s23
      %s25 = sshll.u32 [#allocation2], 4
      %s26 = int_to_ptr.vmem [resolvable:$true] %s25
      %31 = dma.hbm_to_vmem [thread:$0]  %s0, 4096, %s26, [#allocation3], 128, 128, 8
    $region5: #{tpu_custom_call.1} parent=1 // pred_fallthru
      _
    // Predicated region
    $region6: #{tpu_custom_call.1} parent=1 // pred_check
      _
    $region7: #{tpu_custom_call.1} parent=1 // pred_check_branch
      %33 = sbr.rel (0) target = $region9
    $region8: #{tpu_custom_call.1} parent=1 // pred_region
      %s35 = ssub.s32 256, 256
      %36 = vsyncadd [#allocation6], %s35
      %s37 = sshll.u32 [#allocation5], 4
      %s38 = int_to_ptr.vmem [resolvable:$true] %s37
      %43 = dma.hbm_to_vmem [thread:$0]  %s1, 256, %s38, [#allocation6], 128, 128, 8
    $region9: #{tpu_custom_call.1} parent=1 // pred_fallthru
      _
    // Predicated region
    $region10: #{tpu_custom_call.1} parent=1 // pred_check
      _
    $region11: #{tpu_custom_call.1} parent=1 // pred_check_branch
      %45 = sbr.rel (0) target = $region13
    $region12: #{tpu_custom_call.1} parent=1 // pred_region
      _
    $region13: #{tpu_custom_call.1} parent=1 // pred_fallthru
      _
    // Predicated region
    $region14: #{tpu_custom_call.1} parent=1 // pred_check
      _
    $region15: #{tpu_custom_call.1} parent=1 // pred_check_branch
      %47 = sbr.rel (0) target = $region17
    $region16: #{tpu_custom_call.1} parent=1 // pred_region
      %s49 = ssub.s32 1024, 1024
      %50 = vsyncadd [#allocation6], %s49
      %s51 = sshll.u32 [#allocation7], 4
      %s52 = int_to_ptr.vmem [resolvable:$true] %s51
      %57 = dma.hbm_to_vmem [thread:$0]  %s3, 1024, %s52, [#allocation6], 64, 64, 4
    $region17: #{tpu_custom_call.1} parent=1 // pred_fallthru
      _
    // Predicated region
    $region18: #{tpu_custom_call.1} parent=1 // pred_check
      _
    $region19: #{tpu_custom_call.1} parent=1 // pred_check_branch
      %59 = sbr.rel (0) target = $region21
    $region20: #{tpu_custom_call.1} parent=1 // pred_region
      _
    $region21: #{tpu_custom_call.1} parent=1 // pred_fallthru
      _
    // Predicated region
    $region22: #{tpu_custom_call.1} parent=1 // pred_check
      _
    $region23: #{tpu_custom_call.1} parent=1 // pred_check_branch
      %61 = sbr.rel (0) target = $region25
    $region24: #{tpu_custom_call.1} parent=1 // pred_region
      _
    $region25: #{tpu_custom_call.1} parent=1 // pred_fallthru
      _
    // Predicated region
    $region26: #{tpu_custom_call.1} parent=1 // pred_check
      _
    $region27: #{tpu_custom_call.1} parent=1 // pred_check_branch
      %63 = sbr.rel (0) target = $region29
    $region28: #{tpu_custom_call.1} parent=1 // pred_region
      %s65 = ssub.s32 128, 128
      %66 = vsyncadd [#allocation9], %s65
      %s68 = sshll.u32 [#allocation8], 4
      %s69 = int_to_ptr.vmem [resolvable:$true] %s68
      %71 = dma.hbm_to_vmem [thread:$0]  %s6, 128, %s69, [#allocation9]
    $region29: #{tpu_custom_call.1} parent=1 // pred_fallthru
      _
    // Predicated region
    $region30: #{tpu_custom_call.1} parent=1 // pred_check
      _
    $region31: #{tpu_custom_call.1} parent=1 // pred_check_branch
      %73 = sbr.rel (0) target = $region33
    $region32: #{tpu_custom_call.1} parent=1 // pred_region
      _
    $region33: #{tpu_custom_call.1} parent=1 // pred_fallthru
      _
    // Predicated region
    $region34: #{tpu_custom_call.1} parent=1 // pred_check
      _
    $region35: #{tpu_custom_call.1} parent=1 // pred_check_branch
      %75 = sbr.rel (0) target = $region37
    $region36: #{tpu_custom_call.1} parent=1 // pred_region
      _
    $region37: #{tpu_custom_call.1} parent=1 // pred_fallthru
      _
    // Predicated region
    $region38: #{tpu_custom_call.1} parent=1 // pred_check
      _
    $region39: #{tpu_custom_call.1} parent=1 // pred_check_branch
      %77 = sbr.rel (0) target = $region41
    $region40: #{tpu_custom_call.1} parent=1 // pred_region
      _
    $region41: #{tpu_custom_call.1} parent=1 // pred_fallthru
      _
    // Predicated region
    $region42: #{tpu_custom_call.1} parent=1 // pred_check
      _
    $region43: #{tpu_custom_call.1} parent=1 // pred_check_branch
      %79 = sbr.rel (0) target = $region45
    $region44: #{tpu_custom_call.1} parent=1 // pred_region
      %s81 = ssub.s32 1024, 1024
      %82 = vsyncadd [#allocation9], %s81
      %s83 = sshll.u32 [#allocation10], 4
      %s84 = int_to_ptr.vmem [resolvable:$true] %s83
      %89 = dma.hbm_to_vmem [thread:$0]  %s10, 1024, %s84, [#allocation9], 64, 64, 4
    $region45: #{tpu_custom_call.1} parent=1 // pred_fallthru
      _
    // Predicated region
    $region46: #{tpu_custom_call.1} parent=1 // pred_check
      _
    $region47: #{tpu_custom_call.1} parent=1 // pred_check_branch
      %91 = sbr.rel (0) target = $region49
    $region48: #{tpu_custom_call.1} parent=1 // pred_region
      %92 = dma.done [#allocation3], 4096
    $region49: #{tpu_custom_call.1} parent=1 // pred_fallthru
      _
    // Predicated region
    $region50: #{tpu_custom_call.1} parent=1 // pred_check
      _
    $region51: #{tpu_custom_call.1} parent=1 // pred_check_branch
      %94 = sbr.rel (0) target = $region53
    $region52: #{tpu_custom_call.1} parent=1 // pred_region
      %95 = dma.done [#allocation6], 256
    $region53: #{tpu_custom_call.1} parent=1 // pred_fallthru
      _
    // Predicated region
    $region54: #{tpu_custom_call.1} parent=1 // pred_check
      _
    $region55: #{tpu_custom_call.1} parent=1 // pred_check_branch
      %97 = sbr.rel (0) target = $region57
    $region56: #{tpu_custom_call.1} parent=1 // pred_region
      %98 = dma.done [#allocation6], 1024
    $region57: #{tpu_custom_call.1} parent=1 // pred_fallthru
      _
    // Predicated region
    $region58: #{tpu_custom_call.1} parent=1 // pred_check
      _
    $region59: #{tpu_custom_call.1} parent=1 // pred_check_branch
      %100 = sbr.rel (0) target = $region61
    $region60: #{tpu_custom_call.1} parent=1 // pred_region
      %101 = dma.done [#allocation9], 128
    $region61: #{tpu_custom_call.1} parent=1 // pred_fallthru
      _
    // Predicated region
    $region62: #{tpu_custom_call.1} parent=1 // pred_check
      _
    $region63: #{tpu_custom_call.1} parent=1 // pred_check_branch
      %103 = sbr.rel (0) target = $region65
    $region64: #{tpu_custom_call.1} parent=1 // pred_region
      %104 = dma.done [#allocation9], 1024
    $region65: #{tpu_custom_call.1} parent=1 // pred_fallthru
      _
    %v106 = vld [vmem:[#allocation2] sm:$0xff]
    %v107 = vld [vmem:[#allocation2 + $0x8] sm:$0xff]
    %v108 = vld [vmem:[#allocation2 + $0x10] sm:$0xff]
    %v109 = vld [vmem:[#allocation2 + $0x18] sm:$0xff]
    %v110 = vld [vmem:[#allocation2 + $0x20] sm:$0xff]
    %v111 = vld [vmem:[#allocation2 + $0x28] sm:$0xff]
    %v112 = vld [vmem:[#allocation2 + $0x30] sm:$0xff]
    %v113 = vld [vmem:[#allocation2 + $0x38] sm:$0xff]
    %v114 = vld [vmem:[#allocation2 + $0x40] sm:$0xff]
    %v115 = vld [vmem:[#allocation2 + $0x48] sm:$0xff]
    %v116 = vld [vmem:[#allocation2 + $0x50] sm:$0xff]
    %v117 = vld [vmem:[#allocation2 + $0x58] sm:$0xff]
    %v118 = vld [vmem:[#allocation2 + $0x60] sm:$0xff]
    %v119 = vld [vmem:[#allocation2 + $0x68] sm:$0xff]
    %v120 = vld [vmem:[#allocation2 + $0x70] sm:$0xff]
    %v121 = vld [vmem:[#allocation2 + $0x78] sm:$0xff]
    %v122 = vld [vmem:[#allocation2 + $0x80] sm:$0xff]
    %v123 = vld [vmem:[#allocation2 + $0x88] sm:$0xff]
    %v124 = vld [vmem:[#allocation2 + $0x90] sm:$0xff]
    %v125 = vld [vmem:[#allocation2 + $0x98] sm:$0xff]
    %v126 = vld [vmem:[#allocation2 + $0xa0] sm:$0xff]
    %v127 = vld [vmem:[#allocation2 + $0xa8] sm:$0xff]
    %v128 = vld [vmem:[#allocation2 + $0xb0] sm:$0xff]
    %v129 = vld [vmem:[#allocation2 + $0xb8] sm:$0xff]
    %v130 = vld [vmem:[#allocation2 + $0xc0] sm:$0xff]
    %v131 = vld [vmem:[#allocation2 + $0xc8] sm:$0xff]
    %v132 = vld [vmem:[#allocation2 + $0xd0] sm:$0xff]
    %v133 = vld [vmem:[#allocation2 + $0xd8] sm:$0xff]
    %v134 = vld [vmem:[#allocation2 + $0xe0] sm:$0xff]
    %v135 = vld [vmem:[#allocation2 + $0xe8] sm:$0xff]
    %v136 = vld [vmem:[#allocation2 + $0xf0] sm:$0xff]
    %v137 = vld [vmem:[#allocation2 + $0xf8] sm:$0xff]
    %v138 = vlaneseq
    %v139 = vshrl.u32 %v138, 7
    %v140 = vadd.s32 %v139, 8
    %v141 = vadd.s32 %v139, 16
    %v142 = vadd.s32 %v139, 24
    %v143 = vadd.s32 %v139, 32
    %v144 = vadd.s32 %v139, 40
    %v145 = vadd.s32 %v139, 48
    %v146 = vadd.s32 %v139, 56
    %v147 = vadd.s32 %v139, 64
    %v148 = vadd.s32 %v139, 72
    %v149 = vadd.s32 %v139, 80
    %v150 = vadd.s32 %v139, 88
    %v151 = vadd.s32 %v139, 96
    %v152 = vadd.s32 %v139, 104
    %v153 = vadd.s32 %v139, 112
    %v154 = vadd.s32 %v139, 120
    %v155 = vadd.s32 %v139, 128
    %v156 = vadd.s32 %v139, 136
    %v157 = vadd.s32 %v139, 144
    %v158 = vadd.s32 %v139, 152
    %v159 = vadd.s32 %v139, 160
    %v160 = vadd.s32 %v139, 168
    %v161 = vadd.s32 %v139, 176
    %v162 = vadd.s32 %v139, 184
    %v163 = vadd.s32 %v139, 192
    %v164 = vadd.s32 %v139, 200
    %v165 = vadd.s32 %v139, 208
    %v166 = vadd.s32 %v139, 216
    %v167 = vadd.s32 %v139, 224
    %v168 = vadd.s32 %v139, 232
    %v169 = vadd.s32 %v139, 240
    %v170 = vadd.s32 %v139, 248
    %vm171 = vcmp.lt.s32.totalorder %v139, 0
    %v172 = vsub.s32 0, %v139
    %v173 = vsel %vm171, %v172, %v139
    %v174 = vshrl.u32 %v173, 4
    %v175 = vand.u32 %v173, 15
    %v176 = vsub.s32 0, %v175
    %v177 = vsel %vm171, %v176, %v175
    %vm178 = vcmp.lt.s32.totalorder %v140, 0
    %v179 = vsub.s32 0, %v140
    %v180 = vsel %vm178, %v179, %v140
    %v181 = vshrl.u32 %v180, 4
    %v182 = vand.u32 %v180, 15
    %v183 = vsub.s32 0, %v182
    %v184 = vsel %vm178, %v183, %v182
    %vm185 = vcmp.lt.s32.totalorder %v141, 0
    %v186 = vsub.s32 0, %v141
    %v187 = vsel %vm185, %v186, %v141
    %v188 = vshrl.u32 %v187, 4
    %v189 = vand.u32 %v187, 15
    %v190 = vsub.s32 0, %v189
    %v191 = vsel %vm185, %v190, %v189
    %vm192 = vcmp.lt.s32.totalorder %v142, 0
    %v193 = vsub.s32 0, %v142
    %v194 = vsel %vm192, %v193, %v142
    %v195 = vshrl.u32 %v194, 4
    %v196 = vand.u32 %v194, 15
    %v197 = vsub.s32 0, %v196
    %v198 = vsel %vm192, %v197, %v196
    %vm199 = vcmp.lt.s32.totalorder %v143, 0
    %v200 = vsub.s32 0, %v143
    %v201 = vsel %vm199, %v200, %v143
    %v202 = vshrl.u32 %v201, 4
    %v203 = vand.u32 %v201, 15
    %v204 = vsub.s32 0, %v203
    %v205 = vsel %vm199, %v204, %v203
    %vm206 = vcmp.lt.s32.totalorder %v144, 0
    %v207 = vsub.s32 0, %v144
    %v208 = vsel %vm206, %v207, %v144
    %v209 = vshrl.u32 %v208, 4
    %v210 = vand.u32 %v208, 15
    %v211 = vsub.s32 0, %v210
    %v212 = vsel %vm206, %v211, %v210
    %vm213 = vcmp.lt.s32.totalorder %v145, 0
    %v214 = vsub.s32 0, %v145
    %v215 = vsel %vm213, %v214, %v145
    %v216 = vshrl.u32 %v215, 4
    %v217 = vand.u32 %v215, 15
    %v218 = vsub.s32 0, %v217
    %v219 = vsel %vm213, %v218, %v217
    %vm220 = vcmp.lt.s32.totalorder %v146, 0
    %v221 = vsub.s32 0, %v146
    %v222 = vsel %vm220, %v221, %v146
    %v223 = vshrl.u32 %v222, 4
    %v224 = vand.u32 %v222, 15
    %v225 = vsub.s32 0, %v224
    %v226 = vsel %vm220, %v225, %v224
    %vm227 = vcmp.lt.s32.totalorder %v147, 0
    %v228 = vsub.s32 0, %v147
    %v229 = vsel %vm227, %v228, %v147
    %v230 = vshrl.u32 %v229, 4
    %v231 = vand.u32 %v229, 15
    %v232 = vsub.s32 0, %v231
    %v233 = vsel %vm227, %v232, %v231
    %vm234 = vcmp.lt.s32.totalorder %v148, 0
    %v235 = vsub.s32 0, %v148
    %v236 = vsel %vm234, %v235, %v148
    %v237 = vshrl.u32 %v236, 4
    %v238 = vand.u32 %v236, 15
    %v239 = vsub.s32 0, %v238
    %v240 = vsel %vm234, %v239, %v238
    %vm241 = vcmp.lt.s32.totalorder %v149, 0
    %v242 = vsub.s32 0, %v149
    %v243 = vsel %vm241, %v242, %v149
    %v244 = vshrl.u32 %v243, 4
    %v245 = vand.u32 %v243, 15
    %v246 = vsub.s32 0, %v245
    %v247 = vsel %vm241, %v246, %v245
    %vm248 = vcmp.lt.s32.totalorder %v150, 0
    %v249 = vsub.s32 0, %v150
    %v250 = vsel %vm248, %v249, %v150
    %v251 = vshrl.u32 %v250, 4
    %v252 = vand.u32 %v250, 15
    %v253 = vsub.s32 0, %v252
    %v254 = vsel %vm248, %v253, %v252
    %vm255 = vcmp.lt.s32.totalorder %v151, 0
    %v256 = vsub.s32 0, %v151
    %v257 = vsel %vm255, %v256, %v151
    %v258 = vshrl.u32 %v257, 4
    %v259 = vand.u32 %v257, 15
    %v260 = vsub.s32 0, %v259
    %v261 = vsel %vm255, %v260, %v259
    %vm262 = vcmp.lt.s32.totalorder %v152, 0
    %v263 = vsub.s32 0, %v152
    %v264 = vsel %vm262, %v263, %v152
    %v265 = vshrl.u32 %v264, 4
    %v266 = vand.u32 %v264, 15
    %v267 = vsub.s32 0, %v266
    %v268 = vsel %vm262, %v267, %v266
    %vm269 = vcmp.lt.s32.totalorder %v153, 0
    %v270 = vsub.s32 0, %v153
    %v271 = vsel %vm269, %v270, %v153
    %v272 = vshrl.u32 %v271, 4
    %v273 = vand.u32 %v271, 15
    %v274 = vsub.s32 0, %v273
    %v275 = vsel %vm269, %v274, %v273
    %vm276 = vcmp.lt.s32.totalorder %v154, 0
    %v277 = vsub.s32 0, %v154
    %v278 = vsel %vm276, %v277, %v154
    %v279 = vshrl.u32 %v278, 4
    %v280 = vand.u32 %v278, 15
    %v281 = vsub.s32 0, %v280
    %v282 = vsel %vm276, %v281, %v280
    %vm283 = vcmp.lt.s32.totalorder %v155, 0
    %v284 = vsub.s32 0, %v155
    %v285 = vsel %vm283, %v284, %v155
    %v286 = vshrl.u32 %v285, 4
    %v287 = vand.u32 %v285, 15
    %v288 = vsub.s32 0, %v287
    %v289 = vsel %vm283, %v288, %v287
    %vm290 = vcmp.lt.s32.totalorder %v156, 0
    %v291 = vsub.s32 0, %v156
    %v292 = vsel %vm290, %v291, %v156
    %v293 = vshrl.u32 %v292, 4
    %v294 = vand.u32 %v292, 15
    %v295 = vsub.s32 0, %v294
    %v296 = vsel %vm290, %v295, %v294
    %vm297 = vcmp.lt.s32.totalorder %v157, 0
    %v298 = vsub.s32 0, %v157
    %v299 = vsel %vm297, %v298, %v157
    %v300 = vshrl.u32 %v299, 4
    %v301 = vand.u32 %v299, 15
    %v302 = vsub.s32 0, %v301
    %v303 = vsel %vm297, %v302, %v301
    %vm304 = vcmp.lt.s32.totalorder %v158, 0
    %v305 = vsub.s32 0, %v158
    %v306 = vsel %vm304, %v305, %v158
    %v307 = vshrl.u32 %v306, 4
    %v308 = vand.u32 %v306, 15
    %v309 = vsub.s32 0, %v308
    %v310 = vsel %vm304, %v309, %v308
    %vm311 = vcmp.lt.s32.totalorder %v159, 0
    %v312 = vsub.s32 0, %v159
    %v313 = vsel %vm311, %v312, %v159
    %v314 = vshrl.u32 %v313, 4
    %v315 = vand.u32 %v313, 15
    %v316 = vsub.s32 0, %v315
    %v317 = vsel %vm311, %v316, %v315
    %vm318 = vcmp.lt.s32.totalorder %v160, 0
    %v319 = vsub.s32 0, %v160
    %v320 = vsel %vm318, %v319, %v160
    %v321 = vshrl.u32 %v320, 4
    %v322 = vand.u32 %v320, 15
    %v323 = vsub.s32 0, %v322
    %v324 = vsel %vm318, %v323, %v322
    %vm325 = vcmp.lt.s32.totalorder %v161, 0
    %v326 = vsub.s32 0, %v161
    %v327 = vsel %vm325, %v326, %v161
    %v328 = vshrl.u32 %v327, 4
    %v329 = vand.u32 %v327, 15
    %v330 = vsub.s32 0, %v329
    %v331 = vsel %vm325, %v330, %v329
    %vm332 = vcmp.lt.s32.totalorder %v162, 0
    %v333 = vsub.s32 0, %v162
    %v334 = vsel %vm332, %v333, %v162
    %v335 = vshrl.u32 %v334, 4
    %v336 = vand.u32 %v334, 15
    %v337 = vsub.s32 0, %v336
    %v338 = vsel %vm332, %v337, %v336
    %vm339 = vcmp.lt.s32.totalorder %v163, 0
    %v340 = vsub.s32 0, %v163
    %v341 = vsel %vm339, %v340, %v163
    %v342 = vshrl.u32 %v341, 4
    %v343 = vand.u32 %v341, 15
    %v344 = vsub.s32 0, %v343
    %v345 = vsel %vm339, %v344, %v343
    %vm346 = vcmp.lt.s32.totalorder %v164, 0
    %v347 = vsub.s32 0, %v164
    %v348 = vsel %vm346, %v347, %v164
    %v349 = vshrl.u32 %v348, 4
    %v350 = vand.u32 %v348, 15
    %v351 = vsub.s32 0, %v350
    %v352 = vsel %vm346, %v351, %v350
    %vm353 = vcmp.lt.s32.totalorder %v165, 0
    %v354 = vsub.s32 0, %v165
    %v355 = vsel %vm353, %v354, %v165
    %v356 = vshrl.u32 %v355, 4
    %v357 = vand.u32 %v355, 15
    %v358 = vsub.s32 0, %v357
    %v359 = vsel %vm353, %v358, %v357
    %vm360 = vcmp.lt.s32.totalorder %v166, 0
    %v361 = vsub.s32 0, %v166
    %v362 = vsel %vm360, %v361, %v166
    %v363 = vshrl.u32 %v362, 4
    %v364 = vand.u32 %v362, 15
    %v365 = vsub.s32 0, %v364
    %v366 = vsel %vm360, %v365, %v364
    %vm367 = vcmp.lt.s32.totalorder %v167, 0
    %v368 = vsub.s32 0, %v167
    %v369 = vsel %vm367, %v368, %v167
    %v370 = vshrl.u32 %v369, 4
    %v371 = vand.u32 %v369, 15
    %v372 = vsub.s32 0, %v371
    %v373 = vsel %vm367, %v372, %v371
    %vm374 = vcmp.lt.s32.totalorder %v168, 0
    %v375 = vsub.s32 0, %v168
    %v376 = vsel %vm374, %v375, %v168
    %v377 = vshrl.u32 %v376, 4
    %v378 = vand.u32 %v376, 15
    %v379 = vsub.s32 0, %v378
    %v380 = vsel %vm374, %v379, %v378
    %vm381 = vcmp.lt.s32.totalorder %v169, 0
    %v382 = vsub.s32 0, %v169
    %v383 = vsel %vm381, %v382, %v169
    %v384 = vshrl.u32 %v383, 4
    %v385 = vand.u32 %v383, 15
    %v386 = vsub.s32 0, %v385
    %v387 = vsel %vm381, %v386, %v385
    %vm388 = vcmp.lt.s32.totalorder %v170, 0
    %v389 = vsub.s32 0, %v170
    %v390 = vsel %vm388, %v389, %v170
    %v391 = vshrl.u32 %v390, 4
    %v392 = vand.u32 %v390, 15
    %v393 = vsub.s32 0, %v392
    %v394 = vsel %vm388, %v393, %v392
    %vm395 = vcmp.ne.s32.totalorder %v177, 0
    %vm396 = vcmp.ne.s32.totalorder %v184, 0
    %vm397 = vcmp.ne.s32.totalorder %v191, 0
    %vm398 = vcmp.ne.s32.totalorder %v198, 0
    %vm399 = vcmp.ne.s32.totalorder %v205, 0
    %vm400 = vcmp.ne.s32.totalorder %v212, 0
    %vm401 = vcmp.ne.s32.totalorder %v219, 0
    %vm402 = vcmp.ne.s32.totalorder %v226, 0
    %vm403 = vcmp.ne.s32.totalorder %v233, 0
    %vm404 = vcmp.ne.s32.totalorder %v240, 0
    %vm405 = vcmp.ne.s32.totalorder %v247, 0
    %vm406 = vcmp.ne.s32.totalorder %v254, 0
    %vm407 = vcmp.ne.s32.totalorder %v261, 0
    %vm408 = vcmp.ne.s32.totalorder %v268, 0
    %vm409 = vcmp.ne.s32.totalorder %v275, 0
    %vm410 = vcmp.ne.s32.totalorder %v282, 0
    %vm411 = vcmp.ne.s32.totalorder %v289, 0
    %vm412 = vcmp.ne.s32.totalorder %v296, 0
    %vm413 = vcmp.ne.s32.totalorder %v303, 0
    %vm414 = vcmp.ne.s32.totalorder %v310, 0
    %vm415 = vcmp.ne.s32.totalorder %v317, 0
    %vm416 = vcmp.ne.s32.totalorder %v324, 0
    %vm417 = vcmp.ne.s32.totalorder %v331, 0
    %vm418 = vcmp.ne.s32.totalorder %v338, 0
    %vm419 = vcmp.ne.s32.totalorder %v345, 0
    %vm420 = vcmp.ne.s32.totalorder %v352, 0
    %vm421 = vcmp.ne.s32.totalorder %v359, 0
    %vm422 = vcmp.ne.s32.totalorder %v366, 0
    %vm423 = vcmp.ne.s32.totalorder %v373, 0
    %vm424 = vcmp.ne.s32.totalorder %v380, 0
    %vm425 = vcmp.ne.s32.totalorder %v387, 0
    %vm426 = vcmp.ne.s32.totalorder %v394, 0
    %vm427 = vcmp.lt.s32.totalorder %v177, 0
    %vm428 = vcmp.lt.s32.totalorder %v184, 0
    %vm429 = vcmp.lt.s32.totalorder %v191, 0
    %vm430 = vcmp.lt.s32.totalorder %v198, 0
    %vm431 = vcmp.lt.s32.totalorder %v205, 0
    %vm432 = vcmp.lt.s32.totalorder %v212, 0
    %vm433 = vcmp.lt.s32.totalorder %v219, 0
    %vm434 = vcmp.lt.s32.totalorder %v226, 0
    %vm435 = vcmp.lt.s32.totalorder %v233, 0
    %vm436 = vcmp.lt.s32.totalorder %v240, 0
    %vm437 = vcmp.lt.s32.totalorder %v247, 0
    %vm438 = vcmp.lt.s32.totalorder %v254, 0
    %vm439 = vcmp.lt.s32.totalorder %v261, 0
    %vm440 = vcmp.lt.s32.totalorder %v268, 0
    %vm441 = vcmp.lt.s32.totalorder %v275, 0
    %vm442 = vcmp.lt.s32.totalorder %v282, 0
    %vm443 = vcmp.lt.s32.totalorder %v289, 0
    %vm444 = vcmp.lt.s32.totalorder %v296, 0
    %vm445 = vcmp.lt.s32.totalorder %v303, 0
    %vm446 = vcmp.lt.s32.totalorder %v310, 0
    %vm447 = vcmp.lt.s32.totalorder %v317, 0
    %vm448 = vcmp.lt.s32.totalorder %v324, 0
    %vm449 = vcmp.lt.s32.totalorder %v331, 0
    %vm450 = vcmp.lt.s32.totalorder %v338, 0
    %vm451 = vcmp.lt.s32.totalorder %v345, 0
    %vm452 = vcmp.lt.s32.totalorder %v352, 0
    %vm453 = vcmp.lt.s32.totalorder %v359, 0
    %vm454 = vcmp.lt.s32.totalorder %v366, 0
    %vm455 = vcmp.lt.s32.totalorder %v373, 0
    %vm456 = vcmp.lt.s32.totalorder %v380, 0
    %vm457 = vcmp.lt.s32.totalorder %v387, 0
    %vm458 = vcmp.lt.s32.totalorder %v394, 0
    %vm459 = vmand %vm427, %vm395
    %vm460 = vmand %vm428, %vm396
    %vm461 = vmand %vm429, %vm397
    %vm462 = vmand %vm430, %vm398
    %vm463 = vmand %vm431, %vm399
    %vm464 = vmand %vm432, %vm400
    %vm465 = vmand %vm433, %vm401
    %vm466 = vmand %vm434, %vm402
    %vm467 = vmand %vm435, %vm403
    %vm468 = vmand %vm436, %vm404
    %vm469 = vmand %vm437, %vm405
    %vm470 = vmand %vm438, %vm406
    %vm471 = vmand %vm439, %vm407
    %vm472 = vmand %vm440, %vm408
    %vm473 = vmand %vm441, %vm409
    %vm474 = vmand %vm442, %vm410
    %vm475 = vmand %vm443, %vm411
    %vm476 = vmand %vm444, %vm412
    %vm477 = vmand %vm445, %vm413
    %vm478 = vmand %vm446, %vm414
    %vm479 = vmand %vm447, %vm415
    %vm480 = vmand %vm448, %vm416
    %vm481 = vmand %vm449, %vm417
    %vm482 = vmand %vm450, %vm418
    %vm483 = vmand %vm451, %vm419
    %vm484 = vmand %vm452, %vm420
    %vm485 = vmand %vm453, %vm421
    %vm486 = vmand %vm454, %vm422
    %vm487 = vmand %vm455, %vm423
    %vm488 = vmand %vm456, %vm424
    %vm489 = vmand %vm457, %vm425
    %vm490 = vmand %vm458, %vm426
    %v491 = vadd.s32 %v177, 16
    %v492 = vadd.s32 %v184, 16
    %v493 = vadd.s32 %v191, 16
    %v494 = vadd.s32 %v198, 16
    %v495 = vadd.s32 %v205, 16
    %v496 = vadd.s32 %v212, 16
    %v497 = vadd.s32 %v219, 16
    %v498 = vadd.s32 %v226, 16
    %v499 = vadd.s32 %v233, 16
    %v500 = vadd.s32 %v240, 16
    %v501 = vadd.s32 %v247, 16
    %v502 = vadd.s32 %v254, 16
    %v503 = vadd.s32 %v261, 16
    %v504 = vadd.s32 %v268, 16
    %v505 = vadd.s32 %v275, 16
    %v506 = vadd.s32 %v282, 16
    %v507 = vadd.s32 %v289, 16
    %v508 = vadd.s32 %v296, 16
    %v509 = vadd.s32 %v303, 16
    %v510 = vadd.s32 %v310, 16
    %v511 = vadd.s32 %v317, 16
    %v512 = vadd.s32 %v324, 16
    %v513 = vadd.s32 %v331, 16
    %v514 = vadd.s32 %v338, 16
    %v515 = vadd.s32 %v345, 16
    %v516 = vadd.s32 %v352, 16
    %v517 = vadd.s32 %v359, 16
    %v518 = vadd.s32 %v366, 16
    %v519 = vadd.s32 %v373, 16
    %v520 = vadd.s32 %v380, 16
    %v521 = vadd.s32 %v387, 16
    %v522 = vadd.s32 %v394, 16
    %v523 = vsel %vm459, %v491, %v177
    %v524 = vsel %vm460, %v492, %v184
    %v525 = vsel %vm461, %v493, %v191
    %v526 = vsel %vm462, %v494, %v198
    %v527 = vsel %vm463, %v495, %v205
    %v528 = vsel %vm464, %v496, %v212
    %v529 = vsel %vm465, %v497, %v219
    %v530 = vsel %vm466, %v498, %v226
    %v531 = vsel %vm467, %v499, %v233
    %v532 = vsel %vm468, %v500, %v240
    %v533 = vsel %vm469, %v501, %v247
    %v534 = vsel %vm470, %v502, %v254
    %v535 = vsel %vm471, %v503, %v261
    %v536 = vsel %vm472, %v504, %v268
    %v537 = vsel %vm473, %v505, %v275
    %v538 = vsel %vm474, %v506, %v282
    %v539 = vsel %vm475, %v507, %v289
    %v540 = vsel %vm476, %v508, %v296
    %v541 = vsel %vm477, %v509, %v303
    %v542 = vsel %vm478, %v510, %v310
    %v543 = vsel %vm479, %v511, %v317
    %v544 = vsel %vm480, %v512, %v324
    %v545 = vsel %vm481, %v513, %v331
    %v546 = vsel %vm482, %v514, %v338
    %v547 = vsel %vm483, %v515, %v345
    %v548 = vsel %vm484, %v516, %v352
    %v549 = vsel %vm485, %v517, %v359
    %v550 = vsel %vm486, %v518, %v366
    %v551 = vsel %vm487, %v519, %v373
    %v552 = vsel %vm488, %v520, %v380
    %v553 = vsel %vm489, %v521, %v387
    %v554 = vsel %vm490, %v522, %v394
    %vm555 = vcmp.ge.s32.totalorder %v139, 16
    %vm556 = vcmp.ge.s32.totalorder %v140, 16
    %vm557 = vcmp.ge.s32.totalorder %v141, 16
    %vm558 = vcmp.ge.s32.totalorder %v142, 16
    %vm559 = vcmp.ge.s32.totalorder %v143, 16
    %vm560 = vcmp.ge.s32.totalorder %v144, 16
    %vm561 = vcmp.ge.s32.totalorder %v145, 16
    %vm562 = vcmp.ge.s32.totalorder %v146, 16
    %vm563 = vcmp.ge.s32.totalorder %v147, 16
    %vm564 = vcmp.ge.s32.totalorder %v148, 16
    %vm565 = vcmp.ge.s32.totalorder %v149, 16
    %vm566 = vcmp.ge.s32.totalorder %v150, 16
    %vm567 = vcmp.ge.s32.totalorder %v151, 16
    %vm568 = vcmp.ge.s32.totalorder %v152, 16
    %vm569 = vcmp.ge.s32.totalorder %v153, 16
    %vm570 = vcmp.ge.s32.totalorder %v154, 16
    %vm571 = vcmp.ge.s32.totalorder %v155, 16
    %vm572 = vcmp.ge.s32.totalorder %v156, 16
    %vm573 = vcmp.ge.s32.totalorder %v157, 16
    %vm574 = vcmp.ge.s32.totalorder %v158, 16
    %vm575 = vcmp.ge.s32.totalorder %v159, 16
    %vm576 = vcmp.ge.s32.totalorder %v160, 16
    %vm577 = vcmp.ge.s32.totalorder %v161, 16
    %vm578 = vcmp.ge.s32.totalorder %v162, 16
    %vm579 = vcmp.ge.s32.totalorder %v163, 16
    %vm580 = vcmp.ge.s32.totalorder %v164, 16
    %vm581 = vcmp.ge.s32.totalorder %v165, 16
    %vm582 = vcmp.ge.s32.totalorder %v166, 16
    %vm583 = vcmp.ge.s32.totalorder %v167, 16
    %vm584 = vcmp.ge.s32.totalorder %v168, 16
    %vm585 = vcmp.ge.s32.totalorder %v169, 16
    %vm586 = vcmp.ge.s32.totalorder %v170, 16
    %v587 = vsel %vm555, 1, 0
    %v588 = vsel %vm556, 1, 0
    %v589 = vsel %vm557, 1, 0
    %v590 = vsel %vm558, 1, 0
    %v591 = vsel %vm559, 1, 0
    %v592 = vsel %vm560, 1, 0
    %v593 = vsel %vm561, 1, 0
    %v594 = vsel %vm562, 1, 0
    %v595 = vsel %vm563, 1, 0
    %v596 = vsel %vm564, 1, 0
    %v597 = vsel %vm565, 1, 0
    %v598 = vsel %vm566, 1, 0
    %v599 = vsel %vm567, 1, 0
    %v600 = vsel %vm568, 1, 0
    %v601 = vsel %vm569, 1, 0
    %v602 = vsel %vm570, 1, 0
    %v603 = vsel %vm571, 1, 0
    %v604 = vsel %vm572, 1, 0
    %v605 = vsel %vm573, 1, 0
    %v606 = vsel %vm574, 1, 0
    %v607 = vsel %vm575, 1, 0
    %v608 = vsel %vm576, 1, 0
    %v609 = vsel %vm577, 1, 0
    %v610 = vsel %vm578, 1, 0
    %v611 = vsel %vm579, 1, 0
    %v612 = vsel %vm580, 1, 0
    %v613 = vsel %vm581, 1, 0
    %v614 = vsel %vm582, 1, 0
    %v615 = vsel %vm583, 1, 0
    %v616 = vsel %vm584, 1, 0
    %v617 = vsel %vm585, 1, 0
    %v618 = vsel %vm586, 1, 0
    %v619 = vcvt.s32.f32 %v587
    %v620 = vcvt.s32.f32 %v588
    %v621 = vcvt.s32.f32 %v589
    %v622 = vcvt.s32.f32 %v590
    %v623 = vcvt.s32.f32 %v591
    %v624 = vcvt.s32.f32 %v592
    %v625 = vcvt.s32.f32 %v593
    %v626 = vcvt.s32.f32 %v594
    %v627 = vcvt.s32.f32 %v595
    %v628 = vcvt.s32.f32 %v596
    %v629 = vcvt.s32.f32 %v597
    %v630 = vcvt.s32.f32 %v598
    %v631 = vcvt.s32.f32 %v599
    %v632 = vcvt.s32.f32 %v600
    %v633 = vcvt.s32.f32 %v601
    %v634 = vcvt.s32.f32 %v602
    %v635 = vcvt.s32.f32 %v603
    %v636 = vcvt.s32.f32 %v604
    %v637 = vcvt.s32.f32 %v605
    %v638 = vcvt.s32.f32 %v606
    %v639 = vcvt.s32.f32 %v607
    %v640 = vcvt.s32.f32 %v608
    %v641 = vcvt.s32.f32 %v609
    %v642 = vcvt.s32.f32 %v610
    %v643 = vcvt.s32.f32 %v611
    %v644 = vcvt.s32.f32 %v612
    %v645 = vcvt.s32.f32 %v613
    %v646 = vcvt.s32.f32 %v614
    %v647 = vcvt.s32.f32 %v615
    %v648 = vcvt.s32.f32 %v616
    %v649 = vcvt.s32.f32 %v617
    %v650 = vcvt.s32.f32 %v618
    %vm651 = vcmp.lt.s32.totalorder %v139, 240
    %vm652 = vcmp.lt.s32.totalorder %v140, 240
    %vm653 = vcmp.lt.s32.totalorder %v141, 240
    %vm654 = vcmp.lt.s32.totalorder %v142, 240
    %vm655 = vcmp.lt.s32.totalorder %v143, 240
    %vm656 = vcmp.lt.s32.totalorder %v144, 240
    %vm657 = vcmp.lt.s32.totalorder %v145, 240
    %vm658 = vcmp.lt.s32.totalorder %v146, 240
    %vm659 = vcmp.lt.s32.totalorder %v147, 240
    %vm660 = vcmp.lt.s32.totalorder %v148, 240
    %vm661 = vcmp.lt.s32.totalorder %v149, 240
    %vm662 = vcmp.lt.s32.totalorder %v150, 240
    %vm663 = vcmp.lt.s32.totalorder %v151, 240
    %vm664 = vcmp.lt.s32.totalorder %v152, 240
    %vm665 = vcmp.lt.s32.totalorder %v153, 240
    %vm666 = vcmp.lt.s32.totalorder %v154, 240
    %vm667 = vcmp.lt.s32.totalorder %v155, 240
    %vm668 = vcmp.lt.s32.totalorder %v156, 240
    %vm669 = vcmp.lt.s32.totalorder %v157, 240
    %vm670 = vcmp.lt.s32.totalorder %v158, 240
    %vm671 = vcmp.lt.s32.totalorder %v159, 240
    %vm672 = vcmp.lt.s32.totalorder %v160, 240
    %vm673 = vcmp.lt.s32.totalorder %v161, 240
    %vm674 = vcmp.lt.s32.totalorder %v162, 240
    %vm675 = vcmp.lt.s32.totalorder %v163, 240
    %vm676 = vcmp.lt.s32.totalorder %v164, 240
    %vm677 = vcmp.lt.s32.totalorder %v165, 240
    %vm678 = vcmp.lt.s32.totalorder %v166, 240
    %vm679 = vcmp.lt.s32.totalorder %v167, 240
    %vm680 = vcmp.lt.s32.totalorder %v168, 240
    %vm681 = vcmp.lt.s32.totalorder %v169, 240
    %vm682 = vcmp.lt.s32.totalorder %v170, 240
    %v683 = vsel %vm651, 1, 0
    %v684 = vsel %vm652, 1, 0
    %v685 = vsel %vm653, 1, 0
    %v686 = vsel %vm654, 1, 0
    %v687 = vsel %vm655, 1, 0
    %v688 = vsel %vm656, 1, 0
    %v689 = vsel %vm657, 1, 0
    %v690 = vsel %vm658, 1, 0
    %v691 = vsel %vm659, 1, 0
    %v692 = vsel %vm660, 1, 0
    %v693 = vsel %vm661, 1, 0
    %v694 = vsel %vm662, 1, 0
    %v695 = vsel %vm663, 1, 0
    %v696 = vsel %vm664, 1, 0
    %v697 = vsel %vm665, 1, 0
    %v698 = vsel %vm666, 1, 0
    %v699 = vsel %vm667, 1, 0
    %v700 = vsel %vm668, 1, 0
    %v701 = vsel %vm669, 1, 0
    %v702 = vsel %vm670, 1, 0
    %v703 = vsel %vm671, 1, 0
    %v704 = vsel %vm672, 1, 0
    %v705 = vsel %vm673, 1, 0
    %v706 = vsel %vm674, 1, 0
    %v707 = vsel %vm675, 1, 0
    %v708 = vsel %vm676, 1, 0
    %v709 = vsel %vm677, 1, 0
    %v710 = vsel %vm678, 1, 0
    %v711 = vsel %vm679, 1, 0
    %v712 = vsel %vm680, 1, 0
    %v713 = vsel %vm681, 1, 0
    %v714 = vsel %vm682, 1, 0
    %v715 = vcvt.s32.f32 %v683
    %v716 = vcvt.s32.f32 %v684
    %v717 = vcvt.s32.f32 %v685
    %v718 = vcvt.s32.f32 %v686
    %v719 = vcvt.s32.f32 %v687
    %v720 = vcvt.s32.f32 %v688
    %v721 = vcvt.s32.f32 %v689
    %v722 = vcvt.s32.f32 %v690
    %v723 = vcvt.s32.f32 %v691
    %v724 = vcvt.s32.f32 %v692
    %v725 = vcvt.s32.f32 %v693
    %v726 = vcvt.s32.f32 %v694
    %v727 = vcvt.s32.f32 %v695
    %v728 = vcvt.s32.f32 %v696
    %v729 = vcvt.s32.f32 %v697
    %v730 = vcvt.s32.f32 %v698
    %v731 = vcvt.s32.f32 %v699
    %v732 = vcvt.s32.f32 %v700
    %v733 = vcvt.s32.f32 %v701
    %v734 = vcvt.s32.f32 %v702
    %v735 = vcvt.s32.f32 %v703
    %v736 = vcvt.s32.f32 %v704
    %v737 = vcvt.s32.f32 %v705
    %v738 = vcvt.s32.f32 %v706
    %v739 = vcvt.s32.f32 %v707
    %v740 = vcvt.s32.f32 %v708
    %v741 = vcvt.s32.f32 %v709
    %v742 = vcvt.s32.f32 %v710
    %v743 = vcvt.s32.f32 %v711
    %v744 = vcvt.s32.f32 %v712
    %v745 = vcvt.s32.f32 %v713
    %v746 = vcvt.s32.f32 %v714
    %vm747 = vcmp.gt.s32.totalorder %v523, 0
    %vm748 = vcmp.gt.s32.totalorder %v524, 0
    %vm749 = vcmp.gt.s32.totalorder %v525, 0
    %vm750 = vcmp.gt.s32.totalorder %v526, 0
    %vm751 = vcmp.gt.s32.totalorder %v527, 0
    %vm752 = vcmp.gt.s32.totalorder %v528, 0
    %vm753 = vcmp.gt.s32.totalorder %v529, 0
    %vm754 = vcmp.gt.s32.totalorder %v530, 0
    %vm755 = vcmp.gt.s32.totalorder %v531, 0
    %vm756 = vcmp.gt.s32.totalorder %v532, 0
    %vm757 = vcmp.gt.s32.totalorder %v533, 0
    %vm758 = vcmp.gt.s32.totalorder %v534, 0
    %vm759 = vcmp.gt.s32.totalorder %v535, 0
    %vm760 = vcmp.gt.s32.totalorder %v536, 0
    %vm761 = vcmp.gt.s32.totalorder %v537, 0
    %vm762 = vcmp.gt.s32.totalorder %v538, 0
    %vm763 = vcmp.gt.s32.totalorder %v539, 0
    %vm764 = vcmp.gt.s32.totalorder %v540, 0
    %vm765 = vcmp.gt.s32.totalorder %v541, 0
    %vm766 = vcmp.gt.s32.totalorder %v542, 0
    %vm767 = vcmp.gt.s32.totalorder %v543, 0
    %vm768 = vcmp.gt.s32.totalorder %v544, 0
    %vm769 = vcmp.gt.s32.totalorder %v545, 0
    %vm770 = vcmp.gt.s32.totalorder %v546, 0
    %vm771 = vcmp.gt.s32.totalorder %v547, 0
    %vm772 = vcmp.gt.s32.totalorder %v548, 0
    %vm773 = vcmp.gt.s32.totalorder %v549, 0
    %vm774 = vcmp.gt.s32.totalorder %v550, 0
    %vm775 = vcmp.gt.s32.totalorder %v551, 0
    %vm776 = vcmp.gt.s32.totalorder %v552, 0
    %vm777 = vcmp.gt.s32.totalorder %v553, 0
    %vm778 = vcmp.gt.s32.totalorder %v554, 0
    %v779 = vsel %vm747, 1, 0
    %v780 = vsel %vm748, 1, 0
    %v781 = vsel %vm749, 1, 0
    %v782 = vsel %vm750, 1, 0
    %v783 = vsel %vm751, 1, 0
    %v784 = vsel %vm752, 1, 0
    %v785 = vsel %vm753, 1, 0
    %v786 = vsel %vm754, 1, 0
    %v787 = vsel %vm755, 1, 0
    %v788 = vsel %vm756, 1, 0
    %v789 = vsel %vm757, 1, 0
    %v790 = vsel %vm758, 1, 0
    %v791 = vsel %vm759, 1, 0
    %v792 = vsel %vm760, 1, 0
    %v793 = vsel %vm761, 1, 0
    %v794 = vsel %vm762, 1, 0
    %v795 = vsel %vm763, 1, 0
    %v796 = vsel %vm764, 1, 0
    %v797 = vsel %vm765, 1, 0
    %v798 = vsel %vm766, 1, 0
    %v799 = vsel %vm767, 1, 0
    %v800 = vsel %vm768, 1, 0
    %v801 = vsel %vm769, 1, 0
    %v802 = vsel %vm770, 1, 0
    %v803 = vsel %vm771, 1, 0
    %v804 = vsel %vm772, 1, 0
    %v805 = vsel %vm773, 1, 0
    %v806 = vsel %vm774, 1, 0
    %v807 = vsel %vm775, 1, 0
    %v808 = vsel %vm776, 1, 0
    %v809 = vsel %vm777, 1, 0
    %v810 = vsel %vm778, 1, 0
    %v811 = vcvt.s32.f32 %v779
    %v812 = vcvt.s32.f32 %v780
    %v813 = vcvt.s32.f32 %v781
    %v814 = vcvt.s32.f32 %v782
    %v815 = vcvt.s32.f32 %v783
    %v816 = vcvt.s32.f32 %v784
    %v817 = vcvt.s32.f32 %v785
    %v818 = vcvt.s32.f32 %v786
    %v819 = vcvt.s32.f32 %v787
    %v820 = vcvt.s32.f32 %v788
    %v821 = vcvt.s32.f32 %v789
    %v822 = vcvt.s32.f32 %v790
    %v823 = vcvt.s32.f32 %v791
    %v824 = vcvt.s32.f32 %v792
    %v825 = vcvt.s32.f32 %v793
    %v826 = vcvt.s32.f32 %v794
    %v827 = vcvt.s32.f32 %v795
    %v828 = vcvt.s32.f32 %v796
    %v829 = vcvt.s32.f32 %v797
    %v830 = vcvt.s32.f32 %v798
    %v831 = vcvt.s32.f32 %v799
    %v832 = vcvt.s32.f32 %v800
    %v833 = vcvt.s32.f32 %v801
    %v834 = vcvt.s32.f32 %v802
    %v835 = vcvt.s32.f32 %v803
    %v836 = vcvt.s32.f32 %v804
    %v837 = vcvt.s32.f32 %v805
    %v838 = vcvt.s32.f32 %v806
    %v839 = vcvt.s32.f32 %v807
    %v840 = vcvt.s32.f32 %v808
    %v841 = vcvt.s32.f32 %v809
    %v842 = vcvt.s32.f32 %v810
    %vm843 = vcmp.lt.s32.totalorder %v523, 15
    %vm844 = vcmp.lt.s32.totalorder %v524, 15
    %vm845 = vcmp.lt.s32.totalorder %v525, 15
    %vm846 = vcmp.lt.s32.totalorder %v526, 15
    %vm847 = vcmp.lt.s32.totalorder %v527, 15
    %vm848 = vcmp.lt.s32.totalorder %v528, 15
    %vm849 = vcmp.lt.s32.totalorder %v529, 15
    %vm850 = vcmp.lt.s32.totalorder %v530, 15
    %vm851 = vcmp.lt.s32.totalorder %v531, 15
    %vm852 = vcmp.lt.s32.totalorder %v532, 15
    %vm853 = vcmp.lt.s32.totalorder %v533, 15
    %vm854 = vcmp.lt.s32.totalorder %v534, 15
    %vm855 = vcmp.lt.s32.totalorder %v535, 15
    %vm856 = vcmp.lt.s32.totalorder %v536, 15
    %vm857 = vcmp.lt.s32.totalorder %v537, 15
    %vm858 = vcmp.lt.s32.totalorder %v538, 15
    %vm859 = vcmp.lt.s32.totalorder %v539, 15
    %vm860 = vcmp.lt.s32.totalorder %v540, 15
    %vm861 = vcmp.lt.s32.totalorder %v541, 15
    %vm862 = vcmp.lt.s32.totalorder %v542, 15
    %vm863 = vcmp.lt.s32.totalorder %v543, 15
    %vm864 = vcmp.lt.s32.totalorder %v544, 15
    %vm865 = vcmp.lt.s32.totalorder %v545, 15
    %vm866 = vcmp.lt.s32.totalorder %v546, 15
    %vm867 = vcmp.lt.s32.totalorder %v547, 15
    %vm868 = vcmp.lt.s32.totalorder %v548, 15
    %vm869 = vcmp.lt.s32.totalorder %v549, 15
    %vm870 = vcmp.lt.s32.totalorder %v550, 15
    %vm871 = vcmp.lt.s32.totalorder %v551, 15
    %vm872 = vcmp.lt.s32.totalorder %v552, 15
    %vm873 = vcmp.lt.s32.totalorder %v553, 15
    %vm874 = vcmp.lt.s32.totalorder %v554, 15
    %v875 = vsel %vm843, 1, 0
    %v876 = vsel %vm844, 1, 0
    %v877 = vsel %vm845, 1, 0
    %v878 = vsel %vm846, 1, 0
    %v879 = vsel %vm847, 1, 0
    %v880 = vsel %vm848, 1, 0
    %v881 = vsel %vm849, 1, 0
    %v882 = vsel %vm850, 1, 0
    %v883 = vsel %vm851, 1, 0
    %v884 = vsel %vm852, 1, 0
    %v885 = vsel %vm853, 1, 0
    %v886 = vsel %vm854, 1, 0
    %v887 = vsel %vm855, 1, 0
    %v888 = vsel %vm856, 1, 0
    %v889 = vsel %vm857, 1, 0
    %v890 = vsel %vm858, 1, 0
    %v891 = vsel %vm859, 1, 0
    %v892 = vsel %vm860, 1, 0
    %v893 = vsel %vm861, 1, 0
    %v894 = vsel %vm862, 1, 0
    %v895 = vsel %vm863, 1, 0
    %v896 = vsel %vm864, 1, 0
    %v897 = vsel %vm865, 1, 0
    %v898 = vsel %vm866, 1, 0
    %v899 = vsel %vm867, 1, 0
    %v900 = vsel %vm868, 1, 0
    %v901 = vsel %vm869, 1, 0
    %v902 = vsel %vm870, 1, 0
    %v903 = vsel %vm871, 1, 0
    %v904 = vsel %vm872, 1, 0
    %v905 = vsel %vm873, 1, 0
    %v906 = vsel %vm874, 1, 0
    %v907 = vcvt.s32.f32 %v875
    %v908 = vcvt.s32.f32 %v876
    %v909 = vcvt.s32.f32 %v877
    %v910 = vcvt.s32.f32 %v878
    %v911 = vcvt.s32.f32 %v879
    %v912 = vcvt.s32.f32 %v880
    %v913 = vcvt.s32.f32 %v881
    %v914 = vcvt.s32.f32 %v882
    %v915 = vcvt.s32.f32 %v883
    %v916 = vcvt.s32.f32 %v884
    %v917 = vcvt.s32.f32 %v885
    %v918 = vcvt.s32.f32 %v886
    %v919 = vcvt.s32.f32 %v887
    %v920 = vcvt.s32.f32 %v888
    %v921 = vcvt.s32.f32 %v889
    %v922 = vcvt.s32.f32 %v890
    %v923 = vcvt.s32.f32 %v891
    %v924 = vcvt.s32.f32 %v892
    %v925 = vcvt.s32.f32 %v893
    %v926 = vcvt.s32.f32 %v894
    %v927 = vcvt.s32.f32 %v895
    %v928 = vcvt.s32.f32 %v896
    %v929 = vcvt.s32.f32 %v897
    %v930 = vcvt.s32.f32 %v898
    %v931 = vcvt.s32.f32 %v899
    %v932 = vcvt.s32.f32 %v900
    %v933 = vcvt.s32.f32 %v901
    %v934 = vcvt.s32.f32 %v902
    %v935 = vcvt.s32.f32 %v903
    %v936 = vcvt.s32.f32 %v904
    %v937 = vcvt.s32.f32 %v905
    %v938 = vcvt.s32.f32 %v906
    %v939 = vpack.c.bf16 %v107, %v106
    %v940 = vpack.c.bf16 %v109, %v108
    %v941 = vpack.c.bf16 %v111, %v110
    %v942 = vpack.c.bf16 %v113, %v112
    %v943 = vpack.c.bf16 %v115, %v114
    %v944 = vpack.c.bf16 %v117, %v116
    %v945 = vpack.c.bf16 %v119, %v118
    %v946 = vpack.c.bf16 %v121, %v120
    %v947 = vpack.c.bf16 %v123, %v122
    %v948 = vpack.c.bf16 %v125, %v124
    %v949 = vpack.c.bf16 %v127, %v126
    %v950 = vpack.c.bf16 %v129, %v128
    %v951 = vpack.c.bf16 %v131, %v130
    %v952 = vpack.c.bf16 %v133, %v132
    %v953 = vpack.c.bf16 %v135, %v134
    %v954 = vpack.c.bf16 %v137, %v136
    %v955 = vld [vmem:[#allocation7] sm:$0xf]
    %v956 = vld [vmem:[#allocation7 + $0x4] sm:$0xf]
    %v957 = vld [vmem:[#allocation7 + $0x8] sm:$0xf]
    %v958 = vld [vmem:[#allocation7 + $0xc] sm:$0xf]
    %v959 = vld [vmem:[#allocation7 + $0x10] sm:$0xf]
    %v960 = vld [vmem:[#allocation7 + $0x14] sm:$0xf]
    %v961 = vld [vmem:[#allocation7 + $0x18] sm:$0xf]
    %v962 = vld [vmem:[#allocation7 + $0x1c] sm:$0xf]
    %v963 = vld [vmem:[#allocation7 + $0x20] sm:$0xf]
    %v964 = vld [vmem:[#allocation7 + $0x24] sm:$0xf]
    %v965 = vld [vmem:[#allocation7 + $0x28] sm:$0xf]
    %v966 = vld [vmem:[#allocation7 + $0x2c] sm:$0xf]
    %v967 = vld [vmem:[#allocation7 + $0x30] sm:$0xf]
    %v968 = vld [vmem:[#allocation7 + $0x34] sm:$0xf]
    %v969 = vld [vmem:[#allocation7 + $0x38] sm:$0xf]
    %v970 = vld [vmem:[#allocation7 + $0x3c] sm:$0xf]
    %v971 = vld [vmem:[%s4] sm:$0x1]
    %v973 = vlaneseq
    %v974 = vshrl.u32 %v973, 7
    %v975 = vsub.s32 0, %v974
    %v976 = vrot.slane %v971, %v975
    %v994 = vunpack.c.l.b16 %v955
    %v995 = vunpack.c.l.b16 %v956
    %v996 = vunpack.c.l.b16 %v957
    %v997 = vunpack.c.l.b16 %v958
    %v998 = vunpack.c.l.b16 %v959
    %v999 = vunpack.c.l.b16 %v960
    %v1000 = vunpack.c.l.b16 %v961
    %v1001 = vunpack.c.l.b16 %v962
    %v1002 = vunpack.c.l.b16 %v963
    %v1003 = vunpack.c.l.b16 %v964
    %v1004 = vunpack.c.l.b16 %v965
    %v1005 = vunpack.c.l.b16 %v966
    %v1006 = vunpack.c.l.b16 %v967
    %v1007 = vunpack.c.l.b16 %v968
    %v1008 = vunpack.c.l.b16 %v969
    %v1009 = vunpack.c.l.b16 %v970
    %v1010 = vpack.c.b16 %v995, %v994
    %v1011 = vpack.c.b16 %v997, %v996
    %v1012 = vpack.c.b16 %v999, %v998
    %v1013 = vpack.c.b16 %v1001, %v1000
    %v1014 = vpack.c.b16 %v1003, %v1002
    %v1015 = vpack.c.b16 %v1005, %v1004
    %v1016 = vpack.c.b16 %v1007, %v1006
    %v1017 = vpack.c.b16 %v1009, %v1008
    %1026 = vmatprep.subr.bf16.mxu0 0
    %1027 = vmatpush1.bf16.msra.mxu0 %v1010
    %1028 = vmatprep.subr.bf16.mxu0 0
    %1029 = vmatpush1.bf16.msra.mxu0 %v1011
    %1030 = vmatprep.subr.bf16.mxu0 0
    %1031 = vmatpush1.bf16.msra.mxu0 %v1012
    %1032 = vmatprep.subr.bf16.mxu0 0
    %1033 = vmatpush1.bf16.msra.mxu0 %v1013
    %1034 = vmatprep.subr.bf16.mxu0 0
    %1035 = vmatpush1.bf16.msra.mxu0 %v1014
    %1036 = vmatprep.subr.bf16.mxu0 0
    %1037 = vmatpush1.bf16.msra.mxu0 %v1015
    %1038 = vmatprep.subr.bf16.mxu0 0
    %1039 = vmatpush1.bf16.msra.mxu0 %v1016
    %1040 = vmatprep.subr.bf16.mxu0 0
    %1041 = vmatpush1.bf16.msra.mxu0 %v1017
    %1042 = vmatprep.subr.bf16.mxu0 0
    %1043 = vmatpush1.bf16.msra.mxu0 0
    %1044 = vmatprep.subr.bf16.mxu0 0
    %1045 = vmatpush1.bf16.msra.mxu0 0
    %1046 = vmatprep.subr.bf16.mxu0 0
    %1047 = vmatpush1.bf16.msra.mxu0 0
    %1048 = vmatprep.subr.bf16.mxu0 0
    %1049 = vmatpush1.bf16.msra.mxu0 0
    %1050 = vmatprep.subr.bf16.mxu0 0
    %1051 = vmatpush1.bf16.msra.mxu0 0
    %1052 = vmatprep.subr.bf16.mxu0 0
    %1053 = vmatpush1.bf16.msra.mxu0 0
    %1054 = vmatprep.subr.bf16.mxu0 0
    %1055 = vmatpush1.bf16.msra.mxu0 0
    %1056 = vmatprep.subr.bf16.mxu0 0
    %1057 = vmatpush1.bf16.msra.mxu0 0
    %1058 = vmatprep.mubr.bf16.mxu0 0
    %1059 = vmatmul.mubr.bf16.gmra.mrb[0].mxu0 %v939
    %v1060 = vpop.f32.mrb[0].mxu0
    %v1061 = vadd.f32 %v976, %v1060
    %v1062 = vpop.f32.mrb[0].mxu0
    %v1063 = vpop.f32.mrb[0].mxu0
    %v1064 = vadd.f32 %v976, %v1063
    %v1065 = vpop.f32.mrb[0].mxu0
    %1066 = vmatprep.mubr.bf16.mxu0 0
    %1067 = vmatmul.mubr.bf16.gmra.mrb[0].mxu0 %v940
    %v1068 = vpop.f32.mrb[0].mxu0
    %v1069 = vadd.f32 %v976, %v1068
    %v1070 = vpop.f32.mrb[0].mxu0
    %v1071 = vpop.f32.mrb[0].mxu0
    %v1072 = vadd.f32 %v976, %v1071
    %v1073 = vpop.f32.mrb[0].mxu0
    %1074 = vmatprep.mubr.bf16.mxu0 0
    %1075 = vmatmul.mubr.bf16.gmra.mrb[0].mxu0 %v941
    %v1076 = vpop.f32.mrb[0].mxu0
    %v1077 = vadd.f32 %v976, %v1076
    %v1078 = vpop.f32.mrb[0].mxu0
    %v1079 = vpop.f32.mrb[0].mxu0
    %v1080 = vadd.f32 %v976, %v1079
    %v1081 = vpop.f32.mrb[0].mxu0
    %1082 = vmatprep.mubr.bf16.mxu0 0
    %1083 = vmatmul.mubr.bf16.gmra.mrb[0].mxu0 %v942
    %v1084 = vpop.f32.mrb[0].mxu0
    %v1085 = vadd.f32 %v976, %v1084
    %v1086 = vpop.f32.mrb[0].mxu0
    %v1087 = vpop.f32.mrb[0].mxu0
    %v1088 = vadd.f32 %v976, %v1087
    %v1089 = vpop.f32.mrb[0].mxu0
    %1090 = vmatprep.mubr.bf16.mxu0 0
    %1091 = vmatmul.mubr.bf16.gmra.mrb[0].mxu0 %v943
    %v1092 = vpop.f32.mrb[0].mxu0
    %v1093 = vadd.f32 %v976, %v1092
    %v1094 = vpop.f32.mrb[0].mxu0
    %v1095 = vpop.f32.mrb[0].mxu0
    %v1096 = vadd.f32 %v976, %v1095
    %v1097 = vpop.f32.mrb[0].mxu0
    %1098 = vmatprep.mubr.bf16.mxu0 0
    %1099 = vmatmul.mubr.bf16.gmra.mrb[0].mxu0 %v944
    %v1100 = vpop.f32.mrb[0].mxu0
    %v1101 = vadd.f32 %v976, %v1100
    %v1102 = vpop.f32.mrb[0].mxu0
    %v1103 = vpop.f32.mrb[0].mxu0
    %v1104 = vadd.f32 %v976, %v1103
    %v1105 = vpop.f32.mrb[0].mxu0
    %1106 = vmatprep.mubr.bf16.mxu0 0
    %1107 = vmatmul.mubr.bf16.gmra.mrb[0].mxu0 %v945
    %v1108 = vpop.f32.mrb[0].mxu0
    %v1109 = vadd.f32 %v976, %v1108
    %v1110 = vpop.f32.mrb[0].mxu0
    %v1111 = vpop.f32.mrb[0].mxu0
    %v1112 = vadd.f32 %v976, %v1111
    %v1113 = vpop.f32.mrb[0].mxu0
    %1114 = vmatprep.mubr.bf16.mxu0 0
    %1115 = vmatmul.mubr.bf16.gmra.mrb[0].mxu0 %v946
    %v1116 = vpop.f32.mrb[0].mxu0
    %v1117 = vadd.f32 %v976, %v1116
    %v1118 = vpop.f32.mrb[0].mxu0
    %v1119 = vpop.f32.mrb[0].mxu0
    %v1120 = vadd.f32 %v976, %v1119
    %v1121 = vpop.f32.mrb[0].mxu0
    %1122 = vmatprep.mubr.bf16.mxu0 0
    %1123 = vmatmul.mubr.bf16.gmra.mrb[0].mxu0 %v947
    %v1124 = vpop.f32.mrb[0].mxu0
    %v1125 = vadd.f32 %v976, %v1124
    %v1126 = vpop.f32.mrb[0].mxu0
    %v1127 = vpop.f32.mrb[0].mxu0
    %v1128 = vadd.f32 %v976, %v1127
    %v1129 = vpop.f32.mrb[0].mxu0
    %1130 = vmatprep.mubr.bf16.mxu0 0
    %1131 = vmatmul.mubr.bf16.gmra.mrb[0].mxu0 %v948
    %v1132 = vpop.f32.mrb[0].mxu0
    %v1133 = vadd.f32 %v976, %v1132
    %v1134 = vpop.f32.mrb[0].mxu0
    %v1135 = vpop.f32.mrb[0].mxu0
    %v1136 = vadd.f32 %v976, %v1135
    %v1137 = vpop.f32.mrb[0].mxu0
    %1138 = vmatprep.mubr.bf16.mxu0 0
    %1139 = vmatmul.mubr.bf16.gmra.mrb[0].mxu0 %v949
    %v1140 = vpop.f32.mrb[0].mxu0
    %v1141 = vadd.f32 %v976, %v1140
    %v1142 = vpop.f32.mrb[0].mxu0
    %v1143 = vpop.f32.mrb[0].mxu0
    %v1144 = vadd.f32 %v976, %v1143
    %v1145 = vpop.f32.mrb[0].mxu0
    %1146 = vmatprep.mubr.bf16.mxu0 0
    %1147 = vmatmul.mubr.bf16.gmra.mrb[0].mxu0 %v950
    %v1148 = vpop.f32.mrb[0].mxu0
    %v1149 = vadd.f32 %v976, %v1148
    %v1150 = vpop.f32.mrb[0].mxu0
    %v1151 = vpop.f32.mrb[0].mxu0
    %v1152 = vadd.f32 %v976, %v1151
    %v1153 = vpop.f32.mrb[0].mxu0
    %1154 = vmatprep.mubr.bf16.mxu0 0
    %1155 = vmatmul.mubr.bf16.gmra.mrb[0].mxu0 %v951
    %v1156 = vpop.f32.mrb[0].mxu0
    %v1157 = vadd.f32 %v976, %v1156
    %v1158 = vpop.f32.mrb[0].mxu0
    %v1159 = vpop.f32.mrb[0].mxu0
    %v1160 = vadd.f32 %v976, %v1159
    %v1161 = vpop.f32.mrb[0].mxu0
    %1162 = vmatprep.mubr.bf16.mxu0 0
    %1163 = vmatmul.mubr.bf16.gmra.mrb[0].mxu0 %v952
    %v1164 = vpop.f32.mrb[0].mxu0
    %v1165 = vadd.f32 %v976, %v1164
    %v1166 = vpop.f32.mrb[0].mxu0
    %v1167 = vpop.f32.mrb[0].mxu0
    %v1168 = vadd.f32 %v976, %v1167
    %v1169 = vpop.f32.mrb[0].mxu0
    %1170 = vmatprep.mubr.bf16.mxu0 0
    %1171 = vmatmul.mubr.bf16.gmra.mrb[0].mxu0 %v953
    %v1172 = vpop.f32.mrb[0].mxu0
    %v1173 = vadd.f32 %v976, %v1172
    %v1174 = vpop.f32.mrb[0].mxu0
    %v1175 = vpop.f32.mrb[0].mxu0
    %v1176 = vadd.f32 %v976, %v1175
    %v1177 = vpop.f32.mrb[0].mxu0
    %1178 = vmatprep.mubr.bf16.mxu0 0
    %1179 = vmatmul.mubr.bf16.gmra.mrb[0].mxu0 %v954
    %v1180 = vpop.f32.mrb[0].mxu0
    %v1181 = vadd.f32 %v976, %v1180
    %v1182 = vpop.f32.mrb[0].mxu0
    %v1183 = vpop.f32.mrb[0].mxu0
    %v1184 = vadd.f32 %v976, %v1183
    %v1185 = vpop.f32.mrb[0].mxu0
    %1186 = vdwg.mxu0
    %v1187 = vmul.f32 %v136, %v619
    %v1188 = vmul.f32 %v137, %v620
    %v1189 = vmul.f32 %v106, %v621
    %v1190 = vmul.f32 %v107, %v622
    %v1191 = vmul.f32 %v108, %v623
    %v1192 = vmul.f32 %v109, %v624
    %v1193 = vmul.f32 %v110, %v625
    %v1194 = vmul.f32 %v111, %v626
    %v1195 = vmul.f32 %v112, %v627
    %v1196 = vmul.f32 %v113, %v628
    %v1197 = vmul.f32 %v114, %v629
    %v1198 = vmul.f32 %v115, %v630
    %v1199 = vmul.f32 %v116, %v631
    %v1200 = vmul.f32 %v117, %v632
    %v1201 = vmul.f32 %v118, %v633
    %v1202 = vmul.f32 %v119, %v634
    %v1203 = vmul.f32 %v120, %v635
    %v1204 = vmul.f32 %v121, %v636
    %v1205 = vmul.f32 %v122, %v637
    %v1206 = vmul.f32 %v123, %v638
    %v1207 = vmul.f32 %v124, %v639
    %v1208 = vmul.f32 %v125, %v640
    %v1209 = vmul.f32 %v126, %v641
    %v1210 = vmul.f32 %v127, %v642
    %v1211 = vmul.f32 %v128, %v643
    %v1212 = vmul.f32 %v129, %v644
    %v1213 = vmul.f32 %v130, %v645
    %v1214 = vmul.f32 %v131, %v646
    %v1215 = vmul.f32 %v132, %v647
    %v1216 = vmul.f32 %v133, %v648
    %v1217 = vmul.f32 %v134, %v649
    %v1218 = vmul.f32 %v135, %v650
    %v1219 = vmul.f32 %v108, %v715
    %v1220 = vmul.f32 %v109, %v716
    %v1221 = vmul.f32 %v110, %v717
    %v1222 = vmul.f32 %v111, %v718
    %v1223 = vmul.f32 %v112, %v719
    %v1224 = vmul.f32 %v113, %v720
    %v1225 = vmul.f32 %v114, %v721
    %v1226 = vmul.f32 %v115, %v722
    %v1227 = vmul.f32 %v116, %v723
    %v1228 = vmul.f32 %v117, %v724
    %v1229 = vmul.f32 %v118, %v725
    %v1230 = vmul.f32 %v119, %v726
    %v1231 = vmul.f32 %v120, %v727
    %v1232 = vmul.f32 %v121, %v728
    %v1233 = vmul.f32 %v122, %v729
    %v1234 = vmul.f32 %v123, %v730
    %v1235 = vmul.f32 %v124, %v731
    %v1236 = vmul.f32 %v125, %v732
    %v1237 = vmul.f32 %v126, %v733
    %v1238 = vmul.f32 %v127, %v734
    %v1239 = vmul.f32 %v128, %v735
    %v1240 = vmul.f32 %v129, %v736
    %v1241 = vmul.f32 %v130, %v737
    %v1242 = vmul.f32 %v131, %v738
    %v1243 = vmul.f32 %v132, %v739
    %v1244 = vmul.f32 %v133, %v740
    %v1245 = vmul.f32 %v134, %v741
    %v1246 = vmul.f32 %v135, %v742
    %v1247 = vmul.f32 %v136, %v743
    %v1248 = vmul.f32 %v137, %v744
    %v1249 = vmul.f32 %v106, %v745
    %v1250 = vmul.f32 %v107, %v746
    %v1251 = vld [vmem:[#allocation5] sm:$0x1]
    %v1252 = vlaneseq
    %v1253 = vshrl.u32 %v1252, 7
    %v1254 = vsub.s32 0, %v1253
    %v1255 = vrot.slane %v1251, %v1254
    %v1256 = vmul.f32 %v1187, %v1255
    %v1257 = vmul.f32 %v1188, %v1255
    %v1258 = vmul.f32 %v1189, %v1255
    %v1259 = vmul.f32 %v1190, %v1255
    %v1260 = vmul.f32 %v1191, %v1255
    %v1261 = vmul.f32 %v1192, %v1255
    %v1262 = vmul.f32 %v1193, %v1255
    %v1263 = vmul.f32 %v1194, %v1255
    %v1264 = vmul.f32 %v1195, %v1255
    %v1265 = vmul.f32 %v1196, %v1255
    %v1266 = vmul.f32 %v1197, %v1255
    %v1267 = vmul.f32 %v1198, %v1255
    %v1268 = vmul.f32 %v1199, %v1255
    %v1269 = vmul.f32 %v1200, %v1255
    %v1270 = vmul.f32 %v1201, %v1255
    %v1271 = vmul.f32 %v1202, %v1255
    %v1272 = vmul.f32 %v1203, %v1255
    %v1273 = vmul.f32 %v1204, %v1255
    %v1274 = vmul.f32 %v1205, %v1255
    %v1275 = vmul.f32 %v1206, %v1255
    %v1276 = vmul.f32 %v1207, %v1255
    %v1277 = vmul.f32 %v1208, %v1255
    %v1278 = vmul.f32 %v1209, %v1255
    %v1279 = vmul.f32 %v1210, %v1255
    %v1280 = vmul.f32 %v1211, %v1255
    %v1281 = vmul.f32 %v1212, %v1255
    %v1282 = vmul.f32 %v1213, %v1255
    %v1283 = vmul.f32 %v1214, %v1255
    %v1284 = vmul.f32 %v1215, %v1255
    %v1285 = vmul.f32 %v1216, %v1255
    %v1286 = vmul.f32 %v1217, %v1255
    %v1287 = vmul.f32 %v1218, %v1255
    %v1288 = vld [vmem:[#allocation5 + $0x3] sm:$0x1]
    %v1289 = vlaneseq
    %v1290 = vshrl.u32 %v1289, 7
    %v1291 = vsub.s32 0, %v1290
    %v1292 = vrot.slane %v1288, %v1291
    %v1293 = vmul.f32 %v106, %v1292
    %v1294 = vmul.f32 %v107, %v1292
    %v1295 = vmul.f32 %v108, %v1292
    %v1296 = vmul.f32 %v109, %v1292
    %v1297 = vmul.f32 %v110, %v1292
    %v1298 = vmul.f32 %v111, %v1292
    %v1299 = vmul.f32 %v112, %v1292
    %v1300 = vmul.f32 %v113, %v1292
    %v1301 = vmul.f32 %v114, %v1292
    %v1302 = vmul.f32 %v115, %v1292
    %v1303 = vmul.f32 %v116, %v1292
    %v1304 = vmul.f32 %v117, %v1292
    %v1305 = vmul.f32 %v118, %v1292
    %v1306 = vmul.f32 %v119, %v1292
    %v1307 = vmul.f32 %v120, %v1292
    %v1308 = vmul.f32 %v121, %v1292
    %v1309 = vmul.f32 %v122, %v1292
    %v1310 = vmul.f32 %v123, %v1292
    %v1311 = vmul.f32 %v124, %v1292
    %v1312 = vmul.f32 %v125, %v1292
    %v1313 = vmul.f32 %v126, %v1292
    %v1314 = vmul.f32 %v127, %v1292
    %v1315 = vmul.f32 %v128, %v1292
    %v1316 = vmul.f32 %v129, %v1292
    %v1317 = vmul.f32 %v130, %v1292
    %v1318 = vmul.f32 %v131, %v1292
    %v1319 = vmul.f32 %v132, %v1292
    %v1320 = vmul.f32 %v133, %v1292
    %v1321 = vmul.f32 %v134, %v1292
    %v1322 = vmul.f32 %v135, %v1292
    %v1323 = vmul.f32 %v136, %v1292
    %v1324 = vmul.f32 %v137, %v1292
    %v1325 = vadd.f32 %v1256, %v1293
    %v1326 = vadd.f32 %v1257, %v1294
    %v1327 = vadd.f32 %v1258, %v1295
    %v1328 = vadd.f32 %v1259, %v1296
    %v1329 = vadd.f32 %v1260, %v1297
    %v1330 = vadd.f32 %v1261, %v1298
    %v1331 = vadd.f32 %v1262, %v1299
    %v1332 = vadd.f32 %v1263, %v1300
    %v1333 = vadd.f32 %v1264, %v1301
    %v1334 = vadd.f32 %v1265, %v1302
    %v1335 = vadd.f32 %v1266, %v1303
    %v1336 = vadd.f32 %v1267, %v1304
    %v1337 = vadd.f32 %v1268, %v1305
    %v1338 = vadd.f32 %v1269, %v1306
    %v1339 = vadd.f32 %v1270, %v1307
    %v1340 = vadd.f32 %v1271, %v1308
    %v1341 = vadd.f32 %v1272, %v1309
    %v1342 = vadd.f32 %v1273, %v1310
    %v1343 = vadd.f32 %v1274, %v1311
    %v1344 = vadd.f32 %v1275, %v1312
    %v1345 = vadd.f32 %v1276, %v1313
    %v1346 = vadd.f32 %v1277, %v1314
    %v1347 = vadd.f32 %v1278, %v1315
    %v1348 = vadd.f32 %v1279, %v1316
    %v1349 = vadd.f32 %v1280, %v1317
    %v1350 = vadd.f32 %v1281, %v1318
    %v1351 = vadd.f32 %v1282, %v1319
    %v1352 = vadd.f32 %v1283, %v1320
    %v1353 = vadd.f32 %v1284, %v1321
    %v1354 = vadd.f32 %v1285, %v1322
    %v1355 = vadd.f32 %v1286, %v1323
    %v1356 = vadd.f32 %v1287, %v1324
    %v1357 = vld [vmem:[#allocation5 + $0x6] sm:$0x1]
    %v1358 = vlaneseq
    %v1359 = vshrl.u32 %v1358, 7
    %v1360 = vsub.s32 0, %v1359
    %v1361 = vrot.slane %v1357, %v1360
    %v1362 = vmul.f32 %v1219, %v1361
    %v1363 = vmul.f32 %v1220, %v1361
    %v1364 = vmul.f32 %v1221, %v1361
    %v1365 = vmul.f32 %v1222, %v1361
    %v1366 = vmul.f32 %v1223, %v1361
    %v1367 = vmul.f32 %v1224, %v1361
    %v1368 = vmul.f32 %v1225, %v1361
    %v1369 = vmul.f32 %v1226, %v1361
    %v1370 = vmul.f32 %v1227, %v1361
    %v1371 = vmul.f32 %v1228, %v1361
    %v1372 = vmul.f32 %v1229, %v1361
    %v1373 = vmul.f32 %v1230, %v1361
    %v1374 = vmul.f32 %v1231, %v1361
    %v1375 = vmul.f32 %v1232, %v1361
    %v1376 = vmul.f32 %v1233, %v1361
    %v1377 = vmul.f32 %v1234, %v1361
    %v1378 = vmul.f32 %v1235, %v1361
    %v1379 = vmul.f32 %v1236, %v1361
    %v1380 = vmul.f32 %v1237, %v1361
    %v1381 = vmul.f32 %v1238, %v1361
    %v1382 = vmul.f32 %v1239, %v1361
    %v1383 = vmul.f32 %v1240, %v1361
    %v1384 = vmul.f32 %v1241, %v1361
    %v1385 = vmul.f32 %v1242, %v1361
    %v1386 = vmul.f32 %v1243, %v1361
    %v1387 = vmul.f32 %v1244, %v1361
    %v1388 = vmul.f32 %v1245, %v1361
    %v1389 = vmul.f32 %v1246, %v1361
    %v1390 = vmul.f32 %v1247, %v1361
    %v1391 = vmul.f32 %v1248, %v1361
    %v1392 = vmul.f32 %v1249, %v1361
    %v1393 = vmul.f32 %v1250, %v1361
    %v1394 = vadd.f32 %v1325, %v1362
    %v1395 = vadd.f32 %v1326, %v1363
    %v1396 = vadd.f32 %v1327, %v1364
    %v1397 = vadd.f32 %v1328, %v1365
    %v1398 = vadd.f32 %v1329, %v1366
    %v1399 = vadd.f32 %v1330, %v1367
    %v1400 = vadd.f32 %v1331, %v1368
    %v1401 = vadd.f32 %v1332, %v1369
    %v1402 = vadd.f32 %v1333, %v1370
    %v1403 = vadd.f32 %v1334, %v1371
    %v1404 = vadd.f32 %v1335, %v1372
    %v1405 = vadd.f32 %v1336, %v1373
    %v1406 = vadd.f32 %v1337, %v1374
    %v1407 = vadd.f32 %v1338, %v1375
    %v1408 = vadd.f32 %v1339, %v1376
    %v1409 = vadd.f32 %v1340, %v1377
    %v1410 = vadd.f32 %v1341, %v1378
    %v1411 = vadd.f32 %v1342, %v1379
    %v1412 = vadd.f32 %v1343, %v1380
    %v1413 = vadd.f32 %v1344, %v1381
    %v1414 = vadd.f32 %v1345, %v1382
    %v1415 = vadd.f32 %v1346, %v1383
    %v1416 = vadd.f32 %v1347, %v1384
    %v1417 = vadd.f32 %v1348, %v1385
    %v1418 = vadd.f32 %v1349, %v1386
    %v1419 = vadd.f32 %v1350, %v1387
    %v1420 = vadd.f32 %v1351, %v1388
    %v1421 = vadd.f32 %v1352, %v1389
    %v1422 = vadd.f32 %v1353, %v1390
    %v1423 = vadd.f32 %v1354, %v1391
    %v1424 = vadd.f32 %v1355, %v1392
    %v1425 = vadd.f32 %v1356, %v1393
    %v1426 = vrot.slane %v1394, 7
    %v1427 = vrot.slane %v1395, 7
    %v1428 = vrot.slane %v1396, 7
    %v1429 = vrot.slane %v1397, 7
    %v1430 = vrot.slane %v1398, 7
    %v1431 = vrot.slane %v1399, 7
    %v1432 = vrot.slane %v1400, 7
    %v1433 = vrot.slane %v1401, 7
    %v1434 = vrot.slane %v1402, 7
    %v1435 = vrot.slane %v1403, 7
    %v1436 = vrot.slane %v1404, 7
    %v1437 = vrot.slane %v1405, 7
    %v1438 = vrot.slane %v1406, 7
    %v1439 = vrot.slane %v1407, 7
    %v1440 = vrot.slane %v1408, 7
    %v1441 = vrot.slane %v1409, 7
    %v1442 = vrot.slane %v1410, 7
    %v1443 = vrot.slane %v1411, 7
    %v1444 = vrot.slane %v1412, 7
    %v1445 = vrot.slane %v1413, 7
    %v1446 = vrot.slane %v1414, 7
    %v1447 = vrot.slane %v1415, 7
    %v1448 = vrot.slane %v1416, 7
    %v1449 = vrot.slane %v1417, 7
    %v1450 = vrot.slane %v1418, 7
    %v1451 = vrot.slane %v1419, 7
    %v1452 = vrot.slane %v1420, 7
    %v1453 = vrot.slane %v1421, 7
    %v1454 = vrot.slane %v1422, 7
    %v1455 = vrot.slane %v1423, 7
    %v1456 = vrot.slane %v1424, 7
    %v1457 = vrot.slane %v1425, 7
    %vm1458 = vcmp.lt.s32.totalorder %v139, 1
    %v1459 = vsel %vm1458, %v1456, %v1457
    %v1460 = vsel %vm1458, %v1455, %v1456
    %v1461 = vsel %vm1458, %v1454, %v1455
    %v1462 = vsel %vm1458, %v1453, %v1454
    %v1463 = vsel %vm1458, %v1452, %v1453
    %v1464 = vsel %vm1458, %v1451, %v1452
    %v1465 = vsel %vm1458, %v1450, %v1451
    %v1466 = vsel %vm1458, %v1449, %v1450
    %v1467 = vsel %vm1458, %v1448, %v1449
    %v1468 = vsel %vm1458, %v1447, %v1448
    %v1469 = vsel %vm1458, %v1446, %v1447
    %v1470 = vsel %vm1458, %v1445, %v1446
    %v1471 = vsel %vm1458, %v1444, %v1445
    %v1472 = vsel %vm1458, %v1443, %v1444
    %v1473 = vsel %vm1458, %v1442, %v1443
    %v1474 = vsel %vm1458, %v1441, %v1442
    %v1475 = vsel %vm1458, %v1440, %v1441
    %v1476 = vsel %vm1458, %v1439, %v1440
    %v1477 = vsel %vm1458, %v1438, %v1439
    %v1478 = vsel %vm1458, %v1437, %v1438
    %v1479 = vsel %vm1458, %v1436, %v1437
    %v1480 = vsel %vm1458, %v1435, %v1436
    %v1481 = vsel %vm1458, %v1434, %v1435
    %v1482 = vsel %vm1458, %v1433, %v1434
    %v1483 = vsel %vm1458, %v1432, %v1433
    %v1484 = vsel %vm1458, %v1431, %v1432
    %v1485 = vsel %vm1458, %v1430, %v1431
    %v1486 = vsel %vm1458, %v1429, %v1430
    %v1487 = vsel %vm1458, %v1428, %v1429
    %v1488 = vsel %vm1458, %v1427, %v1428
    %v1489 = vsel %vm1458, %v1426, %v1427
    %v1490 = vsel %vm1458, %v1457, %v1426
    %v1491 = vmul.f32 %v1490, %v811
    %v1492 = vmul.f32 %v1489, %v812
    %v1493 = vmul.f32 %v1488, %v813
    %v1494 = vmul.f32 %v1487, %v814
    %v1495 = vmul.f32 %v1486, %v815
    %v1496 = vmul.f32 %v1485, %v816
    %v1497 = vmul.f32 %v1484, %v817
    %v1498 = vmul.f32 %v1483, %v818
    %v1499 = vmul.f32 %v1482, %v819
    %v1500 = vmul.f32 %v1481, %v820
    %v1501 = vmul.f32 %v1480, %v821
    %v1502 = vmul.f32 %v1479, %v822
    %v1503 = vmul.f32 %v1478, %v823
    %v1504 = vmul.f32 %v1477, %v824
    %v1505 = vmul.f32 %v1476, %v825
    %v1506 = vmul.f32 %v1475, %v826
    %v1507 = vmul.f32 %v1474, %v827
    %v1508 = vmul.f32 %v1473, %v828
    %v1509 = vmul.f32 %v1472, %v829
    %v1510 = vmul.f32 %v1471, %v830
    %v1511 = vmul.f32 %v1470, %v831
    %v1512 = vmul.f32 %v1469, %v832
    %v1513 = vmul.f32 %v1468, %v833
    %v1514 = vmul.f32 %v1467, %v834
    %v1515 = vmul.f32 %v1466, %v835
    %v1516 = vmul.f32 %v1465, %v836
    %v1517 = vmul.f32 %v1464, %v837
    %v1518 = vmul.f32 %v1463, %v838
    %v1519 = vmul.f32 %v1462, %v839
    %v1520 = vmul.f32 %v1461, %v840
    %v1521 = vmul.f32 %v1460, %v841
    %v1522 = vmul.f32 %v1459, %v842
    %v1523 = vld [vmem:[#allocation5 + $0x2] sm:$0x1]
    %v1524 = vlaneseq
    %v1525 = vshrl.u32 %v1524, 7
    %v1526 = vsub.s32 0, %v1525
    %v1527 = vrot.slane %v1523, %v1526
    %v1528 = vmul.f32 %v1187, %v1527
    %v1529 = vmul.f32 %v1188, %v1527
    %v1530 = vmul.f32 %v1189, %v1527
    %v1531 = vmul.f32 %v1190, %v1527
    %v1532 = vmul.f32 %v1191, %v1527
    %v1533 = vmul.f32 %v1192, %v1527
    %v1534 = vmul.f32 %v1193, %v1527
    %v1535 = vmul.f32 %v1194, %v1527
    %v1536 = vmul.f32 %v1195, %v1527
    %v1537 = vmul.f32 %v1196, %v1527
    %v1538 = vmul.f32 %v1197, %v1527
    %v1539 = vmul.f32 %v1198, %v1527
    %v1540 = vmul.f32 %v1199, %v1527
    %v1541 = vmul.f32 %v1200, %v1527
    %v1542 = vmul.f32 %v1201, %v1527
    %v1543 = vmul.f32 %v1202, %v1527
    %v1544 = vmul.f32 %v1203, %v1527
    %v1545 = vmul.f32 %v1204, %v1527
    %v1546 = vmul.f32 %v1205, %v1527
    %v1547 = vmul.f32 %v1206, %v1527
    %v1548 = vmul.f32 %v1207, %v1527
    %v1549 = vmul.f32 %v1208, %v1527
    %v1550 = vmul.f32 %v1209, %v1527
    %v1551 = vmul.f32 %v1210, %v1527
    %v1552 = vmul.f32 %v1211, %v1527
    %v1553 = vmul.f32 %v1212, %v1527
    %v1554 = vmul.f32 %v1213, %v1527
    %v1555 = vmul.f32 %v1214, %v1527
    %v1556 = vmul.f32 %v1215, %v1527
    %v1557 = vmul.f32 %v1216, %v1527
    %v1558 = vmul.f32 %v1217, %v1527
    %v1559 = vmul.f32 %v1218, %v1527
    %v1560 = vld [vmem:[#allocation5 + $0x5] sm:$0x1]
    %v1561 = vlaneseq
    %v1562 = vshrl.u32 %v1561, 7
    %v1563 = vsub.s32 0, %v1562
    %v1564 = vrot.slane %v1560, %v1563
    %v1565 = vmul.f32 %v106, %v1564
    %v1566 = vmul.f32 %v107, %v1564
    %v1567 = vmul.f32 %v108, %v1564
    %v1568 = vmul.f32 %v109, %v1564
    %v1569 = vmul.f32 %v110, %v1564
    %v1570 = vmul.f32 %v111, %v1564
    %v1571 = vmul.f32 %v112, %v1564
    %v1572 = vmul.f32 %v113, %v1564
    %v1573 = vmul.f32 %v114, %v1564
    %v1574 = vmul.f32 %v115, %v1564
    %v1575 = vmul.f32 %v116, %v1564
    %v1576 = vmul.f32 %v117, %v1564
    %v1577 = vmul.f32 %v118, %v1564
    %v1578 = vmul.f32 %v119, %v1564
    %v1579 = vmul.f32 %v120, %v1564
    %v1580 = vmul.f32 %v121, %v1564
    %v1581 = vmul.f32 %v122, %v1564
    %v1582 = vmul.f32 %v123, %v1564
    %v1583 = vmul.f32 %v124, %v1564
    %v1584 = vmul.f32 %v125, %v1564
    %v1585 = vmul.f32 %v126, %v1564
    %v1586 = vmul.f32 %v127, %v1564
    %v1587 = vmul.f32 %v128, %v1564
    %v1588 = vmul.f32 %v129, %v1564
    %v1589 = vmul.f32 %v130, %v1564
    %v1590 = vmul.f32 %v131, %v1564
    %v1591 = vmul.f32 %v132, %v1564
    %v1592 = vmul.f32 %v133, %v1564
    %v1593 = vmul.f32 %v134, %v1564
    %v1594 = vmul.f32 %v135, %v1564
    %v1595 = vmul.f32 %v136, %v1564
    %v1596 = vmul.f32 %v137, %v1564
    %v1597 = vadd.f32 %v1528, %v1565
    %v1598 = vadd.f32 %v1529, %v1566
    %v1599 = vadd.f32 %v1530, %v1567
    %v1600 = vadd.f32 %v1531, %v1568
    %v1601 = vadd.f32 %v1532, %v1569
    %v1602 = vadd.f32 %v1533, %v1570
    %v1603 = vadd.f32 %v1534, %v1571
    %v1604 = vadd.f32 %v1535, %v1572
    %v1605 = vadd.f32 %v1536, %v1573
    %v1606 = vadd.f32 %v1537, %v1574
    %v1607 = vadd.f32 %v1538, %v1575
    %v1608 = vadd.f32 %v1539, %v1576
    %v1609 = vadd.f32 %v1540, %v1577
    %v1610 = vadd.f32 %v1541, %v1578
    %v1611 = vadd.f32 %v1542, %v1579
    %v1612 = vadd.f32 %v1543, %v1580
    %v1613 = vadd.f32 %v1544, %v1581
    %v1614 = vadd.f32 %v1545, %v1582
    %v1615 = vadd.f32 %v1546, %v1583
    %v1616 = vadd.f32 %v1547, %v1584
    %v1617 = vadd.f32 %v1548, %v1585
    %v1618 = vadd.f32 %v1549, %v1586
    %v1619 = vadd.f32 %v1550, %v1587
    %v1620 = vadd.f32 %v1551, %v1588
    %v1621 = vadd.f32 %v1552, %v1589
    %v1622 = vadd.f32 %v1553, %v1590
    %v1623 = vadd.f32 %v1554, %v1591
    %v1624 = vadd.f32 %v1555, %v1592
    %v1625 = vadd.f32 %v1556, %v1593
    %v1626 = vadd.f32 %v1557, %v1594
    %v1627 = vadd.f32 %v1558, %v1595
    %v1628 = vadd.f32 %v1559, %v1596
    %v1629 = vld [vmem:[#allocation5 + $0x8] sm:$0x1]
    %v1630 = vlaneseq
    %v1631 = vshrl.u32 %v1630, 7
    %v1632 = vsub.s32 0, %v1631
    %v1633 = vrot.slane %v1629, %v1632
    %v1634 = vmul.f32 %v1219, %v1633
    %v1635 = vmul.f32 %v1220, %v1633
    %v1636 = vmul.f32 %v1221, %v1633
    %v1637 = vmul.f32 %v1222, %v1633
    %v1638 = vmul.f32 %v1223, %v1633
    %v1639 = vmul.f32 %v1224, %v1633
    %v1640 = vmul.f32 %v1225, %v1633
    %v1641 = vmul.f32 %v1226, %v1633
    %v1642 = vmul.f32 %v1227, %v1633
    %v1643 = vmul.f32 %v1228, %v1633
    %v1644 = vmul.f32 %v1229, %v1633
    %v1645 = vmul.f32 %v1230, %v1633
    %v1646 = vmul.f32 %v1231, %v1633
    %v1647 = vmul.f32 %v1232, %v1633
    %v1648 = vmul.f32 %v1233, %v1633
    %v1649 = vmul.f32 %v1234, %v1633
    %v1650 = vmul.f32 %v1235, %v1633
    %v1651 = vmul.f32 %v1236, %v1633
    %v1652 = vmul.f32 %v1237, %v1633
    %v1653 = vmul.f32 %v1238, %v1633
    %v1654 = vmul.f32 %v1239, %v1633
    %v1655 = vmul.f32 %v1240, %v1633
    %v1656 = vmul.f32 %v1241, %v1633
    %v1657 = vmul.f32 %v1242, %v1633
    %v1658 = vmul.f32 %v1243, %v1633
    %v1659 = vmul.f32 %v1244, %v1633
    %v1660 = vmul.f32 %v1245, %v1633
    %v1661 = vmul.f32 %v1246, %v1633
    %v1662 = vmul.f32 %v1247, %v1633
    %v1663 = vmul.f32 %v1248, %v1633
    %v1664 = vmul.f32 %v1249, %v1633
    %v1665 = vmul.f32 %v1250, %v1633
    %v1666 = vadd.f32 %v1597, %v1634
    %v1667 = vadd.f32 %v1598, %v1635
    %v1668 = vadd.f32 %v1599, %v1636
    %v1669 = vadd.f32 %v1600, %v1637
    %v1670 = vadd.f32 %v1601, %v1638
    %v1671 = vadd.f32 %v1602, %v1639
    %v1672 = vadd.f32 %v1603, %v1640
    %v1673 = vadd.f32 %v1604, %v1641
    %v1674 = vadd.f32 %v1605, %v1642
    %v1675 = vadd.f32 %v1606, %v1643
    %v1676 = vadd.f32 %v1607, %v1644
    %v1677 = vadd.f32 %v1608, %v1645
    %v1678 = vadd.f32 %v1609, %v1646
    %v1679 = vadd.f32 %v1610, %v1647
    %v1680 = vadd.f32 %v1611, %v1648
    %v1681 = vadd.f32 %v1612, %v1649
    %v1682 = vadd.f32 %v1613, %v1650
    %v1683 = vadd.f32 %v1614, %v1651
    %v1684 = vadd.f32 %v1615, %v1652
    %v1685 = vadd.f32 %v1616, %v1653
    %v1686 = vadd.f32 %v1617, %v1654
    %v1687 = vadd.f32 %v1618, %v1655
    %v1688 = vadd.f32 %v1619, %v1656
    %v1689 = vadd.f32 %v1620, %v1657
    %v1690 = vadd.f32 %v1621, %v1658
    %v1691 = vadd.f32 %v1622, %v1659
    %v1692 = vadd.f32 %v1623, %v1660
    %v1693 = vadd.f32 %v1624, %v1661
    %v1694 = vadd.f32 %v1625, %v1662
    %v1695 = vadd.f32 %v1626, %v1663
    %v1696 = vadd.f32 %v1627, %v1664
    %v1697 = vadd.f32 %v1628, %v1665
    %v1698 = vrot.slane %v1666, 1
    %v1699 = vrot.slane %v1667, 1
    %v1700 = vrot.slane %v1668, 1
    %v1701 = vrot.slane %v1669, 1
    %v1702 = vrot.slane %v1670, 1
    %v1703 = vrot.slane %v1671, 1
    %v1704 = vrot.slane %v1672, 1
    %v1705 = vrot.slane %v1673, 1
    %v1706 = vrot.slane %v1674, 1
    %v1707 = vrot.slane %v1675, 1
    %v1708 = vrot.slane %v1676, 1
    %v1709 = vrot.slane %v1677, 1
    %v1710 = vrot.slane %v1678, 1
    %v1711 = vrot.slane %v1679, 1
    %v1712 = vrot.slane %v1680, 1
    %v1713 = vrot.slane %v1681, 1
    %v1714 = vrot.slane %v1682, 1
    %v1715 = vrot.slane %v1683, 1
    %v1716 = vrot.slane %v1684, 1
    %v1717 = vrot.slane %v1685, 1
    %v1718 = vrot.slane %v1686, 1
    %v1719 = vrot.slane %v1687, 1
    %v1720 = vrot.slane %v1688, 1
    %v1721 = vrot.slane %v1689, 1
    %v1722 = vrot.slane %v1690, 1
    %v1723 = vrot.slane %v1691, 1
    %v1724 = vrot.slane %v1692, 1
    %v1725 = vrot.slane %v1693, 1
    %v1726 = vrot.slane %v1694, 1
    %v1727 = vrot.slane %v1695, 1
    %v1728 = vrot.slane %v1696, 1
    %v1729 = vrot.slane %v1697, 1
    %vm1730 = vcmp.lt.s32.totalorder %v139, 7
    %v1731 = vsel %vm1730, %v1728, %v1729
    %v1732 = vsel %vm1730, %v1727, %v1728
    %v1733 = vsel %vm1730, %v1726, %v1727
    %v1734 = vsel %vm1730, %v1725, %v1726
    %v1735 = vsel %vm1730, %v1724, %v1725
    %v1736 = vsel %vm1730, %v1723, %v1724
    %v1737 = vsel %vm1730, %v1722, %v1723
    %v1738 = vsel %vm1730, %v1721, %v1722
    %v1739 = vsel %vm1730, %v1720, %v1721
    %v1740 = vsel %vm1730, %v1719, %v1720
    %v1741 = vsel %vm1730, %v1718, %v1719
    %v1742 = vsel %vm1730, %v1717, %v1718
    %v1743 = vsel %vm1730, %v1716, %v1717
    %v1744 = vsel %vm1730, %v1715, %v1716
    %v1745 = vsel %vm1730, %v1714, %v1715
    %v1746 = vsel %vm1730, %v1713, %v1714
    %v1747 = vsel %vm1730, %v1712, %v1713
    %v1748 = vsel %vm1730, %v1711, %v1712
    %v1749 = vsel %vm1730, %v1710, %v1711
    %v1750 = vsel %vm1730, %v1709, %v1710
    %v1751 = vsel %vm1730, %v1708, %v1709
    %v1752 = vsel %vm1730, %v1707, %v1708
    %v1753 = vsel %vm1730, %v1706, %v1707
    %v1754 = vsel %vm1730, %v1705, %v1706
    %v1755 = vsel %vm1730, %v1704, %v1705
    %v1756 = vsel %vm1730, %v1703, %v1704
    %v1757 = vsel %vm1730, %v1702, %v1703
    %v1758 = vsel %vm1730, %v1701, %v1702
    %v1759 = vsel %vm1730, %v1700, %v1701
    %v1760 = vsel %vm1730, %v1699, %v1700
    %v1761 = vsel %vm1730, %v1698, %v1699
    %v1762 = vsel %vm1730, %v1729, %v1698
    %v1763 = vmul.f32 %v1761, %v907
    %v1764 = vmul.f32 %v1760, %v908
    %v1765 = vmul.f32 %v1759, %v909
    %v1766 = vmul.f32 %v1758, %v910
    %v1767 = vmul.f32 %v1757, %v911
    %v1768 = vmul.f32 %v1756, %v912
    %v1769 = vmul.f32 %v1755, %v913
    %v1770 = vmul.f32 %v1754, %v914
    %v1771 = vmul.f32 %v1753, %v915
    %v1772 = vmul.f32 %v1752, %v916
    %v1773 = vmul.f32 %v1751, %v917
    %v1774 = vmul.f32 %v1750, %v918
    %v1775 = vmul.f32 %v1749, %v919
    %v1776 = vmul.f32 %v1748, %v920
    %v1777 = vmul.f32 %v1747, %v921
    %v1778 = vmul.f32 %v1746, %v922
    %v1779 = vmul.f32 %v1745, %v923
    %v1780 = vmul.f32 %v1744, %v924
    %v1781 = vmul.f32 %v1743, %v925
    %v1782 = vmul.f32 %v1742, %v926
    %v1783 = vmul.f32 %v1741, %v927
    %v1784 = vmul.f32 %v1740, %v928
    %v1785 = vmul.f32 %v1739, %v929
    %v1786 = vmul.f32 %v1738, %v930
    %v1787 = vmul.f32 %v1737, %v931
    %v1788 = vmul.f32 %v1736, %v932
    %v1789 = vmul.f32 %v1735, %v933
    %v1790 = vmul.f32 %v1734, %v934
    %v1791 = vmul.f32 %v1733, %v935
    %v1792 = vmul.f32 %v1732, %v936
    %v1793 = vmul.f32 %v1731, %v937
    %v1794 = vmul.f32 %v1762, %v938
    %v1795 = vld [vmem:[#allocation5 + $0x1] sm:$0x1]
    %v1796 = vlaneseq
    %v1797 = vshrl.u32 %v1796, 7
    %v1798 = vsub.s32 0, %v1797
    %v1799 = vrot.slane %v1795, %v1798
    %v1800 = vmul.f32 %v1187, %v1799
    %v1801 = vmul.f32 %v1188, %v1799
    %v1802 = vmul.f32 %v1189, %v1799
    %v1803 = vmul.f32 %v1190, %v1799
    %v1804 = vmul.f32 %v1191, %v1799
    %v1805 = vmul.f32 %v1192, %v1799
    %v1806 = vmul.f32 %v1193, %v1799
    %v1807 = vmul.f32 %v1194, %v1799
    %v1808 = vmul.f32 %v1195, %v1799
    %v1809 = vmul.f32 %v1196, %v1799
    %v1810 = vmul.f32 %v1197, %v1799
    %v1811 = vmul.f32 %v1198, %v1799
    %v1812 = vmul.f32 %v1199, %v1799
    %v1813 = vmul.f32 %v1200, %v1799
    %v1814 = vmul.f32 %v1201, %v1799
    %v1815 = vmul.f32 %v1202, %v1799
    %v1816 = vmul.f32 %v1203, %v1799
    %v1817 = vmul.f32 %v1204, %v1799
    %v1818 = vmul.f32 %v1205, %v1799
    %v1819 = vmul.f32 %v1206, %v1799
    %v1820 = vmul.f32 %v1207, %v1799
    %v1821 = vmul.f32 %v1208, %v1799
    %v1822 = vmul.f32 %v1209, %v1799
    %v1823 = vmul.f32 %v1210, %v1799
    %v1824 = vmul.f32 %v1211, %v1799
    %v1825 = vmul.f32 %v1212, %v1799
    %v1826 = vmul.f32 %v1213, %v1799
    %v1827 = vmul.f32 %v1214, %v1799
    %v1828 = vmul.f32 %v1215, %v1799
    %v1829 = vmul.f32 %v1216, %v1799
    %v1830 = vmul.f32 %v1217, %v1799
    %v1831 = vmul.f32 %v1218, %v1799
    %v1832 = vld [vmem:[#allocation5 + $0x4] sm:$0x1]
    %v1833 = vlaneseq
    %v1834 = vshrl.u32 %v1833, 7
    %v1835 = vsub.s32 0, %v1834
    %v1836 = vrot.slane %v1832, %v1835
    %v1837 = vmul.f32 %v106, %v1836
    %v1838 = vmul.f32 %v107, %v1836
    %v1839 = vmul.f32 %v108, %v1836
    %v1840 = vmul.f32 %v109, %v1836
    %v1841 = vmul.f32 %v110, %v1836
    %v1842 = vmul.f32 %v111, %v1836
    %v1843 = vmul.f32 %v112, %v1836
    %v1844 = vmul.f32 %v113, %v1836
    %v1845 = vmul.f32 %v114, %v1836
    %v1846 = vmul.f32 %v115, %v1836
    %v1847 = vmul.f32 %v116, %v1836
    %v1848 = vmul.f32 %v117, %v1836
    %v1849 = vmul.f32 %v118, %v1836
    %v1850 = vmul.f32 %v119, %v1836
    %v1851 = vmul.f32 %v120, %v1836
    %v1852 = vmul.f32 %v121, %v1836
    %v1853 = vmul.f32 %v122, %v1836
    %v1854 = vmul.f32 %v123, %v1836
    %v1855 = vmul.f32 %v124, %v1836
    %v1856 = vmul.f32 %v125, %v1836
    %v1857 = vmul.f32 %v126, %v1836
    %v1858 = vmul.f32 %v127, %v1836
    %v1859 = vmul.f32 %v128, %v1836
    %v1860 = vmul.f32 %v129, %v1836
    %v1861 = vmul.f32 %v130, %v1836
    %v1862 = vmul.f32 %v131, %v1836
    %v1863 = vmul.f32 %v132, %v1836
    %v1864 = vmul.f32 %v133, %v1836
    %v1865 = vmul.f32 %v134, %v1836
    %v1866 = vmul.f32 %v135, %v1836
    %v1867 = vmul.f32 %v136, %v1836
    %v1868 = vmul.f32 %v137, %v1836
    %v1869 = vadd.f32 %v1800, %v1837
    %v1870 = vadd.f32 %v1801, %v1838
    %v1871 = vadd.f32 %v1802, %v1839
    %v1872 = vadd.f32 %v1803, %v1840
    %v1873 = vadd.f32 %v1804, %v1841
    %v1874 = vadd.f32 %v1805, %v1842
    %v1875 = vadd.f32 %v1806, %v1843
    %v1876 = vadd.f32 %v1807, %v1844
    %v1877 = vadd.f32 %v1808, %v1845
    %v1878 = vadd.f32 %v1809, %v1846
    %v1879 = vadd.f32 %v1810, %v1847
    %v1880 = vadd.f32 %v1811, %v1848
    %v1881 = vadd.f32 %v1812, %v1849
    %v1882 = vadd.f32 %v1813, %v1850
    %v1883 = vadd.f32 %v1814, %v1851
    %v1884 = vadd.f32 %v1815, %v1852
    %v1885 = vadd.f32 %v1816, %v1853
    %v1886 = vadd.f32 %v1817, %v1854
    %v1887 = vadd.f32 %v1818, %v1855
    %v1888 = vadd.f32 %v1819, %v1856
    %v1889 = vadd.f32 %v1820, %v1857
    %v1890 = vadd.f32 %v1821, %v1858
    %v1891 = vadd.f32 %v1822, %v1859
    %v1892 = vadd.f32 %v1823, %v1860
    %v1893 = vadd.f32 %v1824, %v1861
    %v1894 = vadd.f32 %v1825, %v1862
    %v1895 = vadd.f32 %v1826, %v1863
    %v1896 = vadd.f32 %v1827, %v1864
    %v1897 = vadd.f32 %v1828, %v1865
    %v1898 = vadd.f32 %v1829, %v1866
    %v1899 = vadd.f32 %v1830, %v1867
    %v1900 = vadd.f32 %v1831, %v1868
    %v1901 = vld [vmem:[#allocation5 + $0x7] sm:$0x1]
    %v1902 = vlaneseq
    %v1903 = vshrl.u32 %v1902, 7
    %v1904 = vsub.s32 0, %v1903
    %v1905 = vrot.slane %v1901, %v1904
    %v1906 = vmul.f32 %v1219, %v1905
    %v1907 = vmul.f32 %v1220, %v1905
    %v1908 = vmul.f32 %v1221, %v1905
    %v1909 = vmul.f32 %v1222, %v1905
    %v1910 = vmul.f32 %v1223, %v1905
    %v1911 = vmul.f32 %v1224, %v1905
    %v1912 = vmul.f32 %v1225, %v1905
    %v1913 = vmul.f32 %v1226, %v1905
    %v1914 = vmul.f32 %v1227, %v1905
    %v1915 = vmul.f32 %v1228, %v1905
    %v1916 = vmul.f32 %v1229, %v1905
    %v1917 = vmul.f32 %v1230, %v1905
    %v1918 = vmul.f32 %v1231, %v1905
    %v1919 = vmul.f32 %v1232, %v1905
    %v1920 = vmul.f32 %v1233, %v1905
    %v1921 = vmul.f32 %v1234, %v1905
    %v1922 = vmul.f32 %v1235, %v1905
    %v1923 = vmul.f32 %v1236, %v1905
    %v1924 = vmul.f32 %v1237, %v1905
    %v1925 = vmul.f32 %v1238, %v1905
    %v1926 = vmul.f32 %v1239, %v1905
    %v1927 = vmul.f32 %v1240, %v1905
    %v1928 = vmul.f32 %v1241, %v1905
    %v1929 = vmul.f32 %v1242, %v1905
    %v1930 = vmul.f32 %v1243, %v1905
    %v1931 = vmul.f32 %v1244, %v1905
    %v1932 = vmul.f32 %v1245, %v1905
    %v1933 = vmul.f32 %v1246, %v1905
    %v1934 = vmul.f32 %v1247, %v1905
    %v1935 = vmul.f32 %v1248, %v1905
    %v1936 = vmul.f32 %v1249, %v1905
    %v1937 = vmul.f32 %v1250, %v1905
    %v1938 = vadd.f32 %v1869, %v1906
    %v1939 = vadd.f32 %v1870, %v1907
    %v1940 = vadd.f32 %v1871, %v1908
    %v1941 = vadd.f32 %v1872, %v1909
    %v1942 = vadd.f32 %v1873, %v1910
    %v1943 = vadd.f32 %v1874, %v1911
    %v1944 = vadd.f32 %v1875, %v1912
    %v1945 = vadd.f32 %v1876, %v1913
    %v1946 = vadd.f32 %v1877, %v1914
    %v1947 = vadd.f32 %v1878, %v1915
    %v1948 = vadd.f32 %v1879, %v1916
    %v1949 = vadd.f32 %v1880, %v1917
    %v1950 = vadd.f32 %v1881, %v1918
    %v1951 = vadd.f32 %v1882, %v1919
    %v1952 = vadd.f32 %v1883, %v1920
    %v1953 = vadd.f32 %v1884, %v1921
    %v1954 = vadd.f32 %v1885, %v1922
    %v1955 = vadd.f32 %v1886, %v1923
    %v1956 = vadd.f32 %v1887, %v1924
    %v1957 = vadd.f32 %v1888, %v1925
    %v1958 = vadd.f32 %v1889, %v1926
    %v1959 = vadd.f32 %v1890, %v1927
    %v1960 = vadd.f32 %v1891, %v1928
    %v1961 = vadd.f32 %v1892, %v1929
    %v1962 = vadd.f32 %v1893, %v1930
    %v1963 = vadd.f32 %v1894, %v1931
    %v1964 = vadd.f32 %v1895, %v1932
    %v1965 = vadd.f32 %v1896, %v1933
    %v1966 = vadd.f32 %v1897, %v1934
    %v1967 = vadd.f32 %v1898, %v1935
    %v1968 = vadd.f32 %v1899, %v1936
    %v1969 = vadd.f32 %v1900, %v1937
    %v1970 = vadd.f32 %v1938, %v1491
    %v1971 = vadd.f32 %v1939, %v1492
    %v1972 = vadd.f32 %v1940, %v1493
    %v1973 = vadd.f32 %v1941, %v1494
    %v1974 = vadd.f32 %v1942, %v1495
    %v1975 = vadd.f32 %v1943, %v1496
    %v1976 = vadd.f32 %v1944, %v1497
    %v1977 = vadd.f32 %v1945, %v1498
    %v1978 = vadd.f32 %v1946, %v1499
    %v1979 = vadd.f32 %v1947, %v1500
    %v1980 = vadd.f32 %v1948, %v1501
    %v1981 = vadd.f32 %v1949, %v1502
    %v1982 = vadd.f32 %v1950, %v1503
    %v1983 = vadd.f32 %v1951, %v1504
    %v1984 = vadd.f32 %v1952, %v1505
    %v1985 = vadd.f32 %v1953, %v1506
    %v1986 = vadd.f32 %v1954, %v1507
    %v1987 = vadd.f32 %v1955, %v1508
    %v1988 = vadd.f32 %v1956, %v1509
    %v1989 = vadd.f32 %v1957, %v1510
    %v1990 = vadd.f32 %v1958, %v1511
    %v1991 = vadd.f32 %v1959, %v1512
    %v1992 = vadd.f32 %v1960, %v1513
    %v1993 = vadd.f32 %v1961, %v1514
    %v1994 = vadd.f32 %v1962, %v1515
    %v1995 = vadd.f32 %v1963, %v1516
    %v1996 = vadd.f32 %v1964, %v1517
    %v1997 = vadd.f32 %v1965, %v1518
    %v1998 = vadd.f32 %v1966, %v1519
    %v1999 = vadd.f32 %v1967, %v1520
    %v2000 = vadd.f32 %v1968, %v1521
    %v2001 = vadd.f32 %v1969, %v1522
    %v2002 = vadd.f32 %v1970, %v1763
    %v2003 = vadd.f32 %v1971, %v1764
    %v2004 = vadd.f32 %v1972, %v1765
    %v2005 = vadd.f32 %v1973, %v1766
    %v2006 = vadd.f32 %v1974, %v1767
    %v2007 = vadd.f32 %v1975, %v1768
    %v2008 = vadd.f32 %v1976, %v1769
    %v2009 = vadd.f32 %v1977, %v1770
    %v2010 = vadd.f32 %v1978, %v1771
    %v2011 = vadd.f32 %v1979, %v1772
    %v2012 = vadd.f32 %v1980, %v1773
    %v2013 = vadd.f32 %v1981, %v1774
    %v2014 = vadd.f32 %v1982, %v1775
    %v2015 = vadd.f32 %v1983, %v1776
    %v2016 = vadd.f32 %v1984, %v1777
    %v2017 = vadd.f32 %v1985, %v1778
    %v2018 = vadd.f32 %v1986, %v1779
    %v2019 = vadd.f32 %v1987, %v1780
    %v2020 = vadd.f32 %v1988, %v1781
    %v2021 = vadd.f32 %v1989, %v1782
    %v2022 = vadd.f32 %v1990, %v1783
    %v2023 = vadd.f32 %v1991, %v1784
    %v2024 = vadd.f32 %v1992, %v1785
    %v2025 = vadd.f32 %v1993, %v1786
    %v2026 = vadd.f32 %v1994, %v1787
    %v2027 = vadd.f32 %v1995, %v1788
    %v2028 = vadd.f32 %v1996, %v1789
    %v2029 = vadd.f32 %v1997, %v1790
    %v2030 = vadd.f32 %v1998, %v1791
    %v2031 = vadd.f32 %v1999, %v1792
    %v2032 = vadd.f32 %v2000, %v1793
    %v2033 = vadd.f32 %v2001, %v1794
    %v2034 = vld [vmem:[%s2] sm:$0x1]
    %v2036 = vlaneseq
    %v2037 = vshrl.u32 %v2036, 7
    %v2038 = vsub.s32 0, %v2037
    %v2039 = vrot.slane %v2034, %v2038
    %v2041 = vadd.f32 %v2002, %v2039
    %v2042 = vadd.f32 %v2003, %v2039
    %v2043 = vadd.f32 %v2004, %v2039
    %v2044 = vadd.f32 %v2005, %v2039
    %v2045 = vadd.f32 %v2006, %v2039
    %v2046 = vadd.f32 %v2007, %v2039
    %v2047 = vadd.f32 %v2008, %v2039
    %v2048 = vadd.f32 %v2009, %v2039
    %v2049 = vadd.f32 %v2010, %v2039
    %v2050 = vadd.f32 %v2011, %v2039
    %v2051 = vadd.f32 %v2012, %v2039
    %v2052 = vadd.f32 %v2013, %v2039
    %v2053 = vadd.f32 %v2014, %v2039
    %v2054 = vadd.f32 %v2015, %v2039
    %v2055 = vadd.f32 %v2016, %v2039
    %v2056 = vadd.f32 %v2017, %v2039
    %v2057 = vadd.f32 %v2018, %v2039
    %v2058 = vadd.f32 %v2019, %v2039
    %v2059 = vadd.f32 %v2020, %v2039
    %v2060 = vadd.f32 %v2021, %v2039
    %v2061 = vadd.f32 %v2022, %v2039
    %v2062 = vadd.f32 %v2023, %v2039
    %v2063 = vadd.f32 %v2024, %v2039
    %v2064 = vadd.f32 %v2025, %v2039
    %v2065 = vadd.f32 %v2026, %v2039
    %v2066 = vadd.f32 %v2027, %v2039
    %v2067 = vadd.f32 %v2028, %v2039
    %v2068 = vadd.f32 %v2029, %v2039
    %v2069 = vadd.f32 %v2030, %v2039
    %v2070 = vadd.f32 %v2031, %v2039
    %v2071 = vadd.f32 %v2032, %v2039
    %v2072 = vadd.f32 %v2033, %v2039
    %v2073 = vxor.u32 %v2041, 2147483648
    %v2074 = vxor.u32 %v2042, 2147483648
    %v2075 = vxor.u32 %v2043, 2147483648
    %v2076 = vxor.u32 %v2044, 2147483648
    %v2077 = vxor.u32 %v2045, 2147483648
    %v2078 = vxor.u32 %v2046, 2147483648
    %v2079 = vxor.u32 %v2047, 2147483648
    %v2080 = vxor.u32 %v2048, 2147483648
    %v2081 = vxor.u32 %v2049, 2147483648
    %v2082 = vxor.u32 %v2050, 2147483648
    %v2083 = vxor.u32 %v2051, 2147483648
    %v2084 = vxor.u32 %v2052, 2147483648
    %v2085 = vxor.u32 %v2053, 2147483648
    %v2086 = vxor.u32 %v2054, 2147483648
    %v2087 = vxor.u32 %v2055, 2147483648
    %v2088 = vxor.u32 %v2056, 2147483648
    %v2089 = vxor.u32 %v2057, 2147483648
    %v2090 = vxor.u32 %v2058, 2147483648
    %v2091 = vxor.u32 %v2059, 2147483648
    %v2092 = vxor.u32 %v2060, 2147483648
    %v2093 = vxor.u32 %v2061, 2147483648
    %v2094 = vxor.u32 %v2062, 2147483648
    %v2095 = vxor.u32 %v2063, 2147483648
    %v2096 = vxor.u32 %v2064, 2147483648
    %v2097 = vxor.u32 %v2065, 2147483648
    %v2098 = vxor.u32 %v2066, 2147483648
    %v2099 = vxor.u32 %v2067, 2147483648
    %v2100 = vxor.u32 %v2068, 2147483648
    %v2101 = vxor.u32 %v2069, 2147483648
    %v2102 = vxor.u32 %v2070, 2147483648
    %v2103 = vxor.u32 %v2071, 2147483648
    %v2104 = vxor.u32 %v2072, 2147483648
    %v2105 = vmul.f32 %v2073, 1.442695
    %v2106 = vpow.pop %v2105
    %v2107 = vmul.f32 %v2074, 1.442695
    %v2108 = vpow.pop %v2107
    %v2109 = vmul.f32 %v2075, 1.442695
    %v2110 = vpow.pop %v2109
    %v2111 = vmul.f32 %v2076, 1.442695
    %v2112 = vpow.pop %v2111
    %v2113 = vmul.f32 %v2077, 1.442695
    %v2114 = vpow.pop %v2113
    %v2115 = vmul.f32 %v2078, 1.442695
    %v2116 = vpow.pop %v2115
    %v2117 = vmul.f32 %v2079, 1.442695
    %v2118 = vpow.pop %v2117
    %v2119 = vmul.f32 %v2080, 1.442695
    %v2120 = vpow.pop %v2119
    %v2121 = vmul.f32 %v2081, 1.442695
    %v2122 = vpow.pop %v2121
    %v2123 = vmul.f32 %v2082, 1.442695
    %v2124 = vpow.pop %v2123
    %v2125 = vmul.f32 %v2083, 1.442695
    %v2126 = vpow.pop %v2125
    %v2127 = vmul.f32 %v2084, 1.442695
    %v2128 = vpow.pop %v2127
    %v2129 = vmul.f32 %v2085, 1.442695
    %v2130 = vpow.pop %v2129
    %v2131 = vmul.f32 %v2086, 1.442695
    %v2132 = vpow.pop %v2131
    %v2133 = vmul.f32 %v2087, 1.442695
    %v2134 = vpow.pop %v2133
    %v2135 = vmul.f32 %v2088, 1.442695
    %v2136 = vpow.pop %v2135
    %v2137 = vmul.f32 %v2089, 1.442695
    %v2138 = vpow.pop %v2137
    %v2139 = vmul.f32 %v2090, 1.442695
    %v2140 = vpow.pop %v2139
    %v2141 = vmul.f32 %v2091, 1.442695
    %v2142 = vpow.pop %v2141
    %v2143 = vmul.f32 %v2092, 1.442695
    %v2144 = vpow.pop %v2143
    %v2145 = vmul.f32 %v2093, 1.442695
    %v2146 = vpow.pop %v2145
    %v2147 = vmul.f32 %v2094, 1.442695
    %v2148 = vpow.pop %v2147
    %v2149 = vmul.f32 %v2095, 1.442695
    %v2150 = vpow.pop %v2149
    %v2151 = vmul.f32 %v2096, 1.442695
    %v2152 = vpow.pop %v2151
    %v2153 = vmul.f32 %v2097, 1.442695
    %v2154 = vpow.pop %v2153
    %v2155 = vmul.f32 %v2098, 1.442695
    %v2156 = vpow.pop %v2155
    %v2157 = vmul.f32 %v2099, 1.442695
    %v2158 = vpow.pop %v2157
    %v2159 = vmul.f32 %v2100, 1.442695
    %v2160 = vpow.pop %v2159
    %v2161 = vmul.f32 %v2101, 1.442695
    %v2162 = vpow.pop %v2161
    %v2163 = vmul.f32 %v2102, 1.442695
    %v2164 = vpow.pop %v2163
    %v2165 = vmul.f32 %v2103, 1.442695
    %v2166 = vpow.pop %v2165
    %v2167 = vmul.f32 %v2104, 1.442695
    %v2168 = vpow.pop %v2167
    %v2169 = vadd.f32 %v2106, 1.0
    %v2170 = vadd.f32 %v2108, 1.0
    %v2171 = vadd.f32 %v2110, 1.0
    %v2172 = vadd.f32 %v2112, 1.0
    %v2173 = vadd.f32 %v2114, 1.0
    %v2174 = vadd.f32 %v2116, 1.0
    %v2175 = vadd.f32 %v2118, 1.0
    %v2176 = vadd.f32 %v2120, 1.0
    %v2177 = vadd.f32 %v2122, 1.0
    %v2178 = vadd.f32 %v2124, 1.0
    %v2179 = vadd.f32 %v2126, 1.0
    %v2180 = vadd.f32 %v2128, 1.0
    %v2181 = vadd.f32 %v2130, 1.0
    %v2182 = vadd.f32 %v2132, 1.0
    %v2183 = vadd.f32 %v2134, 1.0
    %v2184 = vadd.f32 %v2136, 1.0
    %v2185 = vadd.f32 %v2138, 1.0
    %v2186 = vadd.f32 %v2140, 1.0
    %v2187 = vadd.f32 %v2142, 1.0
    %v2188 = vadd.f32 %v2144, 1.0
    %v2189 = vadd.f32 %v2146, 1.0
    %v2190 = vadd.f32 %v2148, 1.0
    %v2191 = vadd.f32 %v2150, 1.0
    %v2192 = vadd.f32 %v2152, 1.0
    %v2193 = vadd.f32 %v2154, 1.0
    %v2194 = vadd.f32 %v2156, 1.0
    %v2195 = vadd.f32 %v2158, 1.0
    %v2196 = vadd.f32 %v2160, 1.0
    %v2197 = vadd.f32 %v2162, 1.0
    %v2198 = vadd.f32 %v2164, 1.0
    %v2199 = vadd.f32 %v2166, 1.0
    %v2200 = vadd.f32 %v2168, 1.0
    %v2201 = vrcp.pop %v2169
    %v2202 = vmul.f32 1.0, %v2201
    %v2203 = vrcp.pop %v2170
    %v2204 = vmul.f32 1.0, %v2203
    %v2205 = vrcp.pop %v2171
    %v2206 = vmul.f32 1.0, %v2205
    %v2207 = vrcp.pop %v2172
    %v2208 = vmul.f32 1.0, %v2207
    %v2209 = vrcp.pop %v2173
    %v2210 = vmul.f32 1.0, %v2209
    %v2211 = vrcp.pop %v2174
    %v2212 = vmul.f32 1.0, %v2211
    %v2213 = vrcp.pop %v2175
    %v2214 = vmul.f32 1.0, %v2213
    %v2215 = vrcp.pop %v2176
    %v2216 = vmul.f32 1.0, %v2215
    %v2217 = vrcp.pop %v2177
    %v2218 = vmul.f32 1.0, %v2217
    %v2219 = vrcp.pop %v2178
    %v2220 = vmul.f32 1.0, %v2219
    %v2221 = vrcp.pop %v2179
    %v2222 = vmul.f32 1.0, %v2221
    %v2223 = vrcp.pop %v2180
    %v2224 = vmul.f32 1.0, %v2223
    %v2225 = vrcp.pop %v2181
    %v2226 = vmul.f32 1.0, %v2225
    %v2227 = vrcp.pop %v2182
    %v2228 = vmul.f32 1.0, %v2227
    %v2229 = vrcp.pop %v2183
    %v2230 = vmul.f32 1.0, %v2229
    %v2231 = vrcp.pop %v2184
    %v2232 = vmul.f32 1.0, %v2231
    %v2233 = vrcp.pop %v2185
    %v2234 = vmul.f32 1.0, %v2233
    %v2235 = vrcp.pop %v2186
    %v2236 = vmul.f32 1.0, %v2235
    %v2237 = vrcp.pop %v2187
    %v2238 = vmul.f32 1.0, %v2237
    %v2239 = vrcp.pop %v2188
    %v2240 = vmul.f32 1.0, %v2239
    %v2241 = vrcp.pop %v2189
    %v2242 = vmul.f32 1.0, %v2241
    %v2243 = vrcp.pop %v2190
    %v2244 = vmul.f32 1.0, %v2243
    %v2245 = vrcp.pop %v2191
    %v2246 = vmul.f32 1.0, %v2245
    %v2247 = vrcp.pop %v2192
    %v2248 = vmul.f32 1.0, %v2247
    %v2249 = vrcp.pop %v2193
    %v2250 = vmul.f32 1.0, %v2249
    %v2251 = vrcp.pop %v2194
    %v2252 = vmul.f32 1.0, %v2251
    %v2253 = vrcp.pop %v2195
    %v2254 = vmul.f32 1.0, %v2253
    %v2255 = vrcp.pop %v2196
    %v2256 = vmul.f32 1.0, %v2255
    %v2257 = vrcp.pop %v2197
    %v2258 = vmul.f32 1.0, %v2257
    %v2259 = vrcp.pop %v2198
    %v2260 = vmul.f32 1.0, %v2259
    %v2261 = vrcp.pop %v2199
    %v2262 = vmul.f32 1.0, %v2261
    %v2263 = vrcp.pop %v2200
    %v2264 = vmul.f32 1.0, %v2263
    %v2265 = vmul.f32 %v2202, %v106
    %v2266 = vmul.f32 %v2204, %v107
    %v2267 = vmul.f32 %v2206, %v108
    %v2268 = vmul.f32 %v2208, %v109
    %v2269 = vmul.f32 %v2210, %v110
    %v2270 = vmul.f32 %v2212, %v111
    %v2271 = vmul.f32 %v2214, %v112
    %v2272 = vmul.f32 %v2216, %v113
    %v2273 = vmul.f32 %v2218, %v114
    %v2274 = vmul.f32 %v2220, %v115
    %v2275 = vmul.f32 %v2222, %v116
    %v2276 = vmul.f32 %v2224, %v117
    %v2277 = vmul.f32 %v2226, %v118
    %v2278 = vmul.f32 %v2228, %v119
    %v2279 = vmul.f32 %v2230, %v120
    %v2280 = vmul.f32 %v2232, %v121
    %v2281 = vmul.f32 %v2234, %v122
    %v2282 = vmul.f32 %v2236, %v123
    %v2283 = vmul.f32 %v2238, %v124
    %v2284 = vmul.f32 %v2240, %v125
    %v2285 = vmul.f32 %v2242, %v126
    %v2286 = vmul.f32 %v2244, %v127
    %v2287 = vmul.f32 %v2246, %v128
    %v2288 = vmul.f32 %v2248, %v129
    %v2289 = vmul.f32 %v2250, %v130
    %v2290 = vmul.f32 %v2252, %v131
    %v2291 = vmul.f32 %v2254, %v132
    %v2292 = vmul.f32 %v2256, %v133
    %v2293 = vmul.f32 %v2258, %v134
    %v2294 = vmul.f32 %v2260, %v135
    %v2295 = vmul.f32 %v2262, %v136
    %v2296 = vmul.f32 %v2264, %v137
    %v2297 = vadd.f32 %v106, %v107
    %v2298 = vadd.f32 %v2297, %v108
    %v2299 = vadd.f32 %v2298, %v109
    %v2300 = vadd.f32 %v2299, %v110
    %v2301 = vadd.f32 %v2300, %v111
    %v2302 = vadd.f32 %v2301, %v112
    %v2303 = vadd.f32 %v2302, %v113
    %v2304 = vadd.f32 %v2303, %v114
    %v2305 = vadd.f32 %v2304, %v115
    %v2306 = vadd.f32 %v2305, %v116
    %v2307 = vadd.f32 %v2306, %v117
    %v2308 = vadd.f32 %v2307, %v118
    %v2309 = vadd.f32 %v2308, %v119
    %v2310 = vadd.f32 %v2309, %v120
    %v2311 = vadd.f32 %v2310, %v121
    %v2312 = vadd.f32 %v2311, %v122
    %v2313 = vadd.f32 %v2312, %v123
    %v2314 = vadd.f32 %v2313, %v124
    %v2315 = vadd.f32 %v2314, %v125
    %v2316 = vadd.f32 %v2315, %v126
    %v2317 = vadd.f32 %v2316, %v127
    %v2318 = vadd.f32 %v2317, %v128
    %v2319 = vadd.f32 %v2318, %v129
    %v2320 = vadd.f32 %v2319, %v130
    %v2321 = vadd.f32 %v2320, %v131
    %v2322 = vadd.f32 %v2321, %v132
    %v2323 = vadd.f32 %v2322, %v133
    %v2324 = vadd.f32 %v2323, %v134
    %v2325 = vadd.f32 %v2324, %v135
    %v2326 = vadd.f32 %v2325, %v136
    %v2327 = vadd.f32 %v2326, %v137
    %v2328 = vrot.slane %v2327, 4
    %v2329 = vadd.f32 %v2327, %v2328
    %v2330 = vrot.slane %v2329, 2
    %v2331 = vadd.f32 %v2329, %v2330
    %v2332 = vrot.slane %v2331, 1
    %v2333 = vadd.f32 %v2331, %v2332
    %v2334 = vrcp.pop 256.0
    %v2335 = vmul.f32 %v2333, %v2334
    %v2336 = vld [vmem:[%s5] sm:$0xff]
    %v2337 = vmul.f32 %v2335, %v2336
    %2338 = vadd.xlane.f32.xlu0 %v2337
    %v2339 = vpop.xlane.xlu0 %2338
    %v2340 = vmax.f32 %v2339, 0.0
    %v2341 = vmin.f32 %v2340, 6.0
    %v2342 = vld [vmem:[#allocation8] sm:$0xff]
    %v2343 = vmul.f32 %v2341, %v2342
    %v2344 = vrot.slane %v2343, 4
    %v2345 = vadd.f32 %v2343, %v2344
    %v2346 = vrot.slane %v2345, 2
    %v2347 = vadd.f32 %v2345, %v2346
    %v2348 = vrot.slane %v2347, 1
    %v2349 = vadd.f32 %v2347, %v2348
    %v2350 = vxor.u32 %v2349, 2147483648
    %v2351 = vmul.f32 %v2350, 1.442695
    %v2352 = vpow.pop %v2351
    %v2353 = vadd.f32 %v2352, 1.0
    %v2354 = vrcp.pop %v2353
    %v2355 = vmul.f32 1.0, %v2354
    %v2356 = vmul.f32 %v106, %v2355
    %v2357 = vmul.f32 %v107, %v2355
    %v2358 = vmul.f32 %v108, %v2355
    %v2359 = vmul.f32 %v109, %v2355
    %v2360 = vmul.f32 %v110, %v2355
    %v2361 = vmul.f32 %v111, %v2355
    %v2362 = vmul.f32 %v112, %v2355
    %v2363 = vmul.f32 %v113, %v2355
    %v2364 = vmul.f32 %v114, %v2355
    %v2365 = vmul.f32 %v115, %v2355
    %v2366 = vmul.f32 %v116, %v2355
    %v2367 = vmul.f32 %v117, %v2355
    %v2368 = vmul.f32 %v118, %v2355
    %v2369 = vmul.f32 %v119, %v2355
    %v2370 = vmul.f32 %v120, %v2355
    %v2371 = vmul.f32 %v121, %v2355
    %v2372 = vmul.f32 %v122, %v2355
    %v2373 = vmul.f32 %v123, %v2355
    %v2374 = vmul.f32 %v124, %v2355
    %v2375 = vmul.f32 %v125, %v2355
    %v2376 = vmul.f32 %v126, %v2355
    %v2377 = vmul.f32 %v127, %v2355
    %v2378 = vmul.f32 %v128, %v2355
    %v2379 = vmul.f32 %v129, %v2355
    %v2380 = vmul.f32 %v130, %v2355
    %v2381 = vmul.f32 %v131, %v2355
    %v2382 = vmul.f32 %v132, %v2355
    %v2383 = vmul.f32 %v133, %v2355
    %v2384 = vmul.f32 %v134, %v2355
    %v2385 = vmul.f32 %v135, %v2355
    %v2386 = vmul.f32 %v136, %v2355
    %v2387 = vmul.f32 %v137, %v2355
    %v2388 = vadd.f32 %v2265, %v2356
    %v2389 = vadd.f32 %v2266, %v2357
    %v2390 = vadd.f32 %v2267, %v2358
    %v2391 = vadd.f32 %v2268, %v2359
    %v2392 = vadd.f32 %v2269, %v2360
    %v2393 = vadd.f32 %v2270, %v2361
    %v2394 = vadd.f32 %v2271, %v2362
    %v2395 = vadd.f32 %v2272, %v2363
    %v2396 = vadd.f32 %v2273, %v2364
    %v2397 = vadd.f32 %v2274, %v2365
    %v2398 = vadd.f32 %v2275, %v2366
    %v2399 = vadd.f32 %v2276, %v2367
    %v2400 = vadd.f32 %v2277, %v2368
    %v2401 = vadd.f32 %v2278, %v2369
    %v2402 = vadd.f32 %v2279, %v2370
    %v2403 = vadd.f32 %v2280, %v2371
    %v2404 = vadd.f32 %v2281, %v2372
    %v2405 = vadd.f32 %v2282, %v2373
    %v2406 = vadd.f32 %v2283, %v2374
    %v2407 = vadd.f32 %v2284, %v2375
    %v2408 = vadd.f32 %v2285, %v2376
    %v2409 = vadd.f32 %v2286, %v2377
    %v2410 = vadd.f32 %v2287, %v2378
    %v2411 = vadd.f32 %v2288, %v2379
    %v2412 = vadd.f32 %v2289, %v2380
    %v2413 = vadd.f32 %v2290, %v2381
    %v2414 = vadd.f32 %v2291, %v2382
    %v2415 = vadd.f32 %v2292, %v2383
    %v2416 = vadd.f32 %v2293, %v2384
    %v2417 = vadd.f32 %v2294, %v2385
    %v2418 = vadd.f32 %v2295, %v2386
    %v2419 = vadd.f32 %v2296, %v2387
    %v2420 = vmul.f32 %v2418, %v619
    %v2421 = vmul.f32 %v2419, %v620
    %v2422 = vmul.f32 %v2388, %v621
    %v2423 = vmul.f32 %v2389, %v622
    %v2424 = vmul.f32 %v2390, %v623
    %v2425 = vmul.f32 %v2391, %v624
    %v2426 = vmul.f32 %v2392, %v625
    %v2427 = vmul.f32 %v2393, %v626
    %v2428 = vmul.f32 %v2394, %v627
    %v2429 = vmul.f32 %v2395, %v628
    %v2430 = vmul.f32 %v2396, %v629
    %v2431 = vmul.f32 %v2397, %v630
    %v2432 = vmul.f32 %v2398, %v631
    %v2433 = vmul.f32 %v2399, %v632
    %v2434 = vmul.f32 %v2400, %v633
    %v2435 = vmul.f32 %v2401, %v634
    %v2436 = vmul.f32 %v2402, %v635
    %v2437 = vmul.f32 %v2403, %v636
    %v2438 = vmul.f32 %v2404, %v637
    %v2439 = vmul.f32 %v2405, %v638
    %v2440 = vmul.f32 %v2406, %v639
    %v2441 = vmul.f32 %v2407, %v640
    %v2442 = vmul.f32 %v2408, %v641
    %v2443 = vmul.f32 %v2409, %v642
    %v2444 = vmul.f32 %v2410, %v643
    %v2445 = vmul.f32 %v2411, %v644
    %v2446 = vmul.f32 %v2412, %v645
    %v2447 = vmul.f32 %v2413, %v646
    %v2448 = vmul.f32 %v2414, %v647
    %v2449 = vmul.f32 %v2415, %v648
    %v2450 = vmul.f32 %v2416, %v649
    %v2451 = vmul.f32 %v2417, %v650
    %v2452 = vmul.f32 %v2390, %v715
    %v2453 = vmul.f32 %v2391, %v716
    %v2454 = vmul.f32 %v2392, %v717
    %v2455 = vmul.f32 %v2393, %v718
    %v2456 = vmul.f32 %v2394, %v719
    %v2457 = vmul.f32 %v2395, %v720
    %v2458 = vmul.f32 %v2396, %v721
    %v2459 = vmul.f32 %v2397, %v722
    %v2460 = vmul.f32 %v2398, %v723
    %v2461 = vmul.f32 %v2399, %v724
    %v2462 = vmul.f32 %v2400, %v725
    %v2463 = vmul.f32 %v2401, %v726
    %v2464 = vmul.f32 %v2402, %v727
    %v2465 = vmul.f32 %v2403, %v728
    %v2466 = vmul.f32 %v2404, %v729
    %v2467 = vmul.f32 %v2405, %v730
    %v2468 = vmul.f32 %v2406, %v731
    %v2469 = vmul.f32 %v2407, %v732
    %v2470 = vmul.f32 %v2408, %v733
    %v2471 = vmul.f32 %v2409, %v734
    %v2472 = vmul.f32 %v2410, %v735
    %v2473 = vmul.f32 %v2411, %v736
    %v2474 = vmul.f32 %v2412, %v737
    %v2475 = vmul.f32 %v2413, %v738
    %v2476 = vmul.f32 %v2414, %v739
    %v2477 = vmul.f32 %v2415, %v740
    %v2478 = vmul.f32 %v2416, %v741
    %v2479 = vmul.f32 %v2417, %v742
    %v2480 = vmul.f32 %v2418, %v743
    %v2481 = vmul.f32 %v2419, %v744
    %v2482 = vmul.f32 %v2388, %v745
    %v2483 = vmul.f32 %v2389, %v746
    %v2484 = vld [vmem:[%s7] sm:$0x1]
    %v2485 = vlaneseq
    %v2486 = vshrl.u32 %v2485, 7
    %v2487 = vsub.s32 0, %v2486
    %v2488 = vrot.slane %v2484, %v2487
    %v2489 = vmul.f32 %v2420, %v2488
    %v2490 = vmul.f32 %v2421, %v2488
    %v2491 = vmul.f32 %v2422, %v2488
    %v2492 = vmul.f32 %v2423, %v2488
    %v2493 = vmul.f32 %v2424, %v2488
    %v2494 = vmul.f32 %v2425, %v2488
    %v2495 = vmul.f32 %v2426, %v2488
    %v2496 = vmul.f32 %v2427, %v2488
    %v2497 = vmul.f32 %v2428, %v2488
    %v2498 = vmul.f32 %v2429, %v2488
    %v2499 = vmul.f32 %v2430, %v2488
    %v2500 = vmul.f32 %v2431, %v2488
    %v2501 = vmul.f32 %v2432, %v2488
    %v2502 = vmul.f32 %v2433, %v2488
    %v2503 = vmul.f32 %v2434, %v2488
    %v2504 = vmul.f32 %v2435, %v2488
    %v2505 = vmul.f32 %v2436, %v2488
    %v2506 = vmul.f32 %v2437, %v2488
    %v2507 = vmul.f32 %v2438, %v2488
    %v2508 = vmul.f32 %v2439, %v2488
    %v2509 = vmul.f32 %v2440, %v2488
    %v2510 = vmul.f32 %v2441, %v2488
    %v2511 = vmul.f32 %v2442, %v2488
    %v2512 = vmul.f32 %v2443, %v2488
    %v2513 = vmul.f32 %v2444, %v2488
    %v2514 = vmul.f32 %v2445, %v2488
    %v2515 = vmul.f32 %v2446, %v2488
    %v2516 = vmul.f32 %v2447, %v2488
    %v2517 = vmul.f32 %v2448, %v2488
    %v2518 = vmul.f32 %v2449, %v2488
    %v2519 = vmul.f32 %v2450, %v2488
    %v2520 = vmul.f32 %v2451, %v2488
    %v2521 = vld [vmem:[%s7 + $0x3] sm:$0x1]
    %v2522 = vlaneseq
    %v2523 = vshrl.u32 %v2522, 7
    %v2524 = vsub.s32 0, %v2523
    %v2525 = vrot.slane %v2521, %v2524
    %v2526 = vmul.f32 %v2388, %v2525
    %v2527 = vmul.f32 %v2389, %v2525
    %v2528 = vmul.f32 %v2390, %v2525
    %v2529 = vmul.f32 %v2391, %v2525
    %v2530 = vmul.f32 %v2392, %v2525
    %v2531 = vmul.f32 %v2393, %v2525
    %v2532 = vmul.f32 %v2394, %v2525
    %v2533 = vmul.f32 %v2395, %v2525
    %v2534 = vmul.f32 %v2396, %v2525
    %v2535 = vmul.f32 %v2397, %v2525
    %v2536 = vmul.f32 %v2398, %v2525
    %v2537 = vmul.f32 %v2399, %v2525
    %v2538 = vmul.f32 %v2400, %v2525
    %v2539 = vmul.f32 %v2401, %v2525
    %v2540 = vmul.f32 %v2402, %v2525
    %v2541 = vmul.f32 %v2403, %v2525
    %v2542 = vmul.f32 %v2404, %v2525
    %v2543 = vmul.f32 %v2405, %v2525
    %v2544 = vmul.f32 %v2406, %v2525
    %v2545 = vmul.f32 %v2407, %v2525
    %v2546 = vmul.f32 %v2408, %v2525
    %v2547 = vmul.f32 %v2409, %v2525
    %v2548 = vmul.f32 %v2410, %v2525
    %v2549 = vmul.f32 %v2411, %v2525
    %v2550 = vmul.f32 %v2412, %v2525
    %v2551 = vmul.f32 %v2413, %v2525
    %v2552 = vmul.f32 %v2414, %v2525
    %v2553 = vmul.f32 %v2415, %v2525
    %v2554 = vmul.f32 %v2416, %v2525
    %v2555 = vmul.f32 %v2417, %v2525
    %v2556 = vmul.f32 %v2418, %v2525
    %v2557 = vmul.f32 %v2419, %v2525
    %v2558 = vadd.f32 %v2489, %v2526
    %v2559 = vadd.f32 %v2490, %v2527
    %v2560 = vadd.f32 %v2491, %v2528
    %v2561 = vadd.f32 %v2492, %v2529
    %v2562 = vadd.f32 %v2493, %v2530
    %v2563 = vadd.f32 %v2494, %v2531
    %v2564 = vadd.f32 %v2495, %v2532
    %v2565 = vadd.f32 %v2496, %v2533
    %v2566 = vadd.f32 %v2497, %v2534
    %v2567 = vadd.f32 %v2498, %v2535
    %v2568 = vadd.f32 %v2499, %v2536
    %v2569 = vadd.f32 %v2500, %v2537
    %v2570 = vadd.f32 %v2501, %v2538
    %v2571 = vadd.f32 %v2502, %v2539
    %v2572 = vadd.f32 %v2503, %v2540
    %v2573 = vadd.f32 %v2504, %v2541
    %v2574 = vadd.f32 %v2505, %v2542
    %v2575 = vadd.f32 %v2506, %v2543
    %v2576 = vadd.f32 %v2507, %v2544
    %v2577 = vadd.f32 %v2508, %v2545
    %v2578 = vadd.f32 %v2509, %v2546
    %v2579 = vadd.f32 %v2510, %v2547
    %v2580 = vadd.f32 %v2511, %v2548
    %v2581 = vadd.f32 %v2512, %v2549
    %v2582 = vadd.f32 %v2513, %v2550
    %v2583 = vadd.f32 %v2514, %v2551
    %v2584 = vadd.f32 %v2515, %v2552
    %v2585 = vadd.f32 %v2516, %v2553
    %v2586 = vadd.f32 %v2517, %v2554
    %v2587 = vadd.f32 %v2518, %v2555
    %v2588 = vadd.f32 %v2519, %v2556
    %v2589 = vadd.f32 %v2520, %v2557
    %v2590 = vld [vmem:[%s7 + $0x6] sm:$0x1]
    %v2591 = vlaneseq
    %v2592 = vshrl.u32 %v2591, 7
    %v2593 = vsub.s32 0, %v2592
    %v2594 = vrot.slane %v2590, %v2593
    %v2595 = vmul.f32 %v2452, %v2594
    %v2596 = vmul.f32 %v2453, %v2594
    %v2597 = vmul.f32 %v2454, %v2594
    %v2598 = vmul.f32 %v2455, %v2594
    %v2599 = vmul.f32 %v2456, %v2594
    %v2600 = vmul.f32 %v2457, %v2594
    %v2601 = vmul.f32 %v2458, %v2594
    %v2602 = vmul.f32 %v2459, %v2594
    %v2603 = vmul.f32 %v2460, %v2594
    %v2604 = vmul.f32 %v2461, %v2594
    %v2605 = vmul.f32 %v2462, %v2594
    %v2606 = vmul.f32 %v2463, %v2594
    %v2607 = vmul.f32 %v2464, %v2594
    %v2608 = vmul.f32 %v2465, %v2594
    %v2609 = vmul.f32 %v2466, %v2594
    %v2610 = vmul.f32 %v2467, %v2594
    %v2611 = vmul.f32 %v2468, %v2594
    %v2612 = vmul.f32 %v2469, %v2594
    %v2613 = vmul.f32 %v2470, %v2594
    %v2614 = vmul.f32 %v2471, %v2594
    %v2615 = vmul.f32 %v2472, %v2594
    %v2616 = vmul.f32 %v2473, %v2594
    %v2617 = vmul.f32 %v2474, %v2594
    %v2618 = vmul.f32 %v2475, %v2594
    %v2619 = vmul.f32 %v2476, %v2594
    %v2620 = vmul.f32 %v2477, %v2594
    %v2621 = vmul.f32 %v2478, %v2594
    %v2622 = vmul.f32 %v2479, %v2594
    %v2623 = vmul.f32 %v2480, %v2594
    %v2624 = vmul.f32 %v2481, %v2594
    %v2625 = vmul.f32 %v2482, %v2594
    %v2626 = vmul.f32 %v2483, %v2594
    %v2627 = vadd.f32 %v2558, %v2595
    %v2628 = vadd.f32 %v2559, %v2596
    %v2629 = vadd.f32 %v2560, %v2597
    %v2630 = vadd.f32 %v2561, %v2598
    %v2631 = vadd.f32 %v2562, %v2599
    %v2632 = vadd.f32 %v2563, %v2600
    %v2633 = vadd.f32 %v2564, %v2601
    %v2634 = vadd.f32 %v2565, %v2602
    %v2635 = vadd.f32 %v2566, %v2603
    %v2636 = vadd.f32 %v2567, %v2604
    %v2637 = vadd.f32 %v2568, %v2605
    %v2638 = vadd.f32 %v2569, %v2606
    %v2639 = vadd.f32 %v2570, %v2607
    %v2640 = vadd.f32 %v2571, %v2608
    %v2641 = vadd.f32 %v2572, %v2609
    %v2642 = vadd.f32 %v2573, %v2610
    %v2643 = vadd.f32 %v2574, %v2611
    %v2644 = vadd.f32 %v2575, %v2612
    %v2645 = vadd.f32 %v2576, %v2613
    %v2646 = vadd.f32 %v2577, %v2614
    %v2647 = vadd.f32 %v2578, %v2615
    %v2648 = vadd.f32 %v2579, %v2616
    %v2649 = vadd.f32 %v2580, %v2617
    %v2650 = vadd.f32 %v2581, %v2618
    %v2651 = vadd.f32 %v2582, %v2619
    %v2652 = vadd.f32 %v2583, %v2620
    %v2653 = vadd.f32 %v2584, %v2621
    %v2654 = vadd.f32 %v2585, %v2622
    %v2655 = vadd.f32 %v2586, %v2623
    %v2656 = vadd.f32 %v2587, %v2624
    %v2657 = vadd.f32 %v2588, %v2625
    %v2658 = vadd.f32 %v2589, %v2626
    %v2659 = vrot.slane %v2627, 7
    %v2660 = vrot.slane %v2628, 7
    %v2661 = vrot.slane %v2629, 7
    %v2662 = vrot.slane %v2630, 7
    %v2663 = vrot.slane %v2631, 7
    %v2664 = vrot.slane %v2632, 7
    %v2665 = vrot.slane %v2633, 7
    %v2666 = vrot.slane %v2634, 7
    %v2667 = vrot.slane %v2635, 7
    %v2668 = vrot.slane %v2636, 7
    %v2669 = vrot.slane %v2637, 7
    %v2670 = vrot.slane %v2638, 7
    %v2671 = vrot.slane %v2639, 7
    %v2672 = vrot.slane %v2640, 7
    %v2673 = vrot.slane %v2641, 7
    %v2674 = vrot.slane %v2642, 7
    %v2675 = vrot.slane %v2643, 7
    %v2676 = vrot.slane %v2644, 7
    %v2677 = vrot.slane %v2645, 7
    %v2678 = vrot.slane %v2646, 7
    %v2679 = vrot.slane %v2647, 7
    %v2680 = vrot.slane %v2648, 7
    %v2681 = vrot.slane %v2649, 7
    %v2682 = vrot.slane %v2650, 7
    %v2683 = vrot.slane %v2651, 7
    %v2684 = vrot.slane %v2652, 7
    %v2685 = vrot.slane %v2653, 7
    %v2686 = vrot.slane %v2654, 7
    %v2687 = vrot.slane %v2655, 7
    %v2688 = vrot.slane %v2656, 7
    %v2689 = vrot.slane %v2657, 7
    %v2690 = vrot.slane %v2658, 7
    %v2691 = vsel %vm1458, %v2689, %v2690
    %v2692 = vsel %vm1458, %v2688, %v2689
    %v2693 = vsel %vm1458, %v2687, %v2688
    %v2694 = vsel %vm1458, %v2686, %v2687
    %v2695 = vsel %vm1458, %v2685, %v2686
    %v2696 = vsel %vm1458, %v2684, %v2685
    %v2697 = vsel %vm1458, %v2683, %v2684
    %v2698 = vsel %vm1458, %v2682, %v2683
    %v2699 = vsel %vm1458, %v2681, %v2682
    %v2700 = vsel %vm1458, %v2680, %v2681
    %v2701 = vsel %vm1458, %v2679, %v2680
    %v2702 = vsel %vm1458, %v2678, %v2679
    %v2703 = vsel %vm1458, %v2677, %v2678
    %v2704 = vsel %vm1458, %v2676, %v2677
    %v2705 = vsel %vm1458, %v2675, %v2676
    %v2706 = vsel %vm1458, %v2674, %v2675
    %v2707 = vsel %vm1458, %v2673, %v2674
    %v2708 = vsel %vm1458, %v2672, %v2673
    %v2709 = vsel %vm1458, %v2671, %v2672
    %v2710 = vsel %vm1458, %v2670, %v2671
    %v2711 = vsel %vm1458, %v2669, %v2670
    %v2712 = vsel %vm1458, %v2668, %v2669
    %v2713 = vsel %vm1458, %v2667, %v2668
    %v2714 = vsel %vm1458, %v2666, %v2667
    %v2715 = vsel %vm1458, %v2665, %v2666
    %v2716 = vsel %vm1458, %v2664, %v2665
    %v2717 = vsel %vm1458, %v2663, %v2664
    %v2718 = vsel %vm1458, %v2662, %v2663
    %v2719 = vsel %vm1458, %v2661, %v2662
    %v2720 = vsel %vm1458, %v2660, %v2661
    %v2721 = vsel %vm1458, %v2659, %v2660
    %v2722 = vsel %vm1458, %v2690, %v2659
    %v2723 = vmul.f32 %v2722, %v811
    %v2724 = vmul.f32 %v2721, %v812
    %v2725 = vmul.f32 %v2720, %v813
    %v2726 = vmul.f32 %v2719, %v814
    %v2727 = vmul.f32 %v2718, %v815
    %v2728 = vmul.f32 %v2717, %v816
    %v2729 = vmul.f32 %v2716, %v817
    %v2730 = vmul.f32 %v2715, %v818
    %v2731 = vmul.f32 %v2714, %v819
    %v2732 = vmul.f32 %v2713, %v820
    %v2733 = vmul.f32 %v2712, %v821
    %v2734 = vmul.f32 %v2711, %v822
    %v2735 = vmul.f32 %v2710, %v823
    %v2736 = vmul.f32 %v2709, %v824
    %v2737 = vmul.f32 %v2708, %v825
    %v2738 = vmul.f32 %v2707, %v826
    %v2739 = vmul.f32 %v2706, %v827
    %v2740 = vmul.f32 %v2705, %v828
    %v2741 = vmul.f32 %v2704, %v829
    %v2742 = vmul.f32 %v2703, %v830
    %v2743 = vmul.f32 %v2702, %v831
    %v2744 = vmul.f32 %v2701, %v832
    %v2745 = vmul.f32 %v2700, %v833
    %v2746 = vmul.f32 %v2699, %v834
    %v2747 = vmul.f32 %v2698, %v835
    %v2748 = vmul.f32 %v2697, %v836
    %v2749 = vmul.f32 %v2696, %v837
    %v2750 = vmul.f32 %v2695, %v838
    %v2751 = vmul.f32 %v2694, %v839
    %v2752 = vmul.f32 %v2693, %v840
    %v2753 = vmul.f32 %v2692, %v841
    %v2754 = vmul.f32 %v2691, %v842
    %v2755 = vld [vmem:[%s7 + $0x2] sm:$0x1]
    %v2756 = vlaneseq
    %v2757 = vshrl.u32 %v2756, 7
    %v2758 = vsub.s32 0, %v2757
    %v2759 = vrot.slane %v2755, %v2758
    %v2760 = vmul.f32 %v2420, %v2759
    %v2761 = vmul.f32 %v2421, %v2759
    %v2762 = vmul.f32 %v2422, %v2759
    %v2763 = vmul.f32 %v2423, %v2759
    %v2764 = vmul.f32 %v2424, %v2759
    %v2765 = vmul.f32 %v2425, %v2759
    %v2766 = vmul.f32 %v2426, %v2759
    %v2767 = vmul.f32 %v2427, %v2759
    %v2768 = vmul.f32 %v2428, %v2759
    %v2769 = vmul.f32 %v2429, %v2759
    %v2770 = vmul.f32 %v2430, %v2759
    %v2771 = vmul.f32 %v2431, %v2759
    %v2772 = vmul.f32 %v2432, %v2759
    %v2773 = vmul.f32 %v2433, %v2759
    %v2774 = vmul.f32 %v2434, %v2759
    %v2775 = vmul.f32 %v2435, %v2759
    %v2776 = vmul.f32 %v2436, %v2759
    %v2777 = vmul.f32 %v2437, %v2759
    %v2778 = vmul.f32 %v2438, %v2759
    %v2779 = vmul.f32 %v2439, %v2759
    %v2780 = vmul.f32 %v2440, %v2759
    %v2781 = vmul.f32 %v2441, %v2759
    %v2782 = vmul.f32 %v2442, %v2759
    %v2783 = vmul.f32 %v2443, %v2759
    %v2784 = vmul.f32 %v2444, %v2759
    %v2785 = vmul.f32 %v2445, %v2759
    %v2786 = vmul.f32 %v2446, %v2759
    %v2787 = vmul.f32 %v2447, %v2759
    %v2788 = vmul.f32 %v2448, %v2759
    %v2789 = vmul.f32 %v2449, %v2759
    %v2790 = vmul.f32 %v2450, %v2759
    %v2791 = vmul.f32 %v2451, %v2759
    %v2792 = vld [vmem:[%s7 + $0x5] sm:$0x1]
    %v2793 = vlaneseq
    %v2794 = vshrl.u32 %v2793, 7
    %v2795 = vsub.s32 0, %v2794
    %v2796 = vrot.slane %v2792, %v2795
    %v2797 = vmul.f32 %v2388, %v2796
    %v2798 = vmul.f32 %v2389, %v2796
    %v2799 = vmul.f32 %v2390, %v2796
    %v2800 = vmul.f32 %v2391, %v2796
    %v2801 = vmul.f32 %v2392, %v2796
    %v2802 = vmul.f32 %v2393, %v2796
    %v2803 = vmul.f32 %v2394, %v2796
    %v2804 = vmul.f32 %v2395, %v2796
    %v2805 = vmul.f32 %v2396, %v2796
    %v2806 = vmul.f32 %v2397, %v2796
    %v2807 = vmul.f32 %v2398, %v2796
    %v2808 = vmul.f32 %v2399, %v2796
    %v2809 = vmul.f32 %v2400, %v2796
    %v2810 = vmul.f32 %v2401, %v2796
    %v2811 = vmul.f32 %v2402, %v2796
    %v2812 = vmul.f32 %v2403, %v2796
    %v2813 = vmul.f32 %v2404, %v2796
    %v2814 = vmul.f32 %v2405, %v2796
    %v2815 = vmul.f32 %v2406, %v2796
    %v2816 = vmul.f32 %v2407, %v2796
    %v2817 = vmul.f32 %v2408, %v2796
    %v2818 = vmul.f32 %v2409, %v2796
    %v2819 = vmul.f32 %v2410, %v2796
    %v2820 = vmul.f32 %v2411, %v2796
    %v2821 = vmul.f32 %v2412, %v2796
    %v2822 = vmul.f32 %v2413, %v2796
    %v2823 = vmul.f32 %v2414, %v2796
    %v2824 = vmul.f32 %v2415, %v2796
    %v2825 = vmul.f32 %v2416, %v2796
    %v2826 = vmul.f32 %v2417, %v2796
    %v2827 = vmul.f32 %v2418, %v2796
    %v2828 = vmul.f32 %v2419, %v2796
    %v2829 = vadd.f32 %v2760, %v2797
    %v2830 = vadd.f32 %v2761, %v2798
    %v2831 = vadd.f32 %v2762, %v2799
    %v2832 = vadd.f32 %v2763, %v2800
    %v2833 = vadd.f32 %v2764, %v2801
    %v2834 = vadd.f32 %v2765, %v2802
    %v2835 = vadd.f32 %v2766, %v2803
    %v2836 = vadd.f32 %v2767, %v2804
    %v2837 = vadd.f32 %v2768, %v2805
    %v2838 = vadd.f32 %v2769, %v2806
    %v2839 = vadd.f32 %v2770, %v2807
    %v2840 = vadd.f32 %v2771, %v2808
    %v2841 = vadd.f32 %v2772, %v2809
    %v2842 = vadd.f32 %v2773, %v2810
    %v2843 = vadd.f32 %v2774, %v2811
    %v2844 = vadd.f32 %v2775, %v2812
    %v2845 = vadd.f32 %v2776, %v2813
    %v2846 = vadd.f32 %v2777, %v2814
    %v2847 = vadd.f32 %v2778, %v2815
    %v2848 = vadd.f32 %v2779, %v2816
    %v2849 = vadd.f32 %v2780, %v2817
    %v2850 = vadd.f32 %v2781, %v2818
    %v2851 = vadd.f32 %v2782, %v2819
    %v2852 = vadd.f32 %v2783, %v2820
    %v2853 = vadd.f32 %v2784, %v2821
    %v2854 = vadd.f32 %v2785, %v2822
    %v2855 = vadd.f32 %v2786, %v2823
    %v2856 = vadd.f32 %v2787, %v2824
    %v2857 = vadd.f32 %v2788, %v2825
    %v2858 = vadd.f32 %v2789, %v2826
    %v2859 = vadd.f32 %v2790, %v2827
    %v2860 = vadd.f32 %v2791, %v2828
    %v2861 = vld [vmem:[%s7 + $0x8] sm:$0x1]
    %v2862 = vlaneseq
    %v2863 = vshrl.u32 %v2862, 7
    %v2864 = vsub.s32 0, %v2863
    %v2865 = vrot.slane %v2861, %v2864
    %v2866 = vmul.f32 %v2452, %v2865
    %v2867 = vmul.f32 %v2453, %v2865
    %v2868 = vmul.f32 %v2454, %v2865
    %v2869 = vmul.f32 %v2455, %v2865
    %v2870 = vmul.f32 %v2456, %v2865
    %v2871 = vmul.f32 %v2457, %v2865
    %v2872 = vmul.f32 %v2458, %v2865
    %v2873 = vmul.f32 %v2459, %v2865
    %v2874 = vmul.f32 %v2460, %v2865
    %v2875 = vmul.f32 %v2461, %v2865
    %v2876 = vmul.f32 %v2462, %v2865
    %v2877 = vmul.f32 %v2463, %v2865
    %v2878 = vmul.f32 %v2464, %v2865
    %v2879 = vmul.f32 %v2465, %v2865
    %v2880 = vmul.f32 %v2466, %v2865
    %v2881 = vmul.f32 %v2467, %v2865
    %v2882 = vmul.f32 %v2468, %v2865
    %v2883 = vmul.f32 %v2469, %v2865
    %v2884 = vmul.f32 %v2470, %v2865
    %v2885 = vmul.f32 %v2471, %v2865
    %v2886 = vmul.f32 %v2472, %v2865
    %v2887 = vmul.f32 %v2473, %v2865
    %v2888 = vmul.f32 %v2474, %v2865
    %v2889 = vmul.f32 %v2475, %v2865
    %v2890 = vmul.f32 %v2476, %v2865
    %v2891 = vmul.f32 %v2477, %v2865
    %v2892 = vmul.f32 %v2478, %v2865
    %v2893 = vmul.f32 %v2479, %v2865
    %v2894 = vmul.f32 %v2480, %v2865
    %v2895 = vmul.f32 %v2481, %v2865
    %v2896 = vmul.f32 %v2482, %v2865
    %v2897 = vmul.f32 %v2483, %v2865
    %v2898 = vadd.f32 %v2829, %v2866
    %v2899 = vadd.f32 %v2830, %v2867
    %v2900 = vadd.f32 %v2831, %v2868
    %v2901 = vadd.f32 %v2832, %v2869
    %v2902 = vadd.f32 %v2833, %v2870
    %v2903 = vadd.f32 %v2834, %v2871
    %v2904 = vadd.f32 %v2835, %v2872
    %v2905 = vadd.f32 %v2836, %v2873
    %v2906 = vadd.f32 %v2837, %v2874
    %v2907 = vadd.f32 %v2838, %v2875
    %v2908 = vadd.f32 %v2839, %v2876
    %v2909 = vadd.f32 %v2840, %v2877
    %v2910 = vadd.f32 %v2841, %v2878
    %v2911 = vadd.f32 %v2842, %v2879
    %v2912 = vadd.f32 %v2843, %v2880
    %v2913 = vadd.f32 %v2844, %v2881
    %v2914 = vadd.f32 %v2845, %v2882
    %v2915 = vadd.f32 %v2846, %v2883
    %v2916 = vadd.f32 %v2847, %v2884
    %v2917 = vadd.f32 %v2848, %v2885
    %v2918 = vadd.f32 %v2849, %v2886
    %v2919 = vadd.f32 %v2850, %v2887
    %v2920 = vadd.f32 %v2851, %v2888
    %v2921 = vadd.f32 %v2852, %v2889
    %v2922 = vadd.f32 %v2853, %v2890
    %v2923 = vadd.f32 %v2854, %v2891
    %v2924 = vadd.f32 %v2855, %v2892
    %v2925 = vadd.f32 %v2856, %v2893
    %v2926 = vadd.f32 %v2857, %v2894
    %v2927 = vadd.f32 %v2858, %v2895
    %v2928 = vadd.f32 %v2859, %v2896
    %v2929 = vadd.f32 %v2860, %v2897
    %v2930 = vrot.slane %v2898, 1
    %v2931 = vrot.slane %v2899, 1
    %v2932 = vrot.slane %v2900, 1
    %v2933 = vrot.slane %v2901, 1
    %v2934 = vrot.slane %v2902, 1
    %v2935 = vrot.slane %v2903, 1
    %v2936 = vrot.slane %v2904, 1
    %v2937 = vrot.slane %v2905, 1
    %v2938 = vrot.slane %v2906, 1
    %v2939 = vrot.slane %v2907, 1
    %v2940 = vrot.slane %v2908, 1
    %v2941 = vrot.slane %v2909, 1
    %v2942 = vrot.slane %v2910, 1
    %v2943 = vrot.slane %v2911, 1
    %v2944 = vrot.slane %v2912, 1
    %v2945 = vrot.slane %v2913, 1
    %v2946 = vrot.slane %v2914, 1
    %v2947 = vrot.slane %v2915, 1
    %v2948 = vrot.slane %v2916, 1
    %v2949 = vrot.slane %v2917, 1
    %v2950 = vrot.slane %v2918, 1
    %v2951 = vrot.slane %v2919, 1
    %v2952 = vrot.slane %v2920, 1
    %v2953 = vrot.slane %v2921, 1
    %v2954 = vrot.slane %v2922, 1
    %v2955 = vrot.slane %v2923, 1
    %v2956 = vrot.slane %v2924, 1
    %v2957 = vrot.slane %v2925, 1
    %v2958 = vrot.slane %v2926, 1
    %v2959 = vrot.slane %v2927, 1
    %v2960 = vrot.slane %v2928, 1
    %v2961 = vrot.slane %v2929, 1
    %v2962 = vsel %vm1730, %v2960, %v2961
    %v2963 = vsel %vm1730, %v2959, %v2960
    %v2964 = vsel %vm1730, %v2958, %v2959
    %v2965 = vsel %vm1730, %v2957, %v2958
    %v2966 = vsel %vm1730, %v2956, %v2957
    %v2967 = vsel %vm1730, %v2955, %v2956
    %v2968 = vsel %vm1730, %v2954, %v2955
    %v2969 = vsel %vm1730, %v2953, %v2954
    %v2970 = vsel %vm1730, %v2952, %v2953
    %v2971 = vsel %vm1730, %v2951, %v2952
    %v2972 = vsel %vm1730, %v2950, %v2951
    %v2973 = vsel %vm1730, %v2949, %v2950
    %v2974 = vsel %vm1730, %v2948, %v2949
    %v2975 = vsel %vm1730, %v2947, %v2948
    %v2976 = vsel %vm1730, %v2946, %v2947
    %v2977 = vsel %vm1730, %v2945, %v2946
    %v2978 = vsel %vm1730, %v2944, %v2945
    %v2979 = vsel %vm1730, %v2943, %v2944
    %v2980 = vsel %vm1730, %v2942, %v2943
    %v2981 = vsel %vm1730, %v2941, %v2942
    %v2982 = vsel %vm1730, %v2940, %v2941
    %v2983 = vsel %vm1730, %v2939, %v2940
    %v2984 = vsel %vm1730, %v2938, %v2939
    %v2985 = vsel %vm1730, %v2937, %v2938
    %v2986 = vsel %vm1730, %v2936, %v2937
    %v2987 = vsel %vm1730, %v2935, %v2936
    %v2988 = vsel %vm1730, %v2934, %v2935
    %v2989 = vsel %vm1730, %v2933, %v2934
    %v2990 = vsel %vm1730, %v2932, %v2933
    %v2991 = vsel %vm1730, %v2931, %v2932
    %v2992 = vsel %vm1730, %v2930, %v2931
    %v2993 = vsel %vm1730, %v2961, %v2930
    %v2994 = vmul.f32 %v2992, %v907
    %v2995 = vmul.f32 %v2991, %v908
    %v2996 = vmul.f32 %v2990, %v909
    %v2997 = vmul.f32 %v2989, %v910
    %v2998 = vmul.f32 %v2988, %v911
    %v2999 = vmul.f32 %v2987, %v912
    %v3000 = vmul.f32 %v2986, %v913
    %v3001 = vmul.f32 %v2985, %v914
    %v3002 = vmul.f32 %v2984, %v915
    %v3003 = vmul.f32 %v2983, %v916
    %v3004 = vmul.f32 %v2982, %v917
    %v3005 = vmul.f32 %v2981, %v918
    %v3006 = vmul.f32 %v2980, %v919
    %v3007 = vmul.f32 %v2979, %v920
    %v3008 = vmul.f32 %v2978, %v921
    %v3009 = vmul.f32 %v2977, %v922
    %v3010 = vmul.f32 %v2976, %v923
    %v3011 = vmul.f32 %v2975, %v924
    %v3012 = vmul.f32 %v2974, %v925
    %v3013 = vmul.f32 %v2973, %v926
    %v3014 = vmul.f32 %v2972, %v927
    %v3015 = vmul.f32 %v2971, %v928
    %v3016 = vmul.f32 %v2970, %v929
    %v3017 = vmul.f32 %v2969, %v930
    %v3018 = vmul.f32 %v2968, %v931
    %v3019 = vmul.f32 %v2967, %v932
    %v3020 = vmul.f32 %v2966, %v933
    %v3021 = vmul.f32 %v2965, %v934
    %v3022 = vmul.f32 %v2964, %v935
    %v3023 = vmul.f32 %v2963, %v936
    %v3024 = vmul.f32 %v2962, %v937
    %v3025 = vmul.f32 %v2993, %v938
    %v3026 = vld [vmem:[%s7 + $0x1] sm:$0x1]
    %v3027 = vlaneseq
    %v3028 = vshrl.u32 %v3027, 7
    %v3029 = vsub.s32 0, %v3028
    %v3030 = vrot.slane %v3026, %v3029
    %v3031 = vmul.f32 %v2420, %v3030
    %v3032 = vmul.f32 %v2421, %v3030
    %v3033 = vmul.f32 %v2422, %v3030
    %v3034 = vmul.f32 %v2423, %v3030
    %v3035 = vmul.f32 %v2424, %v3030
    %v3036 = vmul.f32 %v2425, %v3030
    %v3037 = vmul.f32 %v2426, %v3030
    %v3038 = vmul.f32 %v2427, %v3030
    %v3039 = vmul.f32 %v2428, %v3030
    %v3040 = vmul.f32 %v2429, %v3030
    %v3041 = vmul.f32 %v2430, %v3030
    %v3042 = vmul.f32 %v2431, %v3030
    %v3043 = vmul.f32 %v2432, %v3030
    %v3044 = vmul.f32 %v2433, %v3030
    %v3045 = vmul.f32 %v2434, %v3030
    %v3046 = vmul.f32 %v2435, %v3030
    %v3047 = vmul.f32 %v2436, %v3030
    %v3048 = vmul.f32 %v2437, %v3030
    %v3049 = vmul.f32 %v2438, %v3030
    %v3050 = vmul.f32 %v2439, %v3030
    %v3051 = vmul.f32 %v2440, %v3030
    %v3052 = vmul.f32 %v2441, %v3030
    %v3053 = vmul.f32 %v2442, %v3030
    %v3054 = vmul.f32 %v2443, %v3030
    %v3055 = vmul.f32 %v2444, %v3030
    %v3056 = vmul.f32 %v2445, %v3030
    %v3057 = vmul.f32 %v2446, %v3030
    %v3058 = vmul.f32 %v2447, %v3030
    %v3059 = vmul.f32 %v2448, %v3030
    %v3060 = vmul.f32 %v2449, %v3030
    %v3061 = vmul.f32 %v2450, %v3030
    %v3062 = vmul.f32 %v2451, %v3030
    %v3063 = vld [vmem:[%s7 + $0x4] sm:$0x1]
    %v3064 = vlaneseq
    %v3065 = vshrl.u32 %v3064, 7
    %v3066 = vsub.s32 0, %v3065
    %v3067 = vrot.slane %v3063, %v3066
    %v3068 = vmul.f32 %v2388, %v3067
    %v3069 = vmul.f32 %v2389, %v3067
    %v3070 = vmul.f32 %v2390, %v3067
    %v3071 = vmul.f32 %v2391, %v3067
    %v3072 = vmul.f32 %v2392, %v3067
    %v3073 = vmul.f32 %v2393, %v3067
    %v3074 = vmul.f32 %v2394, %v3067
    %v3075 = vmul.f32 %v2395, %v3067
    %v3076 = vmul.f32 %v2396, %v3067
    %v3077 = vmul.f32 %v2397, %v3067
    %v3078 = vmul.f32 %v2398, %v3067
    %v3079 = vmul.f32 %v2399, %v3067
    %v3080 = vmul.f32 %v2400, %v3067
    %v3081 = vmul.f32 %v2401, %v3067
    %v3082 = vmul.f32 %v2402, %v3067
    %v3083 = vmul.f32 %v2403, %v3067
    %v3084 = vmul.f32 %v2404, %v3067
    %v3085 = vmul.f32 %v2405, %v3067
    %v3086 = vmul.f32 %v2406, %v3067
    %v3087 = vmul.f32 %v2407, %v3067
    %v3088 = vmul.f32 %v2408, %v3067
    %v3089 = vmul.f32 %v2409, %v3067
    %v3090 = vmul.f32 %v2410, %v3067
    %v3091 = vmul.f32 %v2411, %v3067
    %v3092 = vmul.f32 %v2412, %v3067
    %v3093 = vmul.f32 %v2413, %v3067
    %v3094 = vmul.f32 %v2414, %v3067
    %v3095 = vmul.f32 %v2415, %v3067
    %v3096 = vmul.f32 %v2416, %v3067
    %v3097 = vmul.f32 %v2417, %v3067
    %v3098 = vmul.f32 %v2418, %v3067
    %v3099 = vmul.f32 %v2419, %v3067
    %v3100 = vadd.f32 %v3031, %v3068
    %v3101 = vadd.f32 %v3032, %v3069
    %v3102 = vadd.f32 %v3033, %v3070
    %v3103 = vadd.f32 %v3034, %v3071
    %v3104 = vadd.f32 %v3035, %v3072
    %v3105 = vadd.f32 %v3036, %v3073
    %v3106 = vadd.f32 %v3037, %v3074
    %v3107 = vadd.f32 %v3038, %v3075
    %v3108 = vadd.f32 %v3039, %v3076
    %v3109 = vadd.f32 %v3040, %v3077
    %v3110 = vadd.f32 %v3041, %v3078
    %v3111 = vadd.f32 %v3042, %v3079
    %v3112 = vadd.f32 %v3043, %v3080
    %v3113 = vadd.f32 %v3044, %v3081
    %v3114 = vadd.f32 %v3045, %v3082
    %v3115 = vadd.f32 %v3046, %v3083
    %v3116 = vadd.f32 %v3047, %v3084
    %v3117 = vadd.f32 %v3048, %v3085
    %v3118 = vadd.f32 %v3049, %v3086
    %v3119 = vadd.f32 %v3050, %v3087
    %v3120 = vadd.f32 %v3051, %v3088
    %v3121 = vadd.f32 %v3052, %v3089
    %v3122 = vadd.f32 %v3053, %v3090
    %v3123 = vadd.f32 %v3054, %v3091
    %v3124 = vadd.f32 %v3055, %v3092
    %v3125 = vadd.f32 %v3056, %v3093
    %v3126 = vadd.f32 %v3057, %v3094
    %v3127 = vadd.f32 %v3058, %v3095
    %v3128 = vadd.f32 %v3059, %v3096
    %v3129 = vadd.f32 %v3060, %v3097
    %v3130 = vadd.f32 %v3061, %v3098
    %v3131 = vadd.f32 %v3062, %v3099
    %v3132 = vld [vmem:[%s7 + $0x7] sm:$0x1]
    %v3133 = vlaneseq
    %v3134 = vshrl.u32 %v3133, 7
    %v3135 = vsub.s32 0, %v3134
    %v3136 = vrot.slane %v3132, %v3135
    %v3137 = vmul.f32 %v2452, %v3136
    %v3138 = vmul.f32 %v2453, %v3136
    %v3139 = vmul.f32 %v2454, %v3136
    %v3140 = vmul.f32 %v2455, %v3136
    %v3141 = vmul.f32 %v2456, %v3136
    %v3142 = vmul.f32 %v2457, %v3136
    %v3143 = vmul.f32 %v2458, %v3136
    %v3144 = vmul.f32 %v2459, %v3136
    %v3145 = vmul.f32 %v2460, %v3136
    %v3146 = vmul.f32 %v2461, %v3136
    %v3147 = vmul.f32 %v2462, %v3136
    %v3148 = vmul.f32 %v2463, %v3136
    %v3149 = vmul.f32 %v2464, %v3136
    %v3150 = vmul.f32 %v2465, %v3136
    %v3151 = vmul.f32 %v2466, %v3136
    %v3152 = vmul.f32 %v2467, %v3136
    %v3153 = vmul.f32 %v2468, %v3136
    %v3154 = vmul.f32 %v2469, %v3136
    %v3155 = vmul.f32 %v2470, %v3136
    %v3156 = vmul.f32 %v2471, %v3136
    %v3157 = vmul.f32 %v2472, %v3136
    %v3158 = vmul.f32 %v2473, %v3136
    %v3159 = vmul.f32 %v2474, %v3136
    %v3160 = vmul.f32 %v2475, %v3136
    %v3161 = vmul.f32 %v2476, %v3136
    %v3162 = vmul.f32 %v2477, %v3136
    %v3163 = vmul.f32 %v2478, %v3136
    %v3164 = vmul.f32 %v2479, %v3136
    %v3165 = vmul.f32 %v2480, %v3136
    %v3166 = vmul.f32 %v2481, %v3136
    %v3167 = vmul.f32 %v2482, %v3136
    %v3168 = vmul.f32 %v2483, %v3136
    %v3169 = vadd.f32 %v3100, %v3137
    %v3170 = vadd.f32 %v3101, %v3138
    %v3171 = vadd.f32 %v3102, %v3139
    %v3172 = vadd.f32 %v3103, %v3140
    %v3173 = vadd.f32 %v3104, %v3141
    %v3174 = vadd.f32 %v3105, %v3142
    %v3175 = vadd.f32 %v3106, %v3143
    %v3176 = vadd.f32 %v3107, %v3144
    %v3177 = vadd.f32 %v3108, %v3145
    %v3178 = vadd.f32 %v3109, %v3146
    %v3179 = vadd.f32 %v3110, %v3147
    %v3180 = vadd.f32 %v3111, %v3148
    %v3181 = vadd.f32 %v3112, %v3149
    %v3182 = vadd.f32 %v3113, %v3150
    %v3183 = vadd.f32 %v3114, %v3151
    %v3184 = vadd.f32 %v3115, %v3152
    %v3185 = vadd.f32 %v3116, %v3153
    %v3186 = vadd.f32 %v3117, %v3154
    %v3187 = vadd.f32 %v3118, %v3155
    %v3188 = vadd.f32 %v3119, %v3156
    %v3189 = vadd.f32 %v3120, %v3157
    %v3190 = vadd.f32 %v3121, %v3158
    %v3191 = vadd.f32 %v3122, %v3159
    %v3192 = vadd.f32 %v3123, %v3160
    %v3193 = vadd.f32 %v3124, %v3161
    %v3194 = vadd.f32 %v3125, %v3162
    %v3195 = vadd.f32 %v3126, %v3163
    %v3196 = vadd.f32 %v3127, %v3164
    %v3197 = vadd.f32 %v3128, %v3165
    %v3198 = vadd.f32 %v3129, %v3166
    %v3199 = vadd.f32 %v3130, %v3167
    %v3200 = vadd.f32 %v3131, %v3168
    %v3201 = vadd.f32 %v3169, %v2723
    %v3202 = vadd.f32 %v3170, %v2724
    %v3203 = vadd.f32 %v3171, %v2725
    %v3204 = vadd.f32 %v3172, %v2726
    %v3205 = vadd.f32 %v3173, %v2727
    %v3206 = vadd.f32 %v3174, %v2728
    %v3207 = vadd.f32 %v3175, %v2729
    %v3208 = vadd.f32 %v3176, %v2730
    %v3209 = vadd.f32 %v3177, %v2731
    %v3210 = vadd.f32 %v3178, %v2732
    %v3211 = vadd.f32 %v3179, %v2733
    %v3212 = vadd.f32 %v3180, %v2734
    %v3213 = vadd.f32 %v3181, %v2735
    %v3214 = vadd.f32 %v3182, %v2736
    %v3215 = vadd.f32 %v3183, %v2737
    %v3216 = vadd.f32 %v3184, %v2738
    %v3217 = vadd.f32 %v3185, %v2739
    %v3218 = vadd.f32 %v3186, %v2740
    %v3219 = vadd.f32 %v3187, %v2741
    %v3220 = vadd.f32 %v3188, %v2742
    %v3221 = vadd.f32 %v3189, %v2743
    %v3222 = vadd.f32 %v3190, %v2744
    %v3223 = vadd.f32 %v3191, %v2745
    %v3224 = vadd.f32 %v3192, %v2746
    %v3225 = vadd.f32 %v3193, %v2747
    %v3226 = vadd.f32 %v3194, %v2748
    %v3227 = vadd.f32 %v3195, %v2749
    %v3228 = vadd.f32 %v3196, %v2750
    %v3229 = vadd.f32 %v3197, %v2751
    %v3230 = vadd.f32 %v3198, %v2752
    %v3231 = vadd.f32 %v3199, %v2753
    %v3232 = vadd.f32 %v3200, %v2754
    %v3233 = vadd.f32 %v3201, %v2994
    %v3234 = vadd.f32 %v3202, %v2995
    %v3235 = vadd.f32 %v3203, %v2996
    %v3236 = vadd.f32 %v3204, %v2997
    %v3237 = vadd.f32 %v3205, %v2998
    %v3238 = vadd.f32 %v3206, %v2999
    %v3239 = vadd.f32 %v3207, %v3000
    %v3240 = vadd.f32 %v3208, %v3001
    %v3241 = vadd.f32 %v3209, %v3002
    %v3242 = vadd.f32 %v3210, %v3003
    %v3243 = vadd.f32 %v3211, %v3004
    %v3244 = vadd.f32 %v3212, %v3005
    %v3245 = vadd.f32 %v3213, %v3006
    %v3246 = vadd.f32 %v3214, %v3007
    %v3247 = vadd.f32 %v3215, %v3008
    %v3248 = vadd.f32 %v3216, %v3009
    %v3249 = vadd.f32 %v3217, %v3010
    %v3250 = vadd.f32 %v3218, %v3011
    %v3251 = vadd.f32 %v3219, %v3012
    %v3252 = vadd.f32 %v3220, %v3013
    %v3253 = vadd.f32 %v3221, %v3014
    %v3254 = vadd.f32 %v3222, %v3015
    %v3255 = vadd.f32 %v3223, %v3016
    %v3256 = vadd.f32 %v3224, %v3017
    %v3257 = vadd.f32 %v3225, %v3018
    %v3258 = vadd.f32 %v3226, %v3019
    %v3259 = vadd.f32 %v3227, %v3020
    %v3260 = vadd.f32 %v3228, %v3021
    %v3261 = vadd.f32 %v3229, %v3022
    %v3262 = vadd.f32 %v3230, %v3023
    %v3263 = vadd.f32 %v3231, %v3024
    %v3264 = vadd.f32 %v3232, %v3025
    %v3265 = vld [vmem:[%s8] sm:$0x1]
    %v3267 = vlaneseq
    %v3268 = vshrl.u32 %v3267, 7
    %v3269 = vsub.s32 0, %v3268
    %v3270 = vrot.slane %v3265, %v3269
    %v3272 = vmul.f32 %v3233, %v3270
    %v3273 = vmul.f32 %v3234, %v3270
    %v3274 = vmul.f32 %v3235, %v3270
    %v3275 = vmul.f32 %v3236, %v3270
    %v3276 = vmul.f32 %v3237, %v3270
    %v3277 = vmul.f32 %v3238, %v3270
    %v3278 = vmul.f32 %v3239, %v3270
    %v3279 = vmul.f32 %v3240, %v3270
    %v3280 = vmul.f32 %v3241, %v3270
    %v3281 = vmul.f32 %v3242, %v3270
    %v3282 = vmul.f32 %v3243, %v3270
    %v3283 = vmul.f32 %v3244, %v3270
    %v3284 = vmul.f32 %v3245, %v3270
    %v3285 = vmul.f32 %v3246, %v3270
    %v3286 = vmul.f32 %v3247, %v3270
    %v3287 = vmul.f32 %v3248, %v3270
    %v3288 = vmul.f32 %v3249, %v3270
    %v3289 = vmul.f32 %v3250, %v3270
    %v3290 = vmul.f32 %v3251, %v3270
    %v3291 = vmul.f32 %v3252, %v3270
    %v3292 = vmul.f32 %v3253, %v3270
    %v3293 = vmul.f32 %v3254, %v3270
    %v3294 = vmul.f32 %v3255, %v3270
    %v3295 = vmul.f32 %v3256, %v3270
    %v3296 = vmul.f32 %v3257, %v3270
    %v3297 = vmul.f32 %v3258, %v3270
    %v3298 = vmul.f32 %v3259, %v3270
    %v3299 = vmul.f32 %v3260, %v3270
    %v3300 = vmul.f32 %v3261, %v3270
    %v3301 = vmul.f32 %v3262, %v3270
    %v3302 = vmul.f32 %v3263, %v3270
    %v3303 = vmul.f32 %v3264, %v3270
    %v3304 = vld [vmem:[%s9] sm:$0x1]
    %v3306 = vlaneseq
    %v3307 = vshrl.u32 %v3306, 7
    %v3308 = vsub.s32 0, %v3307
    %v3309 = vrot.slane %v3304, %v3308
    %v3311 = vadd.f32 %v3272, %v3309
    %v3312 = vadd.f32 %v3273, %v3309
    %v3313 = vadd.f32 %v3274, %v3309
    %v3314 = vadd.f32 %v3275, %v3309
    %v3315 = vadd.f32 %v3276, %v3309
    %v3316 = vadd.f32 %v3277, %v3309
    %v3317 = vadd.f32 %v3278, %v3309
    %v3318 = vadd.f32 %v3279, %v3309
    %v3319 = vadd.f32 %v3280, %v3309
    %v3320 = vadd.f32 %v3281, %v3309
    %v3321 = vadd.f32 %v3282, %v3309
    %v3322 = vadd.f32 %v3283, %v3309
    %v3323 = vadd.f32 %v3284, %v3309
    %v3324 = vadd.f32 %v3285, %v3309
    %v3325 = vadd.f32 %v3286, %v3309
    %v3326 = vadd.f32 %v3287, %v3309
    %v3327 = vadd.f32 %v3288, %v3309
    %v3328 = vadd.f32 %v3289, %v3309
    %v3329 = vadd.f32 %v3290, %v3309
    %v3330 = vadd.f32 %v3291, %v3309
    %v3331 = vadd.f32 %v3292, %v3309
    %v3332 = vadd.f32 %v3293, %v3309
    %v3333 = vadd.f32 %v3294, %v3309
    %v3334 = vadd.f32 %v3295, %v3309
    %v3335 = vadd.f32 %v3296, %v3309
    %v3336 = vadd.f32 %v3297, %v3309
    %v3337 = vadd.f32 %v3298, %v3309
    %v3338 = vadd.f32 %v3299, %v3309
    %v3339 = vadd.f32 %v3300, %v3309
    %v3340 = vadd.f32 %v3301, %v3309
    %v3341 = vadd.f32 %v3302, %v3309
    %v3342 = vadd.f32 %v3303, %v3309
    %v3343 = vpack.c.bf16 %v3312, %v3311
    %v3344 = vpack.c.bf16 %v3314, %v3313
    %v3345 = vpack.c.bf16 %v3316, %v3315
    %v3346 = vpack.c.bf16 %v3318, %v3317
    %v3347 = vpack.c.bf16 %v3320, %v3319
    %v3348 = vpack.c.bf16 %v3322, %v3321
    %v3349 = vpack.c.bf16 %v3324, %v3323
    %v3350 = vpack.c.bf16 %v3326, %v3325
    %v3351 = vpack.c.bf16 %v3328, %v3327
    %v3352 = vpack.c.bf16 %v3330, %v3329
    %v3353 = vpack.c.bf16 %v3332, %v3331
    %v3354 = vpack.c.bf16 %v3334, %v3333
    %v3355 = vpack.c.bf16 %v3336, %v3335
    %v3356 = vpack.c.bf16 %v3338, %v3337
    %v3357 = vpack.c.bf16 %v3340, %v3339
    %v3358 = vpack.c.bf16 %v3342, %v3341
    %v3359 = vld [vmem:[#allocation10] sm:$0xf]
    %v3360 = vld [vmem:[#allocation10 + $0x4] sm:$0xf]
    %v3361 = vld [vmem:[#allocation10 + $0x8] sm:$0xf]
    %v3362 = vld [vmem:[#allocation10 + $0xc] sm:$0xf]
    %v3363 = vld [vmem:[#allocation10 + $0x10] sm:$0xf]
    %v3364 = vld [vmem:[#allocation10 + $0x14] sm:$0xf]
    %v3365 = vld [vmem:[#allocation10 + $0x18] sm:$0xf]
    %v3366 = vld [vmem:[#allocation10 + $0x1c] sm:$0xf]
    %v3367 = vld [vmem:[#allocation10 + $0x20] sm:$0xf]
    %v3368 = vld [vmem:[#allocation10 + $0x24] sm:$0xf]
    %v3369 = vld [vmem:[#allocation10 + $0x28] sm:$0xf]
    %v3370 = vld [vmem:[#allocation10 + $0x2c] sm:$0xf]
    %v3371 = vld [vmem:[#allocation10 + $0x30] sm:$0xf]
    %v3372 = vld [vmem:[#allocation10 + $0x34] sm:$0xf]
    %v3373 = vld [vmem:[#allocation10 + $0x38] sm:$0xf]
    %v3374 = vld [vmem:[#allocation10 + $0x3c] sm:$0xf]
    %v3391 = vunpack.c.l.b16 %v3359
    %v3392 = vunpack.c.l.b16 %v3360
    %v3393 = vunpack.c.l.b16 %v3361
    %v3394 = vunpack.c.l.b16 %v3362
    %v3395 = vunpack.c.l.b16 %v3363
    %v3396 = vunpack.c.l.b16 %v3364
    %v3397 = vunpack.c.l.b16 %v3365
    %v3398 = vunpack.c.l.b16 %v3366
    %v3399 = vunpack.c.l.b16 %v3367
    %v3400 = vunpack.c.l.b16 %v3368
    %v3401 = vunpack.c.l.b16 %v3369
    %v3402 = vunpack.c.l.b16 %v3370
    %v3403 = vunpack.c.l.b16 %v3371
    %v3404 = vunpack.c.l.b16 %v3372
    %v3405 = vunpack.c.l.b16 %v3373
    %v3406 = vunpack.c.l.b16 %v3374
    %v3407 = vpack.c.b16 %v3392, %v3391
    %v3408 = vpack.c.b16 %v3394, %v3393
    %v3409 = vpack.c.b16 %v3396, %v3395
    %v3410 = vpack.c.b16 %v3398, %v3397
    %v3411 = vpack.c.b16 %v3400, %v3399
    %v3412 = vpack.c.b16 %v3402, %v3401
    %v3413 = vpack.c.b16 %v3404, %v3403
    %v3414 = vpack.c.b16 %v3406, %v3405
    %3423 = vmatprep.subr.bf16.mxu0 0
    %3424 = vmatpush1.bf16.msra.mxu0 %v3407
    %3425 = vmatprep.subr.bf16.mxu0 0
    %3426 = vmatpush1.bf16.msra.mxu0 %v3408
    %3427 = vmatprep.subr.bf16.mxu0 0
    %3428 = vmatpush1.bf16.msra.mxu0 %v3409
    %3429 = vmatprep.subr.bf16.mxu0 0
    %3430 = vmatpush1.bf16.msra.mxu0 %v3410
    %3431 = vmatprep.subr.bf16.mxu0 0
    %3432 = vmatpush1.bf16.msra.mxu0 %v3411
    %3433 = vmatprep.subr.bf16.mxu0 0
    %3434 = vmatpush1.bf16.msra.mxu0 %v3412
    %3435 = vmatprep.subr.bf16.mxu0 0
    %3436 = vmatpush1.bf16.msra.mxu0 %v3413
    %3437 = vmatprep.subr.bf16.mxu0 0
    %3438 = vmatpush1.bf16.msra.mxu0 %v3414
    %3439 = vmatprep.subr.bf16.mxu0 0
    %3440 = vmatpush1.bf16.msra.mxu0 0
    %3441 = vmatprep.subr.bf16.mxu0 0
    %3442 = vmatpush1.bf16.msra.mxu0 0
    %3443 = vmatprep.subr.bf16.mxu0 0
    %3444 = vmatpush1.bf16.msra.mxu0 0
    %3445 = vmatprep.subr.bf16.mxu0 0
    %3446 = vmatpush1.bf16.msra.mxu0 0
    %3447 = vmatprep.subr.bf16.mxu0 0
    %3448 = vmatpush1.bf16.msra.mxu0 0
    %3449 = vmatprep.subr.bf16.mxu0 0
    %3450 = vmatpush1.bf16.msra.mxu0 0
    %3451 = vmatprep.subr.bf16.mxu0 0
    %3452 = vmatpush1.bf16.msra.mxu0 0
    %3453 = vmatprep.subr.bf16.mxu0 0
    %3454 = vmatpush1.bf16.msra.mxu0 0
    %3455 = vmatprep.mubr.bf16.mxu0 0
    %3456 = vmatmul.mubr.bf16.gmra.mrb[0].mxu0 %v3343
    %v3457 = vpop.f32.mrb[0].mxu0
    %v3458 = vadd.f32 %v1061, %v3457
    %v3459 = vpop.f32.mrb[0].mxu0
    %v3460 = vpop.f32.mrb[0].mxu0
    %v3461 = vadd.f32 %v1064, %v3460
    %v3462 = vpop.f32.mrb[0].mxu0
    %3463 = vmatprep.mubr.bf16.mxu0 0
    %3464 = vmatmul.mubr.bf16.gmra.mrb[0].mxu0 %v3344
    %v3465 = vpop.f32.mrb[0].mxu0
    %v3466 = vadd.f32 %v1069, %v3465
    %v3467 = vpop.f32.mrb[0].mxu0
    %v3468 = vpop.f32.mrb[0].mxu0
    %v3469 = vadd.f32 %v1072, %v3468
    %v3470 = vpop.f32.mrb[0].mxu0
    %3471 = vmatprep.mubr.bf16.mxu0 0
    %3472 = vmatmul.mubr.bf16.gmra.mrb[0].mxu0 %v3345
    %v3473 = vpop.f32.mrb[0].mxu0
    %v3474 = vadd.f32 %v1077, %v3473
    %v3475 = vpop.f32.mrb[0].mxu0
    %v3476 = vpop.f32.mrb[0].mxu0
    %v3477 = vadd.f32 %v1080, %v3476
    %v3478 = vpop.f32.mrb[0].mxu0
    %3479 = vmatprep.mubr.bf16.mxu0 0
    %3480 = vmatmul.mubr.bf16.gmra.mrb[0].mxu0 %v3346
    %v3481 = vpop.f32.mrb[0].mxu0
    %v3482 = vadd.f32 %v1085, %v3481
    %v3483 = vpop.f32.mrb[0].mxu0
    %v3484 = vpop.f32.mrb[0].mxu0
    %v3485 = vadd.f32 %v1088, %v3484
    %v3486 = vpop.f32.mrb[0].mxu0
    %3487 = vmatprep.mubr.bf16.mxu0 0
    %3488 = vmatmul.mubr.bf16.gmra.mrb[0].mxu0 %v3347
    %v3489 = vpop.f32.mrb[0].mxu0
    %v3490 = vadd.f32 %v1093, %v3489
    %v3491 = vpop.f32.mrb[0].mxu0
    %v3492 = vpop.f32.mrb[0].mxu0
    %v3493 = vadd.f32 %v1096, %v3492
    %v3494 = vpop.f32.mrb[0].mxu0
    %3495 = vmatprep.mubr.bf16.mxu0 0
    %3496 = vmatmul.mubr.bf16.gmra.mrb[0].mxu0 %v3348
    %v3497 = vpop.f32.mrb[0].mxu0
    %v3498 = vadd.f32 %v1101, %v3497
    %v3499 = vpop.f32.mrb[0].mxu0
    %v3500 = vpop.f32.mrb[0].mxu0
    %v3501 = vadd.f32 %v1104, %v3500
    %v3502 = vpop.f32.mrb[0].mxu0
    %3503 = vmatprep.mubr.bf16.mxu0 0
    %3504 = vmatmul.mubr.bf16.gmra.mrb[0].mxu0 %v3349
    %v3505 = vpop.f32.mrb[0].mxu0
    %v3506 = vadd.f32 %v1109, %v3505
    %v3507 = vpop.f32.mrb[0].mxu0
    %v3508 = vpop.f32.mrb[0].mxu0
    %v3509 = vadd.f32 %v1112, %v3508
    %v3510 = vpop.f32.mrb[0].mxu0
    %3511 = vmatprep.mubr.bf16.mxu0 0
    %3512 = vmatmul.mubr.bf16.gmra.mrb[0].mxu0 %v3350
    %v3513 = vpop.f32.mrb[0].mxu0
    %v3514 = vadd.f32 %v1117, %v3513
    %v3515 = vpop.f32.mrb[0].mxu0
    %v3516 = vpop.f32.mrb[0].mxu0
    %v3517 = vadd.f32 %v1120, %v3516
    %v3518 = vpop.f32.mrb[0].mxu0
    %3519 = vmatprep.mubr.bf16.mxu0 0
    %3520 = vmatmul.mubr.bf16.gmra.mrb[0].mxu0 %v3351
    %v3521 = vpop.f32.mrb[0].mxu0
    %v3522 = vadd.f32 %v1125, %v3521
    %v3523 = vpop.f32.mrb[0].mxu0
    %v3524 = vpop.f32.mrb[0].mxu0
    %v3525 = vadd.f32 %v1128, %v3524
    %v3526 = vpop.f32.mrb[0].mxu0
    %3527 = vmatprep.mubr.bf16.mxu0 0
    %3528 = vmatmul.mubr.bf16.gmra.mrb[0].mxu0 %v3352
    %v3529 = vpop.f32.mrb[0].mxu0
    %v3530 = vadd.f32 %v1133, %v3529
    %v3531 = vpop.f32.mrb[0].mxu0
    %v3532 = vpop.f32.mrb[0].mxu0
    %v3533 = vadd.f32 %v1136, %v3532
    %v3534 = vpop.f32.mrb[0].mxu0
    %3535 = vmatprep.mubr.bf16.mxu0 0
    %3536 = vmatmul.mubr.bf16.gmra.mrb[0].mxu0 %v3353
    %v3537 = vpop.f32.mrb[0].mxu0
    %v3538 = vadd.f32 %v1141, %v3537
    %v3539 = vpop.f32.mrb[0].mxu0
    %v3540 = vpop.f32.mrb[0].mxu0
    %v3541 = vadd.f32 %v1144, %v3540
    %v3542 = vpop.f32.mrb[0].mxu0
    %3543 = vmatprep.mubr.bf16.mxu0 0
    %3544 = vmatmul.mubr.bf16.gmra.mrb[0].mxu0 %v3354
    %v3545 = vpop.f32.mrb[0].mxu0
    %v3546 = vadd.f32 %v1149, %v3545
    %v3547 = vpop.f32.mrb[0].mxu0
    %v3548 = vpop.f32.mrb[0].mxu0
    %v3549 = vadd.f32 %v1152, %v3548
    %v3550 = vpop.f32.mrb[0].mxu0
    %3551 = vmatprep.mubr.bf16.mxu0 0
    %3552 = vmatmul.mubr.bf16.gmra.mrb[0].mxu0 %v3355
    %v3553 = vpop.f32.mrb[0].mxu0
    %v3554 = vadd.f32 %v1157, %v3553
    %v3555 = vpop.f32.mrb[0].mxu0
    %v3556 = vpop.f32.mrb[0].mxu0
    %v3557 = vadd.f32 %v1160, %v3556
    %v3558 = vpop.f32.mrb[0].mxu0
    %3559 = vmatprep.mubr.bf16.mxu0 0
    %3560 = vmatmul.mubr.bf16.gmra.mrb[0].mxu0 %v3356
    %v3561 = vpop.f32.mrb[0].mxu0
    %v3562 = vadd.f32 %v1165, %v3561
    %v3563 = vpop.f32.mrb[0].mxu0
    %v3564 = vpop.f32.mrb[0].mxu0
    %v3565 = vadd.f32 %v1168, %v3564
    %v3566 = vpop.f32.mrb[0].mxu0
    %3567 = vmatprep.mubr.bf16.mxu0 0
    %3568 = vmatmul.mubr.bf16.gmra.mrb[0].mxu0 %v3357
    %v3569 = vpop.f32.mrb[0].mxu0
    %v3570 = vadd.f32 %v1173, %v3569
    %v3571 = vpop.f32.mrb[0].mxu0
    %v3572 = vpop.f32.mrb[0].mxu0
    %v3573 = vadd.f32 %v1176, %v3572
    %v3574 = vpop.f32.mrb[0].mxu0
    %3575 = vmatprep.mubr.bf16.mxu0 0
    %3576 = vmatmul.mubr.bf16.gmra.mrb[0].mxu0 %v3358
    %v3577 = vpop.f32.mrb[0].mxu0
    %v3578 = vadd.f32 %v1181, %v3577
    %v3579 = vpop.f32.mrb[0].mxu0
    %v3580 = vpop.f32.mrb[0].mxu0
    %v3581 = vadd.f32 %v1184, %v3580
    %v3582 = vpop.f32.mrb[0].mxu0
    %3583 = vdwg.mxu0
    %v3584 = vmax.f32 %v3458, 0.0
    %v3585 = vmax.f32 %v3461, 0.0
    %v3586 = vmax.f32 %v3466, 0.0
    %v3587 = vmax.f32 %v3469, 0.0
    %v3588 = vmax.f32 %v3474, 0.0
    %v3589 = vmax.f32 %v3477, 0.0
    %v3590 = vmax.f32 %v3482, 0.0
    %v3591 = vmax.f32 %v3485, 0.0
    %v3592 = vmax.f32 %v3490, 0.0
    %v3593 = vmax.f32 %v3493, 0.0
    %v3594 = vmax.f32 %v3498, 0.0
    %v3595 = vmax.f32 %v3501, 0.0
    %v3596 = vmax.f32 %v3506, 0.0
    %v3597 = vmax.f32 %v3509, 0.0
    %v3598 = vmax.f32 %v3514, 0.0
    %v3599 = vmax.f32 %v3517, 0.0
    %v3600 = vmax.f32 %v3522, 0.0
    %v3601 = vmax.f32 %v3525, 0.0
    %v3602 = vmax.f32 %v3530, 0.0
    %v3603 = vmax.f32 %v3533, 0.0
    %v3604 = vmax.f32 %v3538, 0.0
    %v3605 = vmax.f32 %v3541, 0.0
    %v3606 = vmax.f32 %v3546, 0.0
    %v3607 = vmax.f32 %v3549, 0.0
    %v3608 = vmax.f32 %v3554, 0.0
    %v3609 = vmax.f32 %v3557, 0.0
    %v3610 = vmax.f32 %v3562, 0.0
    %v3611 = vmax.f32 %v3565, 0.0
    %v3612 = vmax.f32 %v3570, 0.0
    %v3613 = vmax.f32 %v3573, 0.0
    %v3614 = vmax.f32 %v3578, 0.0
    %v3615 = vmax.f32 %v3581, 0.0
    %v3616 = vmin.f32 %v3584, 6.0
    %v3617 = vmin.f32 %v3585, 6.0
    %v3618 = vmin.f32 %v3586, 6.0
    %v3619 = vmin.f32 %v3587, 6.0
    %v3620 = vmin.f32 %v3588, 6.0
    %v3621 = vmin.f32 %v3589, 6.0
    %v3622 = vmin.f32 %v3590, 6.0
    %v3623 = vmin.f32 %v3591, 6.0
    %v3624 = vmin.f32 %v3592, 6.0
    %v3625 = vmin.f32 %v3593, 6.0
    %v3626 = vmin.f32 %v3594, 6.0
    %v3627 = vmin.f32 %v3595, 6.0
    %v3628 = vmin.f32 %v3596, 6.0
    %v3629 = vmin.f32 %v3597, 6.0
    %v3630 = vmin.f32 %v3598, 6.0
    %v3631 = vmin.f32 %v3599, 6.0
    %v3632 = vmin.f32 %v3600, 6.0
    %v3633 = vmin.f32 %v3601, 6.0
    %v3634 = vmin.f32 %v3602, 6.0
    %v3635 = vmin.f32 %v3603, 6.0
    %v3636 = vmin.f32 %v3604, 6.0
    %v3637 = vmin.f32 %v3605, 6.0
    %v3638 = vmin.f32 %v3606, 6.0
    %v3639 = vmin.f32 %v3607, 6.0
    %v3640 = vmin.f32 %v3608, 6.0
    %v3641 = vmin.f32 %v3609, 6.0
    %v3642 = vmin.f32 %v3610, 6.0
    %v3643 = vmin.f32 %v3611, 6.0
    %v3644 = vmin.f32 %v3612, 6.0
    %v3645 = vmin.f32 %v3613, 6.0
    %v3646 = vmin.f32 %v3614, 6.0
    %v3647 = vmin.f32 %v3615, 6.0
    %3648 = vst [vmem:[#allocation11] sm:$0xff] %v3616
    %3649 = vst [vmem:[#allocation11 + $0x8] sm:$0xff] %v3617
    %3650 = vst [vmem:[#allocation11 + $0x10] sm:$0xff] %v3618
    %3651 = vst [vmem:[#allocation11 + $0x18] sm:$0xff] %v3619
    %3652 = vst [vmem:[#allocation11 + $0x20] sm:$0xff] %v3620
    %3653 = vst [vmem:[#allocation11 + $0x28] sm:$0xff] %v3621
    %3654 = vst [vmem:[#allocation11 + $0x30] sm:$0xff] %v3622
    %3655 = vst [vmem:[#allocation11 + $0x38] sm:$0xff] %v3623
    %3656 = vst [vmem:[#allocation11 + $0x40] sm:$0xff] %v3624
    %3657 = vst [vmem:[#allocation11 + $0x48] sm:$0xff] %v3625
    %3658 = vst [vmem:[#allocation11 + $0x50] sm:$0xff] %v3626
    %3659 = vst [vmem:[#allocation11 + $0x58] sm:$0xff] %v3627
    %3660 = vst [vmem:[#allocation11 + $0x60] sm:$0xff] %v3628
    %3661 = vst [vmem:[#allocation11 + $0x68] sm:$0xff] %v3629
    %3662 = vst [vmem:[#allocation11 + $0x70] sm:$0xff] %v3630
    %3663 = vst [vmem:[#allocation11 + $0x78] sm:$0xff] %v3631
    %3664 = vst [vmem:[#allocation11 + $0x80] sm:$0xff] %v3632
    %3665 = vst [vmem:[#allocation11 + $0x88] sm:$0xff] %v3633
    %3666 = vst [vmem:[#allocation11 + $0x90] sm:$0xff] %v3634
    %3667 = vst [vmem:[#allocation11 + $0x98] sm:$0xff] %v3635
    %3668 = vst [vmem:[#allocation11 + $0xa0] sm:$0xff] %v3636
    %3669 = vst [vmem:[#allocation11 + $0xa8] sm:$0xff] %v3637
    %3670 = vst [vmem:[#allocation11 + $0xb0] sm:$0xff] %v3638
    %3671 = vst [vmem:[#allocation11 + $0xb8] sm:$0xff] %v3639
    %3672 = vst [vmem:[#allocation11 + $0xc0] sm:$0xff] %v3640
    %3673 = vst [vmem:[#allocation11 + $0xc8] sm:$0xff] %v3641
    %3674 = vst [vmem:[#allocation11 + $0xd0] sm:$0xff] %v3642
    %3675 = vst [vmem:[#allocation11 + $0xd8] sm:$0xff] %v3643
    %3676 = vst [vmem:[#allocation11 + $0xe0] sm:$0xff] %v3644
    %3677 = vst [vmem:[#allocation11 + $0xe8] sm:$0xff] %v3645
    %3678 = vst [vmem:[#allocation11 + $0xf0] sm:$0xff] %v3646
    %3679 = vst [vmem:[#allocation11 + $0xf8] sm:$0xff] %v3647
    // Predicated region
    $region66: #{tpu_custom_call.1} parent=1 // pred_check
      _
    $region67: #{tpu_custom_call.1} parent=1 // pred_check_branch
      %3681 = sbr.rel (0) target = $region69
    $region68: #{tpu_custom_call.1} parent=1 // pred_region
      %s3683 = ssub.s32 4096, 4096
      %3684 = vsyncadd [#allocation4], %s3683
      %s3685 = sshll.u32 [#allocation11], 4
      %s3686 = int_to_ptr.vmem [resolvable:$true] %s3685
      %3691 = dma.vmem_to_hbm [thread:$0]  %s3686, 4096, %s11, [#allocation4], 128, 128, 8
    $region69: #{tpu_custom_call.1} parent=1 // pred_fallthru
      _
    // Predicated region
    $region70: #{tpu_custom_call.1} parent=1 // pred_check
      _
    $region71: #{tpu_custom_call.1} parent=1 // pred_check_branch
      %3693 = sbr.rel (0) target = $region73
    $region72: #{tpu_custom_call.1} parent=1 // pred_region
      %3694 = dma.done [#allocation4], 4096
    $region73: #{tpu_custom_call.1} parent=1 // pred_fallthru
      _
    %3695 = vsyncpa [#allocation3], 1
    %3696 = vsyncpa [#allocation6], 1
    %3697 = vsyncpa [#allocation9], 1
    %3698 = vsyncpa [#allocation4], 1

</llo_original>
